<compile_context>
chip_gen: v6e
topology: v6e:2x2x1
jax: 0.10.0
libtpu: 0.0.40
codegen_flags: <defaults>
</compile_context>

<pallas_src>
import functools
import math

import jax
import jax.numpy as jnp
import numpy as np
from jax.experimental import pallas as pl
from jax.experimental.pallas import tpu as pltpu


def _round_up(x: int, m: int) -> int:
    return (x + m - 1) // m * m


def _token_cross_kernel(omics_ref, tokens_ref, mask_ref,
                        wq_ref, bq_ref,
                        wkv_ref, bkv_ref,
                        hm_eh_ref, hm_he_ref,
                        wo_ref, bo_ref,
                        out_ref,
                        q_sc, m_sc, l_sc, acc_sc,
                        *, n_heads: int, tb: int, ts: int, E: int, e_pad: int):
    j = pl.program_id(1)          # S-tile index ('arbitrary' trailing grid axis)

    def bcast_heads(x):
        """(..., H) per-head values -> (..., e_pad), replicated across each head's lanes (VPU)."""
        out = x[..., 0:1] * hm_he_ref[0:1, :]
        for h in range(1, n_heads):
            out = out + x[..., h:h + 1] * hm_he_ref[h:h + 1, :]
        return out

    # -------- per-B-tile init: fused+pre-scaled query projection, flash state reset --------
    @pl.when(j == 0)
    def _():
        q_sc[...] = (jnp.dot(omics_ref[...].astype(jnp.bfloat16), wq_ref[...],
                             preferred_element_type=jnp.float32) + bq_ref[...])
        m_sc[...] = jnp.full_like(m_sc, -jnp.inf)
        l_sc[...] = jnp.zeros_like(l_sc)
        acc_sc[...] = jnp.zeros_like(acc_sc)

    # -------- fused K/V projection: ONE bf16 MXU matmul, f32 accumulation ------------------
    tok = tokens_ref[...].astype(jnp.bfloat16).reshape(tb * ts, E)
    kv = jnp.dot(tok, wkv_ref[...], preferred_element_type=jnp.float32) + bkv_ref[...]
    k = kv[:, :e_pad].reshape(tb, ts, e_pad)            # split on a 128-lane boundary
    v = kv[:, e_pad:].reshape(tb, ts, e_pad)

    # -------- per-head scores (1/sqrt(hd) already folded into q) ---------------------------
    qk = q_sc[...][:, None, :] * k                                           # (tb, ts, e_pad) f32
    s = jnp.dot(qk.reshape(tb * ts, e_pad).astype(jnp.bfloat16), hm_eh_ref[...],
                preferred_element_type=jnp.float32).reshape(tb, ts, n_heads)
    s = s + mask_ref[...]                       # additive key-padding mask, broadcast over H

    # -------- flash-style online softmax over the S grid axis ------------------------------
    m_prev = m_sc[...]                                                       # (tb, 1, H)
    m_new = jnp.maximum(m_prev, jnp.max(s, axis=1, keepdims=True))
    m_safe = jnp.where(m_new == -jnp.inf, 0.0, m_new)    # guard fully-masked S-tiles
    alpha = jnp.exp(m_prev - m_safe)                                         # (tb, 1, H)
    p = jnp.exp(s - m_safe)                                                  # (tb, ts, H)
    l_sc[...] = alpha * l_sc[...] + jnp.sum(p, axis=1, keepdims=True)
    m_sc[...] = m_new

    p_full = bcast_heads(p)                                                  # (tb, ts, e_pad)
    alpha_full = bcast_heads(alpha[:, 0, :])                                 # (tb, e_pad)
    acc_sc[...] = alpha_full * acc_sc[...] + jnp.sum(p_full * v, axis=1)     # (tb, e_pad)

    # -------- finalize: normalize + bf16 out-projection, lane-dense store ------------------
    @pl.when(j == pl.num_programs(1) - 1)
    def _():
        l_full = bcast_heads(l_sc[...][:, 0, :])                             # (tb, e_pad)
        ctx = acc_sc[...] * pl.reciprocal(l_full, approx=True)
        out = jnp.dot(ctx.astype(jnp.bfloat16), wo_ref[...],
                      preferred_element_type=jnp.float32) + bo_ref[...]
        out_ref[...] = out.astype(out_ref.dtype)


def token_cross_block(omics_vec, tokens, kpm, params, n_heads, *, tb=None, ts=None):
    """Pallas implementation of _TokenCrossBlock.forward (eval mode)."""
    B, S, E = tokens.shape
    omics_dim = omics_vec.shape[-1]
    if E % n_heads != 0:
        raise ValueError(f"embed_dim {E} must be divisible by n_heads {n_heads}")
    hd = E // n_heads
    e_pad = _round_up(E, 128)

    # ---- tile selection: B tile on 'parallel' axis, S tile on trailing 'arbitrary' axis ----
    if tb is None:
        tb = 8 if B % 8 == 0 else B
    if ts is None:
        ts = S
        for cand in range(8, min(S, 512) + 1, 8):
            if S % cand == 0:
                ts = cand
    if B % tb != 0 or S % ts != 0:
        raise ValueError("B and S must be divisible by the chosen tiles")

    # ---------- host-side algebraic fusion / layout prep (weights only; tiny) ----------
    scale = 1.0 / math.sqrt(hd)
    # q = omics @ (scale * Wq @ Wqproj).T + scale * (Wq @ bqproj + bq)
    w_q_f = (params['w_q'] @ params['w_qproj']) * scale                           # (E, D_om)
    b_q_f = (params['w_q'] @ params['b_qproj'] + params['b_q']) * scale           # (E,)
    w_q_t = jnp.zeros((omics_dim, e_pad), jnp.float32).at[:, :E].set(w_q_f.T)
    w_q_t = w_q_t.astype(jnp.bfloat16)
    b_q = jnp.zeros((1, e_pad), jnp.float32).at[0, :E].set(b_q_f)

    # fused, pre-transposed K/V weight; K and V each padded to e_pad output lanes
    w_kv_t = jnp.zeros((E, 2 * e_pad), jnp.float32)
    w_kv_t = (w_kv_t.at[:, :E].set(params['w_k'].T)
                     .at[:, e_pad:e_pad + E].set(params['w_v'].T)).astype(jnp.bfloat16)
    b_kv = jnp.zeros((1, 2 * e_pad), jnp.float32)
    b_kv = b_kv.at[0, :E].set(params['b_k']).at[0, e_pad:e_pad + E].set(params['b_v'])

    w_o_t = jnp.zeros((e_pad, e_pad), jnp.float32).at[:E, :E].set(params['w_o'].T)
    w_o_t = w_o_t.astype(jnp.bfloat16)
    b_o = jnp.zeros((1, e_pad), jnp.float32).at[0, :E].set(params['b_o'])

    # per-lane head maps (tiny; built once host-side, VMEM-resident in the kernel)
    lane = np.arange(e_pad)
    head_of = np.minimum(lane // hd, n_heads - 1)          # padded lanes -> last head (harmless)
    hm = (head_of[:, None] == np.arange(n_heads)[None, :]).astype(np.float32)     # (e_pad, H)
    hm_eh = jnp.asarray(hm, dtype=jnp.bfloat16)            # per-head score reduction (MXU, bf16)
    hm_he = jnp.asarray(hm.T, dtype=jnp.float32)           # VPU head-lane broadcast masks

    # compact additive key-padding mask: (B, S, 1) f32, broadcast over heads in-kernel
    addmask = jnp.where(kpm, -jnp.inf, 0.0).astype(jnp.float32)[:, :, None]

    args = (omics_vec, tokens, addmask,
            w_q_t, b_q, w_kv_t, b_kv, hm_eh, hm_he, w_o_t, b_o)

    kernel = functools.partial(_token_cross_kernel, n_heads=n_heads,
                               tb=tb, ts=ts, E=E, e_pad=e_pad)

    grid = (B // tb, S // ts)
    rep = lambda i, j: (0, 0)     # whole-array, VMEM-resident weight blocks
    in_specs = [
        pl.BlockSpec((tb, omics_dim), lambda i, j: (i, 0)),
        pl.BlockSpec((tb, ts, E), lambda i, j: (i, j, 0)),
        pl.BlockSpec((tb, ts, 1), lambda i, j: (i, j, 0)),
        pl.BlockSpec((omics_dim, e_pad), rep),
        pl.BlockSpec((1, e_pad), rep),
        pl.BlockSpec((E, 2 * e_pad), rep),
        pl.BlockSpec((1, 2 * e_pad), rep),
        pl.BlockSpec((e_pad, n_heads), rep),
        pl.BlockSpec((n_heads, e_pad), rep),
        pl.BlockSpec((e_pad, e_pad), rep),
        pl.BlockSpec((1, e_pad), rep),
    ]
    out_specs = pl.BlockSpec((tb, e_pad), lambda i, j: (i, 0))

    out_padded = pl.pallas_call(
        kernel,
        out_shape=jax.ShapeDtypeStruct((B, e_pad), jnp.float32),
        grid_spec=pltpu.PrefetchScalarGridSpec(
            num_scalar_prefetch=0,
            grid=grid,
            in_specs=in_specs,
            out_specs=out_specs,
            scratch_shapes=[
                pltpu.VMEM((tb, e_pad), jnp.float32),        # pre-scaled query
                pltpu.VMEM((tb, 1, n_heads), jnp.float32),   # running max
                pltpu.VMEM((tb, 1, n_heads), jnp.float32),   # running sum
                pltpu.VMEM((tb, e_pad), jnp.float32),        # context accumulator
            ]),
        compiler_params=pltpu.CompilerParams(
            dimension_semantics=("parallel", "arbitrary"),
            vmem_limit_bytes=32 * 1024 * 1024),
    )(*args)
    return out_padded[:, :E]


def token_cross_block_ref(omics_vec, tokens, kpm, params, n_heads):
    """Pure-JAX f32 reference mirroring PyTorch nn.MultiheadAttention (eval)."""
    B, S, E = tokens.shape
    hd = E // n_heads
    q0 = omics_vec @ params['w_qproj'].T + params['b_qproj']            # (B, E)
    q = q0 @ params['w_q'].T + params['b_q']                            # (B, E)
    k = tokens @ params['w_k'].T + params['b_k']                        # (B, S, E)
    v = tokens @ params['w_v'].T + params['b_v']                        # (B, S, E)

    qh = q.reshape(B, n_heads, hd)
    kh = k.reshape(B, S, n_heads, hd)
    vh = v.reshape(B, S, n_heads, hd)

    s = jnp.einsum('bhd,bshd->bhs', qh, kh) / math.sqrt(hd)             # (B, H, S)
    s = jnp.where(kpm[:, None, :], -jnp.inf, s)
    a = jax.nn.softmax(s, axis=-1)
    ctx = jnp.einsum('bhs,bshd->bhd', a, vh).reshape(B, E)
    return ctx @ params['w_o'].T + params['b_o']


def init_params(key, omics_dim, embed_dim):
    keys = jax.random.split(key, 10)
    s = 0.1
    return {
        # q_proj = nn.Linear(omics_dim, embed_dim)
        'w_qproj': s * jax.random.normal(keys[0], (embed_dim, omics_dim), jnp.float32),
        'b_qproj': s * jax.random.normal(keys[1], (embed_dim,), jnp.float32),
        # attn.in_proj_weight (3E, E) split into q/k/v, in_proj_bias (3E,)
        'w_q': s * jax.random.normal(keys[2], (embed_dim, embed_dim), jnp.float32),
        'w_k': s * jax.random.normal(keys[3], (embed_dim, embed_dim), jnp.float32),
        'w_v': s * jax.random.normal(keys[4], (embed_dim, embed_dim), jnp.float32),
        'b_q': s * jax.random.normal(keys[5], (embed_dim,), jnp.float32),
        'b_k': s * jax.random.normal(keys[6], (embed_dim,), jnp.float32),
        'b_v': s * jax.random.normal(keys[7], (embed_dim,), jnp.float32),
        # attn.out_proj = nn.Linear(embed_dim, embed_dim)
        'w_o': s * jax.random.normal(keys[8], (embed_dim, embed_dim), jnp.float32),
        'b_o': s * jax.random.normal(keys[9], (embed_dim,), jnp.float32),
    }


if __name__ == "__main__":
    # small shapes, but sized to exercise both grid axes and the flash S-recurrence
    B, omics_dim, S, embed_dim, n_heads = 16, 16, 32, 32, 4

    key = jax.random.PRNGKey(0)
    k_params, k_omics, k_tok = jax.random.split(key, 3)

    params = init_params(k_params, omics_dim, embed_dim)
    omics_vec = jax.random.normal(k_omics, (B, omics_dim), jnp.float32)
    tokens = jax.random.normal(k_tok, (B, S, embed_dim), jnp.float32)

    # key_padding_mask: True == padded
    kpm = jnp.zeros((B, S), dtype=bool)
    kpm = kpm.at[1, S - 3:].set(True)       # trailing pad
    kpm = kpm.at[5, :S // 2].set(True)      # entire first S-tile padded (exercises -inf guard)
    kpm = kpm.at[9, 3:7].set(True)          # pad in the middle of a tile

    out = token_cross_block(omics_vec, tokens, kpm, params, n_heads, tb=8, ts=S // 2)
    out = jax.block_until_ready(out)

    ref = token_cross_block_ref(omics_vec, tokens, kpm, params, n_heads)
    # tolerance accounts for bf16 MXU feeds + EUP approx reciprocal
    np.testing.assert_allclose(np.asarray(out), np.asarray(ref), atol=2e-2, rtol=2e-2)

    print("KERNEL_OK")
</pallas_src>

<mosaic_0001>
module attributes {stable_mosaic.version = 11 : i64} {
  func.func @_token_cross_kernel(%arg0: i32, %arg1: i32, %arg2: memref<8x16xf32, #tpu.memory_space<vmem>>, %arg3: memref<8x16x32xf32, #tpu.memory_space<vmem>>, %arg4: memref<8x16x1xf32, #tpu.memory_space<vmem>>, %arg5: memref<16x128xbf16, #tpu.memory_space<vmem>>, %arg6: memref<1x128xf32, #tpu.memory_space<vmem>>, %arg7: memref<32x256xbf16, #tpu.memory_space<vmem>>, %arg8: memref<1x256xf32, #tpu.memory_space<vmem>>, %arg9: memref<128x4xbf16, #tpu.memory_space<vmem>>, %arg10: memref<4x128xf32, #tpu.memory_space<vmem>>, %arg11: memref<128x128xbf16, #tpu.memory_space<vmem>>, %arg12: memref<1x128xf32, #tpu.memory_space<vmem>>, %arg13: memref<8x128xf32, #tpu.memory_space<vmem>>, %arg14: memref<8x128xf32, #tpu.memory_space<vmem>>, %arg15: memref<8x1x4xf32, #tpu.memory_space<vmem>>, %arg16: memref<8x1x4xf32, #tpu.memory_space<vmem>>, %arg17: memref<8x128xf32, #tpu.memory_space<vmem>>) attributes {dimension_semantics = [#tpu.dimension_semantics<parallel>, #tpu.dimension_semantics<arbitrary>], iteration_bounds = array<i64: 2, 2>, scalar_prefetch = 0 : i64, scratch_operands = 4 : i64, tpu.core_type = #tpu.core_type<tc>, window_params = [{transform_indices = @transform_0, window_bounds = array<i64: 8, 16>}, {transform_indices = @transform_1, window_bounds = array<i64: 8, 16, 32>}, {transform_indices = @transform_2, window_bounds = array<i64: 8, 16, 1>}, {pipeline_mode = #tpu.pipeline_mode<synchronous>, transform_indices = @transform_3, window_bounds = array<i64: 16, 128>}, {pipeline_mode = #tpu.pipeline_mode<synchronous>, transform_indices = @transform_4, window_bounds = array<i64: 1, 128>}, {pipeline_mode = #tpu.pipeline_mode<synchronous>, transform_indices = @transform_5, window_bounds = array<i64: 32, 256>}, {pipeline_mode = #tpu.pipeline_mode<synchronous>, transform_indices = @transform_6, window_bounds = array<i64: 1, 256>}, {pipeline_mode = #tpu.pipeline_mode<synchronous>, transform_indices = @transform_7, window_bounds = array<i64: 128, 4>}, {pipeline_mode = #tpu.pipeline_mode<synchronous>, transform_indices = @transform_8, window_bounds = array<i64: 4, 128>}, {pipeline_mode = #tpu.pipeline_mode<synchronous>, transform_indices = @transform_9, window_bounds = array<i64: 128, 128>}, {pipeline_mode = #tpu.pipeline_mode<synchronous>, transform_indices = @transform_10, window_bounds = array<i64: 1, 128>}, {transform_indices = @transform_11, window_bounds = array<i64: 8, 128>}]} {
    %c0_i32 = arith.constant 0 : i32
    %0 = arith.cmpi eq, %arg1, %c0_i32 : i32
    %1 = arith.extui %0 : i1 to i32
    %c0_i32_0 = arith.constant 0 : i32
    %2 = arith.cmpi ne, %1, %c0_i32_0 : i32
    scf.if %2 {
      %c0_50 = arith.constant 0 : index
      %c0_51 = arith.constant 0 : index
      %107 = vector.load %arg2[%c0_50, %c0_51] : memref<8x16xf32, #tpu.memory_space<vmem>>, vector<8x16xf32>
      %108 = arith.truncf %107 : vector<8x16xf32> to vector<8x16xbf16>
      %c0_52 = arith.constant 0 : index
      %c0_53 = arith.constant 0 : index
      %109 = vector.load %arg5[%c0_52, %c0_53] : memref<16x128xbf16, #tpu.memory_space<vmem>>, vector<16x128xbf16>
      %cst_54 = arith.constant dense<0.000000e+00> : vector<8x128xf32>
      %110 = tpu.matmul %108, %109, %cst_54 {dimension_numbers = #tpu.dot_dimension_numbers<[1], [0], [0], [1], [0, 0, 1, 1], [], []>} : vector<8x16xbf16>, vector<16x128xbf16>, vector<8x128xf32> -> vector<8x128xf32>
      %c0_55 = arith.constant 0 : index
      %c0_56 = arith.constant 0 : index
      %111 = vector.load %arg6[%c0_55, %c0_56] : memref<1x128xf32, #tpu.memory_space<vmem>>, vector<1x128xf32>
      %112 = vector.broadcast %111 : vector<1x128xf32> to vector<8x128xf32>
      %113 = arith.addf %110, %112 : vector<8x128xf32>
      %c0_57 = arith.constant 0 : index
      %c0_58 = arith.constant 0 : index
      %114 = vector.load %arg14[%c0_57, %c0_58] : memref<8x128xf32, #tpu.memory_space<vmem>>, vector<8x128xf32>
      tpu.vector_store %arg14[%c0_57, %c0_58], %113 {strides = array<i32>} : memref<8x128xf32, #tpu.memory_space<vmem>>, vector<8x128xf32>,
      %cst_59 = arith.constant 0xFF800000 : f32
      %115 = vector.broadcast %cst_59 : f32 to vector<8x1x4xf32>
      %c0_60 = arith.constant 0 : index
      %c0_61 = arith.constant 0 : index
      %c0_62 = arith.constant 0 : index
      %116 = vector.load %arg15[%c0_60, %c0_61, %c0_62] : memref<8x1x4xf32, #tpu.memory_space<vmem>>, vector<8x1x4xf32>
      tpu.vector_store %arg15[%c0_60, %c0_61, %c0_62], %115 {strides = array<i32>} : memref<8x1x4xf32, #tpu.memory_space<vmem>>, vector<8x1x4xf32>,
      %cst_63 = arith.constant 0.000000e+00 : f32
      %117 = vector.broadcast %cst_63 : f32 to vector<8x1x4xf32>
      %c0_64 = arith.constant 0 : index
      %c0_65 = arith.constant 0 : index
      %c0_66 = arith.constant 0 : index
      %118 = vector.load %arg16[%c0_64, %c0_65, %c0_66] : memref<8x1x4xf32, #tpu.memory_space<vmem>>, vector<8x1x4xf32>
      tpu.vector_store %arg16[%c0_64, %c0_65, %c0_66], %117 {strides = array<i32>} : memref<8x1x4xf32, #tpu.memory_space<vmem>>, vector<8x1x4xf32>,
      %cst_67 = arith.constant 0.000000e+00 : f32
      %119 = vector.broadcast %cst_67 : f32 to vector<8x128xf32>
      %c0_68 = arith.constant 0 : index
      %c0_69 = arith.constant 0 : index
      %120 = vector.load %arg17[%c0_68, %c0_69] : memref<8x128xf32, #tpu.memory_space<vmem>>, vector<8x128xf32>
      tpu.vector_store %arg17[%c0_68, %c0_69], %119 {strides = array<i32>} : memref<8x128xf32, #tpu.memory_space<vmem>>, vector<8x128xf32>,
    } else {
    }
    %c0 = arith.constant 0 : index
    %c0_1 = arith.constant 0 : index
    %c0_2 = arith.constant 0 : index
    %3 = vector.load %arg3[%c0, %c0_1, %c0_2] : memref<8x16x32xf32, #tpu.memory_space<vmem>>, vector<8x16x32xf32>
    %4 = arith.truncf %3 : vector<8x16x32xf32> to vector<8x16x32xbf16>
    %5 = vector.shape_cast %4 : vector<8x16x32xbf16> to vector<128x32xbf16>
    %c0_3 = arith.constant 0 : index
    %c0_4 = arith.constant 0 : index
    %6 = vector.load %arg7[%c0_3, %c0_4] : memref<32x256xbf16, #tpu.memory_space<vmem>>, vector<32x256xbf16>
    %cst = arith.constant dense<0.000000e+00> : vector<128x256xf32>
    %7 = tpu.matmul %5, %6, %cst {dimension_numbers = #tpu.dot_dimension_numbers<[1], [0], [0], [1], [0, 0, 1, 1], [], []>} : vector<128x32xbf16>, vector<32x256xbf16>, vector<128x256xf32> -> vector<128x256xf32>
    %c0_5 = arith.constant 0 : index
    %c0_6 = arith.constant 0 : index
    %8 = vector.load %arg8[%c0_5, %c0_6] : memref<1x256xf32, #tpu.memory_space<vmem>>, vector<1x256xf32>
    %9 = vector.broadcast %8 : vector<1x256xf32> to vector<128x256xf32>
    %10 = arith.addf %7, %9 : vector<128x256xf32>
    %11 = vector.extract_strided_slice %10 {offsets = [0, 0], sizes = [128, 128], strides = [1, 1]} : vector<128x256xf32> to vector<128x128xf32>
    %12 = vector.shape_cast %11 : vector<128x128xf32> to vector<8x16x128xf32>
    %13 = vector.extract_strided_slice %10 {offsets = [0, 128], sizes = [128, 128], strides = [1, 1]} : vector<128x256xf32> to vector<128x128xf32>
    %14 = vector.shape_cast %13 : vector<128x128xf32> to vector<8x16x128xf32>
    %c0_7 = arith.constant 0 : index
    %c0_8 = arith.constant 0 : index
    %15 = vector.load %arg14[%c0_7, %c0_8] : memref<8x128xf32, #tpu.memory_space<vmem>>, vector<8x128xf32>
    %16 = vector.shape_cast %15 : vector<8x128xf32> to vector<8x1x128xf32>
    %17 = vector.broadcast %16 : vector<8x1x128xf32> to vector<8x16x128xf32>
    %18 = arith.mulf %17, %12 : vector<8x16x128xf32>
    %19 = vector.shape_cast %18 : vector<8x16x128xf32> to vector<128x128xf32>
    %20 = arith.truncf %19 : vector<128x128xf32> to vector<128x128xbf16>
    %c0_9 = arith.constant 0 : index
    %c0_10 = arith.constant 0 : index
    %21 = vector.load %arg9[%c0_9, %c0_10] : memref<128x4xbf16, #tpu.memory_space<vmem>>, vector<128x4xbf16>
    %cst_11 = arith.constant dense<0.000000e+00> : vector<128x4xf32>
    %22 = tpu.matmul %20, %21, %cst_11 {dimension_numbers = #tpu.dot_dimension_numbers<[1], [0], [0], [1], [0, 0, 1, 1], [], []>} : vector<128x128xbf16>, vector<128x4xbf16>, vector<128x4xf32> -> vector<128x4xf32>
    %23 = vector.shape_cast %22 : vector<128x4xf32> to vector<8x16x4xf32>
    %c0_12 = arith.constant 0 : index
    %c0_13 = arith.constant 0 : index
    %c0_14 = arith.constant 0 : index
    %24 = vector.load %arg4[%c0_12, %c0_13, %c0_14] : memref<8x16x1xf32, #tpu.memory_space<vmem>>, vector<8x16x1xf32>
    %25 = vector.broadcast %24 : vector<8x16x1xf32> to vector<8x16x4xf32>
    %26 = arith.addf %23, %25 : vector<8x16x4xf32>
    %c0_15 = arith.constant 0 : index
    %c0_16 = arith.constant 0 : index
    %c0_17 = arith.constant 0 : index
    %27 = vector.load %arg15[%c0_15, %c0_16, %c0_17] : memref<8x1x4xf32, #tpu.memory_space<vmem>>, vector<8x1x4xf32>
    %cst_18 = arith.constant dense<0xFF800000> : vector<8x4xf32>
    %28 = vector.multi_reduction <maximumf>, %26, %cst_18 [1] : vector<8x16x4xf32> to vector<8x4xf32>
    %29 = vector.shape_cast %28 : vector<8x4xf32> to vector<8x1x4xf32>
    %30 = arith.maximumf %27, %29 : vector<8x1x4xf32>
    %cst_19 = arith.constant 0xFF800000 : f32
    %31 = vector.broadcast %cst_19 : f32 to vector<8x1x4xf32>
    %32 = arith.cmpf oeq, %30, %31 : vector<8x1x4xf32>
    %cst_20 = arith.constant 0.000000e+00 : f32
    %33 = vector.broadcast %cst_20 : f32 to vector<8x1x4xf32>
    %34 = arith.select %32, %33, %30 : vector<8x1x4xi1>, vector<8x1x4xf32>
    %35 = arith.subf %27, %34 : vector<8x1x4xf32>
    %36 = math.exp %35 : vector<8x1x4xf32>
    %37 = vector.broadcast %34 : vector<8x1x4xf32> to vector<8x16x4xf32>
    %38 = arith.subf %26, %37 : vector<8x16x4xf32>
    %39 = math.exp %38 : vector<8x16x4xf32>
    %c0_21 = arith.constant 0 : index
    %c0_22 = arith.constant 0 : index
    %c0_23 = arith.constant 0 : index
    %40 = vector.load %arg16[%c0_21, %c0_22, %c0_23] : memref<8x1x4xf32, #tpu.memory_space<vmem>>, vector<8x1x4xf32>
    %41 = arith.mulf %36, %40 : vector<8x1x4xf32>
    %cst_24 = arith.constant dense<0.000000e+00> : vector<8x4xf32>
    %42 = vector.multi_reduction <add>, %39, %cst_24 [1] : vector<8x16x4xf32> to vector<8x4xf32>
    %43 = vector.shape_cast %42 : vector<8x4xf32> to vector<8x1x4xf32>
    %44 = arith.addf %41, %43 : vector<8x1x4xf32>
    %c0_25 = arith.constant 0 : index
    %c0_26 = arith.constant 0 : index
    %c0_27 = arith.constant 0 : index
    %45 = vector.load %arg16[%c0_25, %c0_26, %c0_27] : memref<8x1x4xf32, #tpu.memory_space<vmem>>, vector<8x1x4xf32>
    tpu.vector_store %arg16[%c0_25, %c0_26, %c0_27], %44 {strides = array<i32>} : memref<8x1x4xf32, #tpu.memory_space<vmem>>, vector<8x1x4xf32>,
    %c0_28 = arith.constant 0 : index
    %c0_29 = arith.constant 0 : index
    %c0_30 = arith.constant 0 : index
    %46 = vector.load %arg15[%c0_28, %c0_29, %c0_30] : memref<8x1x4xf32, #tpu.memory_space<vmem>>, vector<8x1x4xf32>
    tpu.vector_store %arg15[%c0_28, %c0_29, %c0_30], %30 {strides = array<i32>} : memref<8x1x4xf32, #tpu.memory_space<vmem>>, vector<8x1x4xf32>,
    %47 = vector.extract_strided_slice %39 {offsets = [0, 0, 0], sizes = [8, 16, 1], strides = [1, 1, 1]} : vector<8x16x4xf32> to vector<8x16x1xf32>
    %c0_31 = arith.constant 0 : index
    %c0_32 = arith.constant 0 : index
    %48 = vector.load %arg10[%c0_31, %c0_32] : memref<4x128xf32, #tpu.memory_space<vmem>>, vector<1x128xf32>
    %49 = vector.shape_cast %48 : vector<1x128xf32> to vector<1x1x128xf32>
    %50 = vector.broadcast %47 : vector<8x16x1xf32> to vector<8x16x128xf32>
    %51 = vector.broadcast %49 : vector<1x1x128xf32> to vector<8x16x128xf32>
    %52 = arith.mulf %50, %51 : vector<8x16x128xf32>
    %53 = vector.extract_strided_slice %39 {offsets = [0, 0, 1], sizes = [8, 16, 1], strides = [1, 1, 1]} : vector<8x16x4xf32> to vector<8x16x1xf32>
    %c1 = arith.constant 1 : index
    %c0_33 = arith.constant 0 : index
    %54 = vector.load %arg10[%c1, %c0_33] : memref<4x128xf32, #tpu.memory_space<vmem>>, vector<1x128xf32>
    %55 = vector.shape_cast %54 : vector<1x128xf32> to vector<1x1x128xf32>
    %56 = vector.broadcast %53 : vector<8x16x1xf32> to vector<8x16x128xf32>
    %57 = vector.broadcast %55 : vector<1x1x128xf32> to vector<8x16x128xf32>
    %58 = arith.mulf %56, %57 : vector<8x16x128xf32>
    %59 = arith.addf %52, %58 : vector<8x16x128xf32>
    %60 = vector.extract_strided_slice %39 {offsets = [0, 0, 2], sizes = [8, 16, 1], strides = [1, 1, 1]} : vector<8x16x4xf32> to vector<8x16x1xf32>
    %c2 = arith.constant 2 : index
    %c0_34 = arith.constant 0 : index
    %61 = vector.load %arg10[%c2, %c0_34] : memref<4x128xf32, #tpu.memory_space<vmem>>, vector<1x128xf32>
    %62 = vector.shape_cast %61 : vector<1x128xf32> to vector<1x1x128xf32>
    %63 = vector.broadcast %60 : vector<8x16x1xf32> to vector<8x16x128xf32>
    %64 = vector.broadcast %62 : vector<1x1x128xf32> to vector<8x16x128xf32>
    %65 = arith.mulf %63, %64 : vector<8x16x128xf32>
    %66 = arith.addf %59, %65 : vector<8x16x128xf32>
    %67 = vector.extract_strided_slice %39 {offsets = [0, 0, 3], sizes = [8, 16, 1], strides = [1, 1, 1]} : vector<8x16x4xf32> to vector<8x16x1xf32>
    %c3 = arith.constant 3 : index
    %c0_35 = arith.constant 0 : index
    %68 = vector.load %arg10[%c3, %c0_35] : memref<4x128xf32, #tpu.memory_space<vmem>>, vector<1x128xf32>
    %69 = vector.shape_cast %68 : vector<1x128xf32> to vector<1x1x128xf32>
    %70 = vector.broadcast %67 : vector<8x16x1xf32> to vector<8x16x128xf32>
    %71 = vector.broadcast %69 : vector<1x1x128xf32> to vector<8x16x128xf32>
    %72 = arith.mulf %70, %71 : vector<8x16x128xf32>
    %73 = arith.addf %66, %72 : vector<8x16x128xf32>
    %74 = vector.shape_cast %36 : vector<8x1x4xf32> to vector<8x4xf32>
    %75 = vector.extract_strided_slice %74 {offsets = [0, 0], sizes = [8, 1], strides = [1, 1]} : vector<8x4xf32> to vector<8x1xf32>
    %c0_36 = arith.constant 0 : index
    %c0_37 = arith.constant 0 : index
    %76 = vector.load %arg10[%c0_36, %c0_37] : memref<4x128xf32, #tpu.memory_space<vmem>>, vector<1x128xf32>
    %77 = vector.broadcast %75 : vector<8x1xf32> to vector<8x128xf32>
    %78 = vector.broadcast %76 : vector<1x128xf32> to vector<8x128xf32>
    %79 = arith.mulf %77, %78 : vector<8x128xf32>
    %80 = vector.extract_strided_slice %74 {offsets = [0, 1], sizes = [8, 1], strides = [1, 1]} : vector<8x4xf32> to vector<8x1xf32>
    %c1_38 = arith.constant 1 : index
    %c0_39 = arith.constant 0 : index
    %81 = vector.load %arg10[%c1_38, %c0_39] : memref<4x128xf32, #tpu.memory_space<vmem>>, vector<1x128xf32>
    %82 = vector.broadcast %80 : vector<8x1xf32> to vector<8x128xf32>
    %83 = vector.broadcast %81 : vector<1x128xf32> to vector<8x128xf32>
    %84 = arith.mulf %82, %83 : vector<8x128xf32>
    %85 = arith.addf %79, %84 : vector<8x128xf32>
    %86 = vector.extract_strided_slice %74 {offsets = [0, 2], sizes = [8, 1], strides = [1, 1]} : vector<8x4xf32> to vector<8x1xf32>
    %c2_40 = arith.constant 2 : index
    %c0_41 = arith.constant 0 : index
    %87 = vector.load %arg10[%c2_40, %c0_41] : memref<4x128xf32, #tpu.memory_space<vmem>>, vector<1x128xf32>
    %88 = vector.broadcast %86 : vector<8x1xf32> to vector<8x128xf32>
    %89 = vector.broadcast %87 : vector<1x128xf32> to vector<8x128xf32>
    %90 = arith.mulf %88, %89 : vector<8x128xf32>
    %91 = arith.addf %85, %90 : vector<8x128xf32>
    %92 = vector.extract_strided_slice %74 {offsets = [0, 3], sizes = [8, 1], strides = [1, 1]} : vector<8x4xf32> to vector<8x1xf32>
    %c3_42 = arith.constant 3 : index
    %c0_43 = arith.constant 0 : index
    %93 = vector.load %arg10[%c3_42, %c0_43] : memref<4x128xf32, #tpu.memory_space<vmem>>, vector<1x128xf32>
    %94 = vector.broadcast %92 : vector<8x1xf32> to vector<8x128xf32>
    %95 = vector.broadcast %93 : vector<1x128xf32> to vector<8x128xf32>
    %96 = arith.mulf %94, %95 : vector<8x128xf32>
    %97 = arith.addf %91, %96 : vector<8x128xf32>
    %c0_44 = arith.constant 0 : index
    %c0_45 = arith.constant 0 : index
    %98 = vector.load %arg17[%c0_44, %c0_45] : memref<8x128xf32, #tpu.memory_space<vmem>>, vector<8x128xf32>
    %99 = arith.mulf %97, %98 : vector<8x128xf32>
    %100 = arith.mulf %73, %14 : vector<8x16x128xf32>
    %cst_46 = arith.constant dense<0.000000e+00> : vector<8x128xf32>
    %101 = vector.multi_reduction <add>, %100, %cst_46 [1] : vector<8x16x128xf32> to vector<8x128xf32>
    %102 = arith.addf %99, %101 : vector<8x128xf32>
    %c0_47 = arith.constant 0 : index
    %c0_48 = arith.constant 0 : index
    %103 = vector.load %arg17[%c0_47, %c0_48] : memref<8x128xf32, #tpu.memory_space<vmem>>, vector<8x128xf32>
    tpu.vector_store %arg17[%c0_47, %c0_48], %102 {strides = array<i32>} : memref<8x128xf32, #tpu.memory_space<vmem>>, vector<8x128xf32>,
    %c1_i32 = arith.constant 1 : i32
    %104 = arith.cmpi eq, %arg1, %c1_i32 : i32
    %105 = arith.extui %104 : i1 to i32
    %c0_i32_49 = arith.constant 0 : i32
    %106 = arith.cmpi ne, %105, %c0_i32_49 : i32
    scf.if %106 {
      %c0_50 = arith.constant 0 : index
      %c0_51 = arith.constant 0 : index
      %c0_52 = arith.constant 0 : index
      %107 = vector.load %arg16[%c0_50, %c0_51, %c0_52] : memref<8x1x4xf32, #tpu.memory_space<vmem>>, vector<8x1x4xf32>
      %108 = vector.shape_cast %107 : vector<8x1x4xf32> to vector<8x4xf32>
      %109 = vector.extract_strided_slice %108 {offsets = [0, 0], sizes = [8, 1], strides = [1, 1]} : vector<8x4xf32> to vector<8x1xf32>
      %c0_53 = arith.constant 0 : index
      %c0_54 = arith.constant 0 : index
      %110 = vector.load %arg10[%c0_53, %c0_54] : memref<4x128xf32, #tpu.memory_space<vmem>>, vector<1x128xf32>
      %111 = vector.broadcast %109 : vector<8x1xf32> to vector<8x128xf32>
      %112 = vector.broadcast %110 : vector<1x128xf32> to vector<8x128xf32>
      %113 = arith.mulf %111, %112 : vector<8x128xf32>
      %114 = vector.extract_strided_slice %108 {offsets = [0, 1], sizes = [8, 1], strides = [1, 1]} : vector<8x4xf32> to vector<8x1xf32>
      %c1_55 = arith.constant 1 : index
      %c0_56 = arith.constant 0 : index
      %115 = vector.load %arg10[%c1_55, %c0_56] : memref<4x128xf32, #tpu.memory_space<vmem>>, vector<1x128xf32>
      %116 = vector.broadcast %114 : vector<8x1xf32> to vector<8x128xf32>
      %117 = vector.broadcast %115 : vector<1x128xf32> to vector<8x128xf32>
      %118 = arith.mulf %116, %117 : vector<8x128xf32>
      %119 = arith.addf %113, %118 : vector<8x128xf32>
      %120 = vector.extract_strided_slice %108 {offsets = [0, 2], sizes = [8, 1], strides = [1, 1]} : vector<8x4xf32> to vector<8x1xf32>
      %c2_57 = arith.constant 2 : index
      %c0_58 = arith.constant 0 : index
      %121 = vector.load %arg10[%c2_57, %c0_58] : memref<4x128xf32, #tpu.memory_space<vmem>>, vector<1x128xf32>
      %122 = vector.broadcast %120 : vector<8x1xf32> to vector<8x128xf32>
      %123 = vector.broadcast %121 : vector<1x128xf32> to vector<8x128xf32>
      %124 = arith.mulf %122, %123 : vector<8x128xf32>
      %125 = arith.addf %119, %124 : vector<8x128xf32>
      %126 = vector.extract_strided_slice %108 {offsets = [0, 3], sizes = [8, 1], strides = [1, 1]} : vector<8x4xf32> to vector<8x1xf32>
      %c3_59 = arith.constant 3 : index
      %c0_60 = arith.constant 0 : index
      %127 = vector.load %arg10[%c3_59, %c0_60] : memref<4x128xf32, #tpu.memory_space<vmem>>, vector<1x128xf32>
      %128 = vector.broadcast %126 : vector<8x1xf32> to vector<8x128xf32>
      %129 = vector.broadcast %127 : vector<1x128xf32> to vector<8x128xf32>
      %130 = arith.mulf %128, %129 : vector<8x128xf32>
      %131 = arith.addf %125, %130 : vector<8x128xf32>
      %c0_61 = arith.constant 0 : index
      %c0_62 = arith.constant 0 : index
      %132 = vector.load %arg17[%c0_61, %c0_62] : memref<8x128xf32, #tpu.memory_space<vmem>>, vector<8x128xf32>
      %133 = tpu.reciprocal %131 {approx = true} : vector<8x128xf32> -> vector<8x128xf32>
      %134 = arith.mulf %132, %133 : vector<8x128xf32>
      %135 = arith.truncf %134 : vector<8x128xf32> to vector<8x128xbf16>
      %c0_63 = arith.constant 0 : index
      %c0_64 = arith.constant 0 : index
      %136 = vector.load %arg11[%c0_63, %c0_64] : memref<128x128xbf16, #tpu.memory_space<vmem>>, vector<128x128xbf16>
      %cst_65 = arith.constant dense<0.000000e+00> : vector<8x128xf32>
      %137 = tpu.matmul %135, %136, %cst_65 {dimension_numbers = #tpu.dot_dimension_numbers<[1], [0], [0], [1], [0, 0, 1, 1], [], []>} : vector<8x128xbf16>, vector<128x128xbf16>, vector<8x128xf32> -> vector<8x128xf32>
      %c0_66 = arith.constant 0 : index
      %c0_67 = arith.constant 0 : index
      %138 = vector.load %arg12[%c0_66, %c0_67] : memref<1x128xf32, #tpu.memory_space<vmem>>, vector<1x128xf32>
      %139 = vector.broadcast %138 : vector<1x128xf32> to vector<8x128xf32>
      %140 = arith.addf %137, %139 : vector<8x128xf32>
      %c0_68 = arith.constant 0 : index
      %c0_69 = arith.constant 0 : index
      %141 = vector.load %arg13[%c0_68, %c0_69] : memref<8x128xf32, #tpu.memory_space<vmem>>, vector<8x128xf32>
      tpu.vector_store %arg13[%c0_68, %c0_69], %140 {strides = array<i32>} : memref<8x128xf32, #tpu.memory_space<vmem>>, vector<8x128xf32>,
    } else {
    }
    return
  }
  func.func @transform_0(%arg0: i32, %arg1: i32) -> (i32, i32) {
    %c0_i32 = arith.constant 0 : i32
    %c0_i32_0 = arith.constant 0 : i32
    return %arg0, %c0_i32 : i32, i32
  }
  func.func @transform_1(%arg0: i32, %arg1: i32) -> (i32, i32, i32) {
    %c0_i32 = arith.constant 0 : i32
    %c0_i32_0 = arith.constant 0 : i32
    return %arg0, %arg1, %c0_i32 : i32, i32, i32
  }
  func.func @transform_2(%arg0: i32, %arg1: i32) -> (i32, i32, i32) {
    %c0_i32 = arith.constant 0 : i32
    %c0_i32_0 = arith.constant 0 : i32
    return %arg0, %arg1, %c0_i32 : i32, i32, i32
  }
  func.func @transform_3(%arg0: i32, %arg1: i32) -> (i32, i32) {
    %c0_i32 = arith.constant 0 : i32
    %c0_i32_0 = arith.constant 0 : i32
    %c0_i32_1 = arith.constant 0 : i32
    return %c0_i32, %c0_i32_0 : i32, i32
  }
  func.func @transform_4(%arg0: i32, %arg1: i32) -> (i32, i32) {
    %c0_i32 = arith.constant 0 : i32
    %c0_i32_0 = arith.constant 0 : i32
    %c0_i32_1 = arith.constant 0 : i32
    return %c0_i32, %c0_i32_0 : i32, i32
  }
  func.func @transform_5(%arg0: i32, %arg1: i32) -> (i32, i32) {
    %c0_i32 = arith.constant 0 : i32
    %c0_i32_0 = arith.constant 0 : i32
    %c0_i32_1 = arith.constant 0 : i32
    return %c0_i32, %c0_i32_0 : i32, i32
  }
  func.func @transform_6(%arg0: i32, %arg1: i32) -> (i32, i32) {
    %c0_i32 = arith.constant 0 : i32
    %c0_i32_0 = arith.constant 0 : i32
    %c0_i32_1 = arith.constant 0 : i32
    return %c0_i32, %c0_i32_0 : i32, i32
  }
  func.func @transform_7(%arg0: i32, %arg1: i32) -> (i32, i32) {
    %c0_i32 = arith.constant 0 : i32
    %c0_i32_0 = arith.constant 0 : i32
    %c0_i32_1 = arith.constant 0 : i32
    return %c0_i32, %c0_i32_0 : i32, i32
  }
  func.func @transform_8(%arg0: i32, %arg1: i32) -> (i32, i32) {
    %c0_i32 = arith.constant 0 : i32
    %c0_i32_0 = arith.constant 0 : i32
    %c0_i32_1 = arith.constant 0 : i32
    return %c0_i32, %c0_i32_0 : i32, i32
  }
  func.func @transform_9(%arg0: i32, %arg1: i32) -> (i32, i32) {
    %c0_i32 = arith.constant 0 : i32
    %c0_i32_0 = arith.constant 0 : i32
    %c0_i32_1 = arith.constant 0 : i32
    return %c0_i32, %c0_i32_0 : i32, i32
  }
  func.func @transform_10(%arg0: i32, %arg1: i32) -> (i32, i32) {
    %c0_i32 = arith.constant 0 : i32
    %c0_i32_0 = arith.constant 0 : i32
    %c0_i32_1 = arith.constant 0 : i32
    return %c0_i32, %c0_i32_0 : i32, i32
  }
  func.func @transform_11(%arg0: i32, %arg1: i32) -> (i32, i32) {
    %c0_i32 = arith.constant 0 : i32
    %c0_i32_0 = arith.constant 0 : i32
    return %arg0, %c0_i32 : i32, i32
  }
}

</mosaic_0001>

<llo_original>
// kernel: tpu_custom_call.1
$region0: #{tpu_custom_call.1}
  #allocation0 [shape = 'u32[]', space=smem, size = 0x4, offset = 0x4, fixed_abs, tag = 'smem constant byte address 0x4 - core index']
  #allocation1 [shape = 'u32[144,128]{1,0:T(1,128)}', space=vmem, size = 0x12000, scoped, tag = 'internal scratch']
  #allocation2 [shape = 'f32[8,128]{1,0:T(8,128)}', space=vmem, size = 0x1000, scoped, tag = 'scratch operand']
  #allocation3 [shape = 'f32[8,1,4]{2,1,0:T(1,128)}', space=vmem, size = 0x1000, scoped, tag = 'scratch operand']
  #allocation4 [shape = 'f32[8,1,4]{2,1,0:T(1,128)}', space=vmem, size = 0x1000, scoped, tag = 'scratch operand']
  #allocation5 [shape = 'f32[8,128]{1,0:T(8,128)}', space=vmem, size = 0x1000, scoped, tag = 'scratch operand']
  %s0 = inlined_call_operand.vmem [shape: f32[16,16], index: 0, kind: input, shape index: {}]
  %s1 = inlined_call_operand.vmem [shape: f32[16,32,32], index: 1, kind: input, shape index: {}]
  %s2 = inlined_call_operand.vmem [shape: f32[16,32,1], index: 2, kind: input, shape index: {}]
  %s3 = inlined_call_operand.hbm [shape: bf16[16,128], index: 3, kind: input, shape index: {}]
  %s4 = inlined_call_operand.vmem [shape: f32[1,128], index: 4, kind: input, shape index: {}]
  %s5 = inlined_call_operand.hbm [shape: bf16[32,256], index: 5, kind: input, shape index: {}]
  %s6 = inlined_call_operand.vmem [shape: f32[1,256], index: 6, kind: input, shape index: {}]
  %s7 = inlined_call_operand.vmem [shape: bf16[128,4], index: 7, kind: input, shape index: {}]
  %s8 = inlined_call_operand.vmem [shape: f32[4,128], index: 8, kind: input, shape index: {}]
  %s9 = inlined_call_operand.vmem [shape: bf16[128,128], index: 9, kind: input, shape index: {}]
  %s10 = inlined_call_operand.vmem [shape: f32[1,128], index: 10, kind: input, shape index: {}]
  %s11 = inlined_call_operand.hbm [shape: f32[16,128], index: 11, kind: output, shape index: {}]
  %s12 = sld [smem:[#allocation0]]
  $region169: #{tpu_custom_call.1} parent=0
    _
  %s14 = ssub.s32 1, %s12
  %s15 = scalar_select 0, %s14, %s12
  $region1: #{tpu_custom_call.1} parent=0
    #allocation6 [shape = 'u8[131072]{0}', space=vmem, size = 0x20000, scoped, tag = 'input window, operand 1']
    #allocation7 [shape = 'u8[131072]{0}', space=vmem, size = 0x20000, scoped, tag = 'input window, operand 2']
    #allocation8 [shape = 'u8[4096]{0}', space=vmem, size = 0x1000, scoped, tag = 'input window, operand 3, single buffered']
    #allocation9 [shape = 's32[2]{0}', space=sflag, size = 0x8, scoped, tag = 'scoped memory for tpu_custom_call.1']
    #allocation10 [shape = 's32[2]{0}', space=sflag, size = 0x8, scoped, tag = 'scoped memory for tpu_custom_call.1']
    #allocation11 [shape = 'u8[16384]{0}', space=vmem, size = 0x4000, scoped, tag = 'input window, operand 5, single buffered']
    #allocation12 [shape = 's32[1]{0}', space=sflag, size = 0x4, scoped, tag = 'scoped memory for tpu_custom_call.1']
    #allocation13 [shape = 'u8[8192]{0}', space=vmem, size = 0x2000, scoped, tag = 'output window, operand 0']
    %16 = vsyncpa [#allocation9], 0
    %17 = vsyncpa [#allocation12], 0
    %18 = vsyncpa [#allocation10], 0
    %s19 = scalar_lea.sflag [#allocation10], 1
    %20 = vsyncpa %s19, 0
    loop: start=0, step=1, limit=6
    $region2: #{tpu_custom_call.1} parent=1 // loop_pre_header
      _
    $region3: #{tpu_custom_call.1} parent=1 // loop_header
      %s22 = sphi 0, %s26
      %p23 = scmp.ge.s32.totalorder %s22, 6
      %s29 = sphi 0, %s41
      %s30 = sphi 0, %s37
      %s31 = sphi 0, %s29
      %s32 = sphi 0, %s30
      %s33 = sphi 0, %s31
      %s34 = sphi 0, %s32
      %s44 = sphi 0, %s46
      %s47 = sphi 0, %s44
      %s48 = sphi 0, %s47
      %s64 = sphi 0, %s48
      %s72 = sphi 0, %s74
      %s75 = sphi 0, %s72
      %s76 = sphi 0, %s75
      %s92 = sphi 0, %s76
      %s100 = sphi 0, %s102
      %s103 = sphi 0, %s100
      %s104 = sphi 0, %s103
      %s120 = sphi 0, %s104
      %s124 = sphi 0, %s124
      %s126 = sphi 0, %s124
      %s127 = sphi 0, %s126
      %s141 = sphi 0, %s127
      %s145 = sphi 0, %s145
      %s147 = sphi 0, %s145
      %s148 = sphi 0, %s147
      %s162 = sphi 0, %s148
      %s166 = sphi 0, %s166
      %s168 = sphi 0, %s166
      %s169 = sphi 0, %s168
      %s183 = sphi 0, %s169
      %s187 = sphi 0, %s187
      %s189 = sphi 0, %s187
      %s190 = sphi 0, %s189
      %s204 = sphi 0, %s190
      %s208 = sphi 0, %s208
      %s210 = sphi 0, %s208
      %s211 = sphi 0, %s210
      %s225 = sphi 0, %s211
      %s229 = sphi 0, %s229
      %s231 = sphi 0, %s229
      %s232 = sphi 0, %s231
      %s246 = sphi 0, %s232
      %s250 = sphi 0, %s250
      %s252 = sphi 0, %s250
      %s253 = sphi 0, %s252
      %s267 = sphi 0, %s253
      %s271 = sphi 0, %s271
      %s273 = sphi 0, %s271
      %s274 = sphi 0, %s273
      %s288 = sphi 0, %s274
      %s294 = sphi 0, %s296
      %s297 = sphi 0, %s294
      %s298 = sphi 0, %s297
      %s314 = sphi 0, %s298
    $region4: #{tpu_custom_call.1} parent=1 // loop_header_branch
      %25 = sbr.rel (%p23) target = $region8
    $region5: #{tpu_custom_call.1} parent=1 // loop_body
      %s27 = ssub.s32 %s22, 1
      %s28 = ssub.s32 %s22, 2
      %s35 = sadd.s32 1, %s30
      %p36 = scmp.ge.s32.totalorder %s35, 2
      %s37 = scalar_select %p36, 0, %s35
      %s38 = sadd.s32 1, %s29
      %s39 = scalar_select %p36, %s38, %s29
      %p40 = scmp.ge.s32.totalorder %s39, 2
      %s41 = scalar_select %p40, 0, %s39
      %s42 = ssub.s32 %s29, %s41
      %p43 = scmp.eq.s32.totalorder %s42, 0
      %s45 = sadd.s32 %s44, 1
      %s46 = scalar_select %p43, %s44, %s45
      %p49 = pneg %p43
      %p50 = scmp.eq.s32.totalorder %s22, 3
      %p51 = por %p49, %p50
      %p52 = scmp.ne.s32.totalorder %s44, %s47
      %p53 = scmp.eq.s32.totalorder %s22, 0
      %p54 = por %p52, %p53
      %p55 = scmp.ne.s32.totalorder %s44, %s47
      %p56 = scmp.eq.s32.totalorder %s27, 3
      %p57 = por %p55, %p56
      %p58 = scmp.ne.s32.totalorder %s47, %s48
      %p59 = scmp.eq.s32.totalorder %s27, 0
      %p60 = por %p58, %p59
      %p61 = scmp.ne.s32.totalorder %s47, %s48
      %p62 = scmp.eq.s32.totalorder %s28, 3
      %p63 = por %p61, %p62
      %p65 = scmp.ne.s32.totalorder %s48, %s64
      %p66 = scmp.eq.s32.totalorder %s28, 0
      %p67 = por %p65, %p66
      %s68 = ssub.s32 %s29, %s41
      %s69 = ssub.s32 %s30, %s37
      %s70 = sor.u32 %s68, %s69
      %p71 = scmp.eq.s32.totalorder %s70, 0
      %s73 = sadd.s32 %s72, 1
      %s74 = scalar_select %p71, %s72, %s73
      %p77 = pneg %p71
      %p78 = scmp.eq.s32.totalorder %s22, 3
      %p79 = por %p77, %p78
      %p80 = scmp.ne.s32.totalorder %s72, %s75
      %p81 = scmp.eq.s32.totalorder %s22, 0
      %p82 = por %p80, %p81
      %p83 = scmp.ne.s32.totalorder %s72, %s75
      %p84 = scmp.eq.s32.totalorder %s27, 3
      %p85 = por %p83, %p84
      %p86 = scmp.ne.s32.totalorder %s75, %s76
      %p87 = scmp.eq.s32.totalorder %s27, 0
      %p88 = por %p86, %p87
      %p89 = scmp.ne.s32.totalorder %s75, %s76
      %p90 = scmp.eq.s32.totalorder %s28, 3
      %p91 = por %p89, %p90
      %p93 = scmp.ne.s32.totalorder %s76, %s92
      %p94 = scmp.eq.s32.totalorder %s28, 0
      %p95 = por %p93, %p94
      %s96 = ssub.s32 %s29, %s41
      %s97 = ssub.s32 %s30, %s37
      %s98 = sor.u32 %s96, %s97
      %p99 = scmp.eq.s32.totalorder %s98, 0
      %s101 = sadd.s32 %s100, 1
      %s102 = scalar_select %p99, %s100, %s101
      %p105 = pneg %p99
      %p106 = scmp.eq.s32.totalorder %s22, 3
      %p107 = por %p105, %p106
      %p108 = scmp.ne.s32.totalorder %s100, %s103
      %p109 = scmp.eq.s32.totalorder %s22, 0
      %p110 = por %p108, %p109
      %p111 = scmp.ne.s32.totalorder %s100, %s103
      %p112 = scmp.eq.s32.totalorder %s27, 3
      %p113 = por %p111, %p112
      %p114 = scmp.ne.s32.totalorder %s103, %s104
      %p115 = scmp.eq.s32.totalorder %s27, 0
      %p116 = por %p114, %p115
      %p117 = scmp.ne.s32.totalorder %s103, %s104
      %p118 = scmp.eq.s32.totalorder %s28, 3
      %p119 = por %p117, %p118
      %p121 = scmp.ne.s32.totalorder %s104, %s120
      %p122 = scmp.eq.s32.totalorder %s28, 0
      %p123 = por %p121, %p122
      %s125 = sadd.s32 %s124, 1
      %p128 = scmp.eq.s32.totalorder %s22, 3
      %p129 = scmp.ne.s32.totalorder %s124, %s126
      %p130 = scmp.eq.s32.totalorder %s22, 0
      %p131 = por %p129, %p130
      %p132 = scmp.ne.s32.totalorder %s124, %s126
      %p133 = scmp.eq.s32.totalorder %s27, 3
      %p134 = por %p132, %p133
      %p135 = scmp.ne.s32.totalorder %s126, %s127
      %p136 = scmp.eq.s32.totalorder %s27, 0
      %p137 = por %p135, %p136
      %p138 = scmp.ne.s32.totalorder %s126, %s127
      %p139 = scmp.eq.s32.totalorder %s28, 3
      %p140 = por %p138, %p139
      %p142 = scmp.ne.s32.totalorder %s127, %s141
      %p143 = scmp.eq.s32.totalorder %s28, 0
      %p144 = por %p142, %p143
      %s146 = sadd.s32 %s145, 1
      %p149 = scmp.eq.s32.totalorder %s22, 3
      %p150 = scmp.ne.s32.totalorder %s145, %s147
      %p151 = scmp.eq.s32.totalorder %s22, 0
      %p152 = por %p150, %p151
      %p153 = scmp.ne.s32.totalorder %s145, %s147
      %p154 = scmp.eq.s32.totalorder %s27, 3
      %p155 = por %p153, %p154
      %p156 = scmp.ne.s32.totalorder %s147, %s148
      %p157 = scmp.eq.s32.totalorder %s27, 0
      %p158 = por %p156, %p157
      %p159 = scmp.ne.s32.totalorder %s147, %s148
      %p160 = scmp.eq.s32.totalorder %s28, 3
      %p161 = por %p159, %p160
      %p163 = scmp.ne.s32.totalorder %s148, %s162
      %p164 = scmp.eq.s32.totalorder %s28, 0
      %p165 = por %p163, %p164
      %s167 = sadd.s32 %s166, 1
      %p170 = scmp.eq.s32.totalorder %s22, 3
      %p171 = scmp.ne.s32.totalorder %s166, %s168
      %p172 = scmp.eq.s32.totalorder %s22, 0
      %p173 = por %p171, %p172
      %p174 = scmp.ne.s32.totalorder %s166, %s168
      %p175 = scmp.eq.s32.totalorder %s27, 3
      %p176 = por %p174, %p175
      %p177 = scmp.ne.s32.totalorder %s168, %s169
      %p178 = scmp.eq.s32.totalorder %s27, 0
      %p179 = por %p177, %p178
      %p180 = scmp.ne.s32.totalorder %s168, %s169
      %p181 = scmp.eq.s32.totalorder %s28, 3
      %p182 = por %p180, %p181
      %p184 = scmp.ne.s32.totalorder %s169, %s183
      %p185 = scmp.eq.s32.totalorder %s28, 0
      %p186 = por %p184, %p185
      %s188 = sadd.s32 %s187, 1
      %p191 = scmp.eq.s32.totalorder %s22, 3
      %p192 = scmp.ne.s32.totalorder %s187, %s189
      %p193 = scmp.eq.s32.totalorder %s22, 0
      %p194 = por %p192, %p193
      %p195 = scmp.ne.s32.totalorder %s187, %s189
      %p196 = scmp.eq.s32.totalorder %s27, 3
      %p197 = por %p195, %p196
      %p198 = scmp.ne.s32.totalorder %s189, %s190
      %p199 = scmp.eq.s32.totalorder %s27, 0
      %p200 = por %p198, %p199
      %p201 = scmp.ne.s32.totalorder %s189, %s190
      %p202 = scmp.eq.s32.totalorder %s28, 3
      %p203 = por %p201, %p202
      %p205 = scmp.ne.s32.totalorder %s190, %s204
      %p206 = scmp.eq.s32.totalorder %s28, 0
      %p207 = por %p205, %p206
      %s209 = sadd.s32 %s208, 1
      %p212 = scmp.eq.s32.totalorder %s22, 3
      %p213 = scmp.ne.s32.totalorder %s208, %s210
      %p214 = scmp.eq.s32.totalorder %s22, 0
      %p215 = por %p213, %p214
      %p216 = scmp.ne.s32.totalorder %s208, %s210
      %p217 = scmp.eq.s32.totalorder %s27, 3
      %p218 = por %p216, %p217
      %p219 = scmp.ne.s32.totalorder %s210, %s211
      %p220 = scmp.eq.s32.totalorder %s27, 0
      %p221 = por %p219, %p220
      %p222 = scmp.ne.s32.totalorder %s210, %s211
      %p223 = scmp.eq.s32.totalorder %s28, 3
      %p224 = por %p222, %p223
      %p226 = scmp.ne.s32.totalorder %s211, %s225
      %p227 = scmp.eq.s32.totalorder %s28, 0
      %p228 = por %p226, %p227
      %s230 = sadd.s32 %s229, 1
      %p233 = scmp.eq.s32.totalorder %s22, 3
      %p234 = scmp.ne.s32.totalorder %s229, %s231
      %p235 = scmp.eq.s32.totalorder %s22, 0
      %p236 = por %p234, %p235
      %p237 = scmp.ne.s32.totalorder %s229, %s231
      %p238 = scmp.eq.s32.totalorder %s27, 3
      %p239 = por %p237, %p238
      %p240 = scmp.ne.s32.totalorder %s231, %s232
      %p241 = scmp.eq.s32.totalorder %s27, 0
      %p242 = por %p240, %p241
      %p243 = scmp.ne.s32.totalorder %s231, %s232
      %p244 = scmp.eq.s32.totalorder %s28, 3
      %p245 = por %p243, %p244
      %p247 = scmp.ne.s32.totalorder %s232, %s246
      %p248 = scmp.eq.s32.totalorder %s28, 0
      %p249 = por %p247, %p248
      %s251 = sadd.s32 %s250, 1
      %p254 = scmp.eq.s32.totalorder %s22, 3
      %p255 = scmp.ne.s32.totalorder %s250, %s252
      %p256 = scmp.eq.s32.totalorder %s22, 0
      %p257 = por %p255, %p256
      %p258 = scmp.ne.s32.totalorder %s250, %s252
      %p259 = scmp.eq.s32.totalorder %s27, 3
      %p260 = por %p258, %p259
      %p261 = scmp.ne.s32.totalorder %s252, %s253
      %p262 = scmp.eq.s32.totalorder %s27, 0
      %p263 = por %p261, %p262
      %p264 = scmp.ne.s32.totalorder %s252, %s253
      %p265 = scmp.eq.s32.totalorder %s28, 3
      %p266 = por %p264, %p265
      %p268 = scmp.ne.s32.totalorder %s253, %s267
      %p269 = scmp.eq.s32.totalorder %s28, 0
      %p270 = por %p268, %p269
      %s272 = sadd.s32 %s271, 1
      %p275 = scmp.eq.s32.totalorder %s22, 3
      %p276 = scmp.ne.s32.totalorder %s271, %s273
      %p277 = scmp.eq.s32.totalorder %s22, 0
      %p278 = por %p276, %p277
      %p279 = scmp.ne.s32.totalorder %s271, %s273
      %p280 = scmp.eq.s32.totalorder %s27, 3
      %p281 = por %p279, %p280
      %p282 = scmp.ne.s32.totalorder %s273, %s274
      %p283 = scmp.eq.s32.totalorder %s27, 0
      %p284 = por %p282, %p283
      %p285 = scmp.ne.s32.totalorder %s273, %s274
      %p286 = scmp.eq.s32.totalorder %s28, 3
      %p287 = por %p285, %p286
      %p289 = scmp.ne.s32.totalorder %s274, %s288
      %p290 = scmp.eq.s32.totalorder %s28, 0
      %p291 = por %p289, %p290
      %s292 = ssub.s32 %s29, %s41
      %p293 = scmp.eq.s32.totalorder %s292, 0
      %s295 = sadd.s32 %s294, 1
      %s296 = scalar_select %p293, %s294, %s295
      %p299 = pneg %p293
      %p300 = scmp.eq.s32.totalorder %s22, 3
      %p301 = por %p299, %p300
      %p302 = scmp.ne.s32.totalorder %s294, %s297
      %p303 = scmp.eq.s32.totalorder %s22, 0
      %p304 = por %p302, %p303
      %p305 = scmp.ne.s32.totalorder %s294, %s297
      %p306 = scmp.eq.s32.totalorder %s27, 3
      %p307 = por %p305, %p306
      %p308 = scmp.ne.s32.totalorder %s297, %s298
      %p309 = scmp.eq.s32.totalorder %s27, 0
      %p310 = por %p308, %p309
      %p311 = scmp.ne.s32.totalorder %s297, %s298
      %p312 = scmp.eq.s32.totalorder %s28, 3
      %p313 = por %p311, %p312
      %p315 = scmp.ne.s32.totalorder %s298, %s314
      %p316 = scmp.eq.s32.totalorder %s28, 0
      %p317 = por %p315, %p316
      %p318 = scmp.le.s32.totalorder 1, %s22
      %p319 = scmp.lt.s32.totalorder %s22, 5
      %p320 = pnand %p318, %p319
      %p321 = pneg %p320
      // Predicated region
      $region9: #{tpu_custom_call.1} parent=5 // pred_check
        _
      $region10: #{tpu_custom_call.1} parent=5 // pred_check_branch
        %323 = sbr.rel (%p320) target = $region12
      $region11: #{tpu_custom_call.1} parent=5 // pred_region
        %s324 = ssub.s32 %s22, 1
        // Predicated region
        $region13: #{tpu_custom_call.1} parent=11 // pred_check
          %p325 = pneg %p137
        $region14: #{tpu_custom_call.1} parent=11 // pred_check_branch
          %327 = sbr.rel (%p325) target = $region16
        $region15: #{tpu_custom_call.1} parent=11 // pred_region
          %s329 = ssub.s32 128, 128
          %330 = vsyncadd [#allocation9], %s329
          %s331 = sshll.u32 [#allocation8], 4
          %s332 = int_to_ptr.vmem [resolvable:$true] %s331
          %337 = dma.hbm_to_vmem [thread:$0]  %s3, 128, %s332, [#allocation9], 64, 64, 4
        $region16: #{tpu_custom_call.1} parent=11 // pred_fallthru
          _
        // Predicated region
        $region17: #{tpu_custom_call.1} parent=11 // pred_check
          %p338 = pneg %p158
        $region18: #{tpu_custom_call.1} parent=11 // pred_check_branch
          %340 = sbr.rel (%p338) target = $region20
        $region19: #{tpu_custom_call.1} parent=11 // pred_region
          _
        $region20: #{tpu_custom_call.1} parent=11 // pred_fallthru
          _
        // Predicated region
        $region21: #{tpu_custom_call.1} parent=11 // pred_check
          %p341 = pneg %p179
        $region22: #{tpu_custom_call.1} parent=11 // pred_check_branch
          %343 = sbr.rel (%p341) target = $region24
        $region23: #{tpu_custom_call.1} parent=11 // pred_region
          %s345 = ssub.s32 512, 512
          %346 = vsyncadd [#allocation12], %s345
          %s347 = sshll.u32 [#allocation11], 4
          %s348 = int_to_ptr.vmem [resolvable:$true] %s347
          %353 = dma.hbm_to_vmem [thread:$0]  %s5, 512, %s348, [#allocation12], 128, 128, 8
        $region24: #{tpu_custom_call.1} parent=11 // pred_fallthru
          _
        // Predicated region
        $region25: #{tpu_custom_call.1} parent=11 // pred_check
          %p354 = pneg %p200
        $region26: #{tpu_custom_call.1} parent=11 // pred_check_branch
          %356 = sbr.rel (%p354) target = $region28
        $region27: #{tpu_custom_call.1} parent=11 // pred_region
          _
        $region28: #{tpu_custom_call.1} parent=11 // pred_fallthru
          _
        // Predicated region
        $region29: #{tpu_custom_call.1} parent=11 // pred_check
          %p357 = pneg %p221
        $region30: #{tpu_custom_call.1} parent=11 // pred_check_branch
          %359 = sbr.rel (%p357) target = $region32
        $region31: #{tpu_custom_call.1} parent=11 // pred_region
          _
        $region32: #{tpu_custom_call.1} parent=11 // pred_fallthru
          _
        // Predicated region
        $region33: #{tpu_custom_call.1} parent=11 // pred_check
          %p360 = pneg %p242
        $region34: #{tpu_custom_call.1} parent=11 // pred_check_branch
          %362 = sbr.rel (%p360) target = $region36
        $region35: #{tpu_custom_call.1} parent=11 // pred_region
          _
        $region36: #{tpu_custom_call.1} parent=11 // pred_fallthru
          _
        // Predicated region
        $region37: #{tpu_custom_call.1} parent=11 // pred_check
          %p363 = pneg %p263
        $region38: #{tpu_custom_call.1} parent=11 // pred_check_branch
          %365 = sbr.rel (%p363) target = $region40
        $region39: #{tpu_custom_call.1} parent=11 // pred_region
          _
        $region40: #{tpu_custom_call.1} parent=11 // pred_fallthru
          _
        // Predicated region
        $region41: #{tpu_custom_call.1} parent=11 // pred_check
          %p366 = pneg %p284
        $region42: #{tpu_custom_call.1} parent=11 // pred_check_branch
          %368 = sbr.rel (%p366) target = $region44
        $region43: #{tpu_custom_call.1} parent=11 // pred_region
          _
        $region44: #{tpu_custom_call.1} parent=11 // pred_fallthru
          _
      $region12: #{tpu_custom_call.1} parent=5 // pred_fallthru
        _
      %p369 = scmp.lt.s32.totalorder %s22, 4
      // Predicated region
      $region45: #{tpu_custom_call.1} parent=5 // pred_check
        %p370 = pneg %p369
      $region46: #{tpu_custom_call.1} parent=5 // pred_check_branch
        %372 = sbr.rel (%p370) target = $region48
      $region47: #{tpu_custom_call.1} parent=5 // pred_region
        // Predicated region
        $region49: #{tpu_custom_call.1} parent=47 // pred_check
          %p373 = pneg %p54
        $region50: #{tpu_custom_call.1} parent=47 // pred_check_branch
          %375 = sbr.rel (%p373) target = $region52
        $region51: #{tpu_custom_call.1} parent=47 // pred_region
          %p376 = scmp.lt.s32.totalorder %s29, 1
          %s377 = scalar_select %p376, %s29, 1
          %s378 = smul.addr %s377, 8
          %s379 = scalar_lea.vmem %s0, %s378
        $region52: #{tpu_custom_call.1} parent=47 // pred_fallthru
          _
        // Predicated region
        $region53: #{tpu_custom_call.1} parent=47 // pred_check
          %p380 = pneg %p82
        $region54: #{tpu_custom_call.1} parent=47 // pred_check_branch
          %382 = sbr.rel (%p380) target = $region56
        $region55: #{tpu_custom_call.1} parent=47 // pred_region
          %s383 = sand.u32 %s72, 1
          %s384 = sand.u32 %s72, 1
          %s385 = smul.addr %s384, 128
          %s386 = scalar_lea.vmem [#allocation6], %s385
          %s387 = smul.u32 8, %s29
          %s388 = smul.u32 2, %s30
          %s389 = smul.addr %s387, 4
          %s390 = sadd.s32 %s388, %s389
          %s391 = smul.addr %s390, 8
          %s392 = scalar_lea.vmem %s1, %s391
          // Predicated region
          $region57: #{tpu_custom_call.1} parent=55 // pred_check
            _
          $region58: #{tpu_custom_call.1} parent=55 // pred_check_branch
            %394 = sbr.rel (0) target = $region60
          $region59: #{tpu_custom_call.1} parent=55 // pred_region
            // Predicated region
            $region61: #{tpu_custom_call.1} parent=59 // pred_check
              _
            $region62: #{tpu_custom_call.1} parent=59 // pred_check_branch
              %396 = sbr.rel (0) target = $region64
            $region63: #{tpu_custom_call.1} parent=59 // pred_region
              // Predicated region
              $region76: #{tpu_custom_call.1} parent=63 // pred_check
                _
              $region77: #{tpu_custom_call.1} parent=63 // pred_check_branch
                %442 = sbr.rel (0) target = $region79
              $region78: #{tpu_custom_call.1} parent=63 // pred_region
                loop: start=0, step=1, limit=1
                $region80: #{tpu_custom_call.1} parent=78 // loop_pre_header
                  _
                $region81: #{tpu_custom_call.1} parent=78 // loop_header
                  %s444 = sphi 0, %s448
                  %p445 = scmp.ge.s32.totalorder %s444, 1
                  %s449 = sphi %s392, %s392
                  %s450 = sphi %s386, %s386
                $region82: #{tpu_custom_call.1} parent=78 // loop_header_branch
                  %447 = sbr.rel (%p445) target = $region86
                $region83: #{tpu_custom_call.1} parent=78 // loop_body
                  %v451 = vld [vmem:[%s449] sm:$0xff]
                  %452 = vst [vmem:[%s450] sm:$0xff] %v451
                  %v453 = vld [vmem:[%s449 + $0x8] sm:$0xff]
                  %454 = vst [vmem:[%s450 + $0x8] sm:$0xff] %v453
                  %v455 = vld [vmem:[%s449 + $0x20] sm:$0xff]
                  %456 = vst [vmem:[%s450 + $0x10] sm:$0xff] %v455
                  %v457 = vld [vmem:[%s449 + $0x28] sm:$0xff]
                  %458 = vst [vmem:[%s450 + $0x18] sm:$0xff] %v457
                  %v459 = vld [vmem:[%s449 + $0x40] sm:$0xff]
                  %460 = vst [vmem:[%s450 + $0x20] sm:$0xff] %v459
                  %v461 = vld [vmem:[%s449 + $0x48] sm:$0xff]
                  %462 = vst [vmem:[%s450 + $0x28] sm:$0xff] %v461
                  %v463 = vld [vmem:[%s449 + $0x60] sm:$0xff]
                  %464 = vst [vmem:[%s450 + $0x30] sm:$0xff] %v463
                  %v465 = vld [vmem:[%s449 + $0x68] sm:$0xff]
                  %466 = vst [vmem:[%s450 + $0x38] sm:$0xff] %v465
                  %v467 = vld [vmem:[%s449 + $0x80] sm:$0xff]
                  %468 = vst [vmem:[%s450 + $0x40] sm:$0xff] %v467
                  %v469 = vld [vmem:[%s449 + $0x88] sm:$0xff]
                  %470 = vst [vmem:[%s450 + $0x48] sm:$0xff] %v469
                  %v471 = vld [vmem:[%s449 + $0xa0] sm:$0xff]
                  %472 = vst [vmem:[%s450 + $0x50] sm:$0xff] %v471
                  %v473 = vld [vmem:[%s449 + $0xa8] sm:$0xff]
                  %474 = vst [vmem:[%s450 + $0x58] sm:$0xff] %v473
                  %v475 = vld [vmem:[%s449 + $0xc0] sm:$0xff]
                  %476 = vst [vmem:[%s450 + $0x60] sm:$0xff] %v475
                  %v477 = vld [vmem:[%s449 + $0xc8] sm:$0xff]
                  %478 = vst [vmem:[%s450 + $0x68] sm:$0xff] %v477
                  %v479 = vld [vmem:[%s449 + $0xe0] sm:$0xff]
                  %480 = vst [vmem:[%s450 + $0x70] sm:$0xff] %v479
                  %v481 = vld [vmem:[%s449 + $0xe8] sm:$0xff]
                  %482 = vst [vmem:[%s450 + $0x78] sm:$0xff] %v481
                $region84: #{tpu_custom_call.1} parent=78 // loop_footer
                  %s448 = sadd.s32 1, %s444
                $region85: #{tpu_custom_call.1} parent=78 // loop_footer_branch
                  %443 = sbr.rel target = $region81
                $region86: #{tpu_custom_call.1} parent=78 // loop_exit
                  _
              $region79: #{tpu_custom_call.1} parent=63 // pred_fallthru
                _
              // Predicated region
              $region87: #{tpu_custom_call.1} parent=63 // pred_check
                _
              $region88: #{tpu_custom_call.1} parent=63 // pred_check_branch
                %484 = sbr.rel target = $region90
              $region89: #{tpu_custom_call.1} parent=63 // pred_region
                _
              $region90: #{tpu_custom_call.1} parent=63 // pred_fallthru
                _
            $region64: #{tpu_custom_call.1} parent=59 // pred_fallthru
              _
            // Predicated region
            $region65: #{tpu_custom_call.1} parent=59 // pred_check
              _
            $region66: #{tpu_custom_call.1} parent=59 // pred_check_branch
              %398 = sbr.rel target = $region68
            $region67: #{tpu_custom_call.1} parent=59 // pred_region
              %s400 = ssub.s32 256, 1
              loop: start=0, step=1, limit=1
              $region69: #{tpu_custom_call.1} parent=67 // loop_pre_header
                _
              $region70: #{tpu_custom_call.1} parent=67 // loop_header
                %s402 = sphi 0, %s406
                %p403 = scmp.ge.s32.totalorder %s402, 1
                %s407 = sphi %s392, %s392
                %s408 = sphi %s386, %s386
              $region71: #{tpu_custom_call.1} parent=67 // loop_header_branch
                %405 = sbr.rel (%p403) target = $region75
              $region72: #{tpu_custom_call.1} parent=67 // loop_body
                %v409 = vld [vmem:[%s407] sm:%s400]
                %410 = vst [vmem:[%s408] sm:%s400] %v409
                %v411 = vld [vmem:[%s407 + $0x8] sm:%s400]
                %412 = vst [vmem:[%s408 + $0x8] sm:%s400] %v411
                %v413 = vld [vmem:[%s407 + $0x20] sm:%s400]
                %414 = vst [vmem:[%s408 + $0x10] sm:%s400] %v413
                %v415 = vld [vmem:[%s407 + $0x28] sm:%s400]
                %416 = vst [vmem:[%s408 + $0x18] sm:%s400] %v415
                %v417 = vld [vmem:[%s407 + $0x40] sm:%s400]
                %418 = vst [vmem:[%s408 + $0x20] sm:%s400] %v417
                %v419 = vld [vmem:[%s407 + $0x48] sm:%s400]
                %420 = vst [vmem:[%s408 + $0x28] sm:%s400] %v419
                %v421 = vld [vmem:[%s407 + $0x60] sm:%s400]
                %422 = vst [vmem:[%s408 + $0x30] sm:%s400] %v421
                %v423 = vld [vmem:[%s407 + $0x68] sm:%s400]
                %424 = vst [vmem:[%s408 + $0x38] sm:%s400] %v423
                %v425 = vld [vmem:[%s407 + $0x80] sm:%s400]
                %426 = vst [vmem:[%s408 + $0x40] sm:%s400] %v425
                %v427 = vld [vmem:[%s407 + $0x88] sm:%s400]
                %428 = vst [vmem:[%s408 + $0x48] sm:%s400] %v427
                %v429 = vld [vmem:[%s407 + $0xa0] sm:%s400]
                %430 = vst [vmem:[%s408 + $0x50] sm:%s400] %v429
                %v431 = vld [vmem:[%s407 + $0xa8] sm:%s400]
                %432 = vst [vmem:[%s408 + $0x58] sm:%s400] %v431
                %v433 = vld [vmem:[%s407 + $0xc0] sm:%s400]
                %434 = vst [vmem:[%s408 + $0x60] sm:%s400] %v433
                %v435 = vld [vmem:[%s407 + $0xc8] sm:%s400]
                %436 = vst [vmem:[%s408 + $0x68] sm:%s400] %v435
                %v437 = vld [vmem:[%s407 + $0xe0] sm:%s400]
                %438 = vst [vmem:[%s408 + $0x70] sm:%s400] %v437
                %v439 = vld [vmem:[%s407 + $0xe8] sm:%s400]
                %440 = vst [vmem:[%s408 + $0x78] sm:%s400] %v439
              $region73: #{tpu_custom_call.1} parent=67 // loop_footer
                %s406 = sadd.s32 1, %s402
              $region74: #{tpu_custom_call.1} parent=67 // loop_footer_branch
                %401 = sbr.rel target = $region70
              $region75: #{tpu_custom_call.1} parent=67 // loop_exit
                _
            $region68: #{tpu_custom_call.1} parent=59 // pred_fallthru
              _
          $region60: #{tpu_custom_call.1} parent=55 // pred_fallthru
            _
          %485 = vnop
        $region56: #{tpu_custom_call.1} parent=47 // pred_fallthru
          _
        // Predicated region
        $region91: #{tpu_custom_call.1} parent=47 // pred_check
          %p486 = pneg %p110
        $region92: #{tpu_custom_call.1} parent=47 // pred_check_branch
          %488 = sbr.rel (%p486) target = $region94
        $region93: #{tpu_custom_call.1} parent=47 // pred_region
          %s489 = sand.u32 %s100, 1
          %s490 = sand.u32 %s100, 1
          %s491 = smul.addr %s490, 128
          %s492 = scalar_lea.vmem [#allocation7], %s491
          %s493 = smul.u32 8, %s29
          %s494 = smul.u32 2, %s30
          %s495 = smul.addr %s493, 4
          %s496 = sadd.s32 %s494, %s495
          %s497 = smul.addr %s496, 8
          %s498 = scalar_lea.vmem %s2, %s497
          // Predicated region
          $region95: #{tpu_custom_call.1} parent=93 // pred_check
            _
          $region96: #{tpu_custom_call.1} parent=93 // pred_check_branch
            %500 = sbr.rel (0) target = $region98
          $region97: #{tpu_custom_call.1} parent=93 // pred_region
            // Predicated region
            $region99: #{tpu_custom_call.1} parent=97 // pred_check
              _
            $region100: #{tpu_custom_call.1} parent=97 // pred_check_branch
              %502 = sbr.rel (0) target = $region102
            $region101: #{tpu_custom_call.1} parent=97 // pred_region
              // Predicated region
              $region114: #{tpu_custom_call.1} parent=101 // pred_check
                _
              $region115: #{tpu_custom_call.1} parent=101 // pred_check_branch
                %548 = sbr.rel (0) target = $region117
              $region116: #{tpu_custom_call.1} parent=101 // pred_region
                loop: start=0, step=1, limit=1
                $region118: #{tpu_custom_call.1} parent=116 // loop_pre_header
                  _
                $region119: #{tpu_custom_call.1} parent=116 // loop_header
                  %s550 = sphi 0, %s554
                  %p551 = scmp.ge.s32.totalorder %s550, 1
                  %s555 = sphi %s498, %s498
                  %s556 = sphi %s492, %s492
                $region120: #{tpu_custom_call.1} parent=116 // loop_header_branch
                  %553 = sbr.rel (%p551) target = $region124
                $region121: #{tpu_custom_call.1} parent=116 // loop_body
                  %v557 = vld [vmem:[%s555] sm:$0xff]
                  %558 = vst [vmem:[%s556] sm:$0xff] %v557
                  %v559 = vld [vmem:[%s555 + $0x8] sm:$0xff]
                  %560 = vst [vmem:[%s556 + $0x8] sm:$0xff] %v559
                  %v561 = vld [vmem:[%s555 + $0x20] sm:$0xff]
                  %562 = vst [vmem:[%s556 + $0x10] sm:$0xff] %v561
                  %v563 = vld [vmem:[%s555 + $0x28] sm:$0xff]
                  %564 = vst [vmem:[%s556 + $0x18] sm:$0xff] %v563
                  %v565 = vld [vmem:[%s555 + $0x40] sm:$0xff]
                  %566 = vst [vmem:[%s556 + $0x20] sm:$0xff] %v565
                  %v567 = vld [vmem:[%s555 + $0x48] sm:$0xff]
                  %568 = vst [vmem:[%s556 + $0x28] sm:$0xff] %v567
                  %v569 = vld [vmem:[%s555 + $0x60] sm:$0xff]
                  %570 = vst [vmem:[%s556 + $0x30] sm:$0xff] %v569
                  %v571 = vld [vmem:[%s555 + $0x68] sm:$0xff]
                  %572 = vst [vmem:[%s556 + $0x38] sm:$0xff] %v571
                  %v573 = vld [vmem:[%s555 + $0x80] sm:$0xff]
                  %574 = vst [vmem:[%s556 + $0x40] sm:$0xff] %v573
                  %v575 = vld [vmem:[%s555 + $0x88] sm:$0xff]
                  %576 = vst [vmem:[%s556 + $0x48] sm:$0xff] %v575
                  %v577 = vld [vmem:[%s555 + $0xa0] sm:$0xff]
                  %578 = vst [vmem:[%s556 + $0x50] sm:$0xff] %v577
                  %v579 = vld [vmem:[%s555 + $0xa8] sm:$0xff]
                  %580 = vst [vmem:[%s556 + $0x58] sm:$0xff] %v579
                  %v581 = vld [vmem:[%s555 + $0xc0] sm:$0xff]
                  %582 = vst [vmem:[%s556 + $0x60] sm:$0xff] %v581
                  %v583 = vld [vmem:[%s555 + $0xc8] sm:$0xff]
                  %584 = vst [vmem:[%s556 + $0x68] sm:$0xff] %v583
                  %v585 = vld [vmem:[%s555 + $0xe0] sm:$0xff]
                  %586 = vst [vmem:[%s556 + $0x70] sm:$0xff] %v585
                  %v587 = vld [vmem:[%s555 + $0xe8] sm:$0xff]
                  %588 = vst [vmem:[%s556 + $0x78] sm:$0xff] %v587
                $region122: #{tpu_custom_call.1} parent=116 // loop_footer
                  %s554 = sadd.s32 1, %s550
                $region123: #{tpu_custom_call.1} parent=116 // loop_footer_branch
                  %549 = sbr.rel target = $region119
                $region124: #{tpu_custom_call.1} parent=116 // loop_exit
                  _
              $region117: #{tpu_custom_call.1} parent=101 // pred_fallthru
                _
              // Predicated region
              $region125: #{tpu_custom_call.1} parent=101 // pred_check
                _
              $region126: #{tpu_custom_call.1} parent=101 // pred_check_branch
                %590 = sbr.rel target = $region128
              $region127: #{tpu_custom_call.1} parent=101 // pred_region
                _
              $region128: #{tpu_custom_call.1} parent=101 // pred_fallthru
                _
            $region102: #{tpu_custom_call.1} parent=97 // pred_fallthru
              _
            // Predicated region
            $region103: #{tpu_custom_call.1} parent=97 // pred_check
              _
            $region104: #{tpu_custom_call.1} parent=97 // pred_check_branch
              %504 = sbr.rel target = $region106
            $region105: #{tpu_custom_call.1} parent=97 // pred_region
              %s506 = ssub.s32 256, 1
              loop: start=0, step=1, limit=1
              $region107: #{tpu_custom_call.1} parent=105 // loop_pre_header
                _
              $region108: #{tpu_custom_call.1} parent=105 // loop_header
                %s508 = sphi 0, %s512
                %p509 = scmp.ge.s32.totalorder %s508, 1
                %s513 = sphi %s498, %s498
                %s514 = sphi %s492, %s492
              $region109: #{tpu_custom_call.1} parent=105 // loop_header_branch
                %511 = sbr.rel (%p509) target = $region113
              $region110: #{tpu_custom_call.1} parent=105 // loop_body
                %v515 = vld [vmem:[%s513] sm:%s506]
                %516 = vst [vmem:[%s514] sm:%s506] %v515
                %v517 = vld [vmem:[%s513 + $0x8] sm:%s506]
                %518 = vst [vmem:[%s514 + $0x8] sm:%s506] %v517
                %v519 = vld [vmem:[%s513 + $0x20] sm:%s506]
                %520 = vst [vmem:[%s514 + $0x10] sm:%s506] %v519
                %v521 = vld [vmem:[%s513 + $0x28] sm:%s506]
                %522 = vst [vmem:[%s514 + $0x18] sm:%s506] %v521
                %v523 = vld [vmem:[%s513 + $0x40] sm:%s506]
                %524 = vst [vmem:[%s514 + $0x20] sm:%s506] %v523
                %v525 = vld [vmem:[%s513 + $0x48] sm:%s506]
                %526 = vst [vmem:[%s514 + $0x28] sm:%s506] %v525
                %v527 = vld [vmem:[%s513 + $0x60] sm:%s506]
                %528 = vst [vmem:[%s514 + $0x30] sm:%s506] %v527
                %v529 = vld [vmem:[%s513 + $0x68] sm:%s506]
                %530 = vst [vmem:[%s514 + $0x38] sm:%s506] %v529
                %v531 = vld [vmem:[%s513 + $0x80] sm:%s506]
                %532 = vst [vmem:[%s514 + $0x40] sm:%s506] %v531
                %v533 = vld [vmem:[%s513 + $0x88] sm:%s506]
                %534 = vst [vmem:[%s514 + $0x48] sm:%s506] %v533
                %v535 = vld [vmem:[%s513 + $0xa0] sm:%s506]
                %536 = vst [vmem:[%s514 + $0x50] sm:%s506] %v535
                %v537 = vld [vmem:[%s513 + $0xa8] sm:%s506]
                %538 = vst [vmem:[%s514 + $0x58] sm:%s506] %v537
                %v539 = vld [vmem:[%s513 + $0xc0] sm:%s506]
                %540 = vst [vmem:[%s514 + $0x60] sm:%s506] %v539
                %v541 = vld [vmem:[%s513 + $0xc8] sm:%s506]
                %542 = vst [vmem:[%s514 + $0x68] sm:%s506] %v541
                %v543 = vld [vmem:[%s513 + $0xe0] sm:%s506]
                %544 = vst [vmem:[%s514 + $0x70] sm:%s506] %v543
                %v545 = vld [vmem:[%s513 + $0xe8] sm:%s506]
                %546 = vst [vmem:[%s514 + $0x78] sm:%s506] %v545
              $region111: #{tpu_custom_call.1} parent=105 // loop_footer
                %s512 = sadd.s32 1, %s508
              $region112: #{tpu_custom_call.1} parent=105 // loop_footer_branch
                %507 = sbr.rel target = $region108
              $region113: #{tpu_custom_call.1} parent=105 // loop_exit
                _
            $region106: #{tpu_custom_call.1} parent=97 // pred_fallthru
              _
          $region98: #{tpu_custom_call.1} parent=93 // pred_fallthru
            _
          %591 = vnop
        $region94: #{tpu_custom_call.1} parent=47 // pred_fallthru
          _
      $region48: #{tpu_custom_call.1} parent=5 // pred_fallthru
        _
      %p592 = scmp.le.s32.totalorder 1, %s22
      %p593 = scmp.lt.s32.totalorder %s22, 5
      %p594 = pnand %p592, %p593
      %p595 = pneg %p594
      // Predicated region
      $region129: #{tpu_custom_call.1} parent=5 // pred_check
        _
      $region130: #{tpu_custom_call.1} parent=5 // pred_check_branch
        %597 = sbr.rel (%p594) target = $region132
      $region131: #{tpu_custom_call.1} parent=5 // pred_region
        %s598 = ssub.s32 %s22, 1
        %s599 = sand.u32 %s75, 1
        %s600 = sand.u32 %s75, 1
        %s601 = smul.addr %s600, 128
        %s602 = scalar_lea.vmem [#allocation6], %s601
        // Predicated region
        $region133: #{tpu_custom_call.1} parent=131 // pred_check
          %p603 = pneg %p88
        $region134: #{tpu_custom_call.1} parent=131 // pred_check_branch
          %605 = sbr.rel (%p603) target = $region136
        $region135: #{tpu_custom_call.1} parent=131 // pred_region
          _
        $region136: #{tpu_custom_call.1} parent=131 // pred_fallthru
          _
        %s606 = sand.u32 %s103, 1
        %s607 = sand.u32 %s103, 1
        %s608 = smul.addr %s607, 128
        %s609 = scalar_lea.vmem [#allocation7], %s608
        // Predicated region
        $region137: #{tpu_custom_call.1} parent=131 // pred_check
          %p610 = pneg %p116
        $region138: #{tpu_custom_call.1} parent=131 // pred_check_branch
          %612 = sbr.rel (%p610) target = $region140
        $region139: #{tpu_custom_call.1} parent=131 // pred_region
          _
        $region140: #{tpu_custom_call.1} parent=131 // pred_fallthru
          _
        // Predicated region
        $region141: #{tpu_custom_call.1} parent=131 // pred_check
          %p613 = pneg %p137
        $region142: #{tpu_custom_call.1} parent=131 // pred_check_branch
          %615 = sbr.rel (%p613) target = $region144
        $region143: #{tpu_custom_call.1} parent=131 // pred_region
          %616 = dma.done [#allocation9], 128
        $region144: #{tpu_custom_call.1} parent=131 // pred_fallthru
          _
        // Predicated region
        $region145: #{tpu_custom_call.1} parent=131 // pred_check
          %p617 = pneg %p179
        $region146: #{tpu_custom_call.1} parent=131 // pred_check_branch
          %619 = sbr.rel (%p617) target = $region148
        $region147: #{tpu_custom_call.1} parent=131 // pred_region
          %620 = dma.done [#allocation12], 512
        $region148: #{tpu_custom_call.1} parent=131 // pred_fallthru
          _
        %p621 = scmp.lt.s32.totalorder %s31, 1
        %s622 = scalar_select %p621, %s31, 1
        %s623 = smul.addr %s622, 8
        %s624 = scalar_lea.vmem %s0, %s623
        %p625 = pneg %p60
        %p626 = pneg %p57
        %s627 = sand.u32 %s75, 1
        %s628 = sand.u32 %s75, 1
        %s629 = smul.addr %s628, 128
        %s630 = scalar_lea.vmem [#allocation6], %s629
        %p631 = pneg %p88
        %p632 = pneg %p85
        %s633 = sand.u32 %s103, 1
        %s634 = sand.u32 %s103, 1
        %s635 = smul.addr %s634, 128
        %s636 = scalar_lea.vmem [#allocation7], %s635
        %p637 = pneg %p116
        %p638 = pneg %p113
        %p639 = pneg %p137
        %p640 = pneg %p134
        %p641 = pneg %p158
        %p642 = pneg %p155
        %p643 = pneg %p179
        %p644 = pneg %p176
        %p645 = pneg %p200
        %p646 = pneg %p197
        %p647 = pneg %p221
        %p648 = pneg %p218
        %p649 = pneg %p242
        %p650 = pneg %p239
        %p651 = pneg %p263
        %p652 = pneg %p260
        %p653 = pneg %p284
        %p654 = pneg %p281
        %p655 = pneg %p310
        %p656 = pneg %p307
        %s657 = sand.u32 %s297, 1
        %s658 = scalar_lea.sflag [#allocation10], %s657
        %s659 = sand.u32 %s297, 1
        %s660 = smul.addr %s659, 8
        %s661 = scalar_lea.vmem [#allocation13], %s660
        %p662 = scmp.lt.s32.totalorder %s31, 1
        %s663 = scalar_select %p662, %s31, 1
        %s664 = smul.addr %s663, 8
        %s665 = scalar_lea.vmem %s0, %s664
        %s666 = smul.u32 8, %s31
        %s667 = smul.u32 2, %s32
        %s668 = smul.u32 8, %s31
        %s669 = smul.u32 2, %s32
        %p671 = scmp.eq.s32.totalorder %s32, 0
        // Predicated region
        $region149: #{tpu_custom_call.1} parent=131 // pred_check
          %p672 = pneg %p671
        $region150: #{tpu_custom_call.1} parent=131 // pred_check_branch
          %674 = sbr.rel (%p672) target = $region152
        $region151: #{tpu_custom_call.1} parent=131 // pred_region
          %v675 = vld [vmem:[%s665] sm:$0xff]
          %v676 = vpack.c.bf16 %v675, %v675
          %v677 = vld [vmem:[#allocation8] sm:$0xf]
          %v678 = vld [vmem:[#allocation8 + $0x4] sm:$0xf]
          %v679 = vld [vmem:[%s4] sm:$0x1]
          %v681 = vlaneseq
          %v682 = vshrl.u32 %v681, 7
          %v683 = vsub.s32 0, %v682
          %v684 = vrot.slane %v679, %v683
          %v688 = vunpack.c.l.b16 %v677
          %v689 = vunpack.c.l.b16 %v678
          %v690 = vpack.c.b16 %v689, %v688
          %vm692 = vcmask 130048
          %v694 = vsel %vm692, %v676, 0
          %696 = vmatprep.subr.bf16.mxu0 0
          %697 = vmatpush1.bf16.msra.mxu0 0
          %698 = vmatprep.subr.bf16.mxu0 0
          %699 = vmatpush1.bf16.msra.mxu0 0
          %700 = vmatprep.subr.bf16.mxu0 0
          %701 = vmatpush1.bf16.msra.mxu0 0
          %702 = vmatprep.subr.bf16.mxu0 0
          %703 = vmatpush1.bf16.msra.mxu0 0
          %704 = vmatprep.subr.bf16.mxu0 0
          %705 = vmatpush1.bf16.msra.mxu0 0
          %706 = vmatprep.subr.bf16.mxu0 0
          %707 = vmatpush1.bf16.msra.mxu0 0
          %708 = vmatprep.subr.bf16.mxu0 0
          %709 = vmatpush1.bf16.msra.mxu0 0
          %710 = vmatprep.subr.bf16.mxu0 0
          %711 = vmatpush1.bf16.msra.mxu0 %v690
          %712 = vmatprep.subr.bf16.mxu0 0
          %713 = vmatpush2.bf16.msra.mxu0 0
          %714 = vmatprep.subr.bf16.mxu0 0
          %715 = vmatpush2.bf16.msra.mxu0 0
          %716 = vmatprep.subr.bf16.mxu0 0
          %717 = vmatpush2.bf16.msra.mxu0 0
          %718 = vmatprep.subr.bf16.mxu0 0
          %719 = vmatpush2.bf16.msra.mxu0 0
          %720 = vmatprep.subr.bf16.mxu0 0
          %721 = vmatpush2.bf16.msra.mxu0 0
          %722 = vmatprep.subr.bf16.mxu0 0
          %723 = vmatpush2.bf16.msra.mxu0 0
          %724 = vmatprep.subr.bf16.mxu0 0
          %725 = vmatpush2.bf16.msra.mxu0 0
          %726 = vmatprep.subr.bf16.mxu0 0
          %727 = vmatpush2.bf16.msra.mxu0 0
          %728 = vmatprep.mubr.bf16.mxu0 0
          %729 = vmatmul.mubr.bf16.gmra.mxu0 %v694
          %v730 = vpop.f32.mrf.mxu0
          %v731 = vadd.f32 %v684, %v730
          %v732 = vpop.f32.mrf.mxu0
          %v733 = vpop.f32.mrf.mxu0
          %v734 = vpop.f32.mrf.mxu0
          %735 = vdwg.mxu0
          %736 = vst [vmem:[#allocation2] sm:$0xff] %v731
          %vm737 = vcmask 24576
          %738 = vst.msk [vmem:[#allocation3] sm:$0x1] %vm737, -inf
          %739 = vst.msk [vmem:[#allocation3 + $0x1] sm:$0x1] %vm737, -inf
          %740 = vst.msk [vmem:[#allocation3 + $0x2] sm:$0x1] %vm737, -inf
          %741 = vst.msk [vmem:[#allocation3 + $0x3] sm:$0x1] %vm737, -inf
          %742 = vst.msk [vmem:[#allocation3 + $0x4] sm:$0x1] %vm737, -inf
          %743 = vst.msk [vmem:[#allocation3 + $0x5] sm:$0x1] %vm737, -inf
          %744 = vst.msk [vmem:[#allocation3 + $0x6] sm:$0x1] %vm737, -inf
          %745 = vst.msk [vmem:[#allocation3 + $0x7] sm:$0x1] %vm737, -inf
          %746 = vst.msk [vmem:[#allocation4] sm:$0x1] %vm737, 0.0
          %747 = vst.msk [vmem:[#allocation4 + $0x1] sm:$0x1] %vm737, 0.0
          %748 = vst.msk [vmem:[#allocation4 + $0x2] sm:$0x1] %vm737, 0.0
          %749 = vst.msk [vmem:[#allocation4 + $0x3] sm:$0x1] %vm737, 0.0
          %750 = vst.msk [vmem:[#allocation4 + $0x4] sm:$0x1] %vm737, 0.0
          %751 = vst.msk [vmem:[#allocation4 + $0x5] sm:$0x1] %vm737, 0.0
          %752 = vst.msk [vmem:[#allocation4 + $0x6] sm:$0x1] %vm737, 0.0
          %753 = vst.msk [vmem:[#allocation4 + $0x7] sm:$0x1] %vm737, 0.0
          %754 = vst [vmem:[#allocation5] sm:$0xff] 0.0
        $region152: #{tpu_custom_call.1} parent=131 // pred_fallthru
          _
        %v755 = vld [vmem:[%s602] sm:$0xff]
        %v756 = vld [vmem:[%s602 + $0x8] sm:$0xff]
        %v757 = vld [vmem:[%s602 + $0x10] sm:$0xff]
        %v758 = vld [vmem:[%s602 + $0x18] sm:$0xff]
        %v759 = vld [vmem:[%s602 + $0x20] sm:$0xff]
        %v760 = vld [vmem:[%s602 + $0x28] sm:$0xff]
        %v761 = vld [vmem:[%s602 + $0x30] sm:$0xff]
        %v762 = vld [vmem:[%s602 + $0x38] sm:$0xff]
        %v763 = vld [vmem:[%s602 + $0x40] sm:$0xff]
        %v764 = vld [vmem:[%s602 + $0x48] sm:$0xff]
        %v765 = vld [vmem:[%s602 + $0x50] sm:$0xff]
        %v766 = vld [vmem:[%s602 + $0x58] sm:$0xff]
        %v767 = vld [vmem:[%s602 + $0x60] sm:$0xff]
        %v768 = vld [vmem:[%s602 + $0x68] sm:$0xff]
        %v769 = vld [vmem:[%s602 + $0x70] sm:$0xff]
        %v770 = vld [vmem:[%s602 + $0x78] sm:$0xff]
        %v771 = vpack.c.bf16 %v756, %v755
        %v772 = vpack.c.bf16 %v758, %v757
        %v773 = vpack.c.bf16 %v760, %v759
        %v774 = vpack.c.bf16 %v762, %v761
        %v775 = vpack.c.bf16 %v764, %v763
        %v776 = vpack.c.bf16 %v766, %v765
        %v777 = vpack.c.bf16 %v768, %v767
        %v778 = vpack.c.bf16 %v770, %v769
        %v779 = vld [vmem:[#allocation11] sm:$0xff]
        %v780 = vld [vmem:[#allocation11 + $0x8] sm:$0xff]
        %v781 = vld [vmem:[#allocation11 + $0x10] sm:$0xff]
        %v782 = vld [vmem:[#allocation11 + $0x18] sm:$0xff]
        %v783 = vld [vmem:[%s6] sm:$0x3]
        %v785 = vlaneseq
        %v786 = vshrl.u32 %v785, 7
        %v787 = vsub.s32 0, %v786
        %v788 = vrot.slane %v783, %v787
        %v789 = vlaneseq
        %v790 = vshrl.u32 %v789, 7
        %v791 = vsub.s32 1, %v790
        %v792 = vrot.slane %v783, %v791
        %v799 = vunpack.c.l.b16 %v779
        %v800 = vunpack.c.h.b16 %v779
        %v801 = vunpack.c.l.b16 %v780
        %v802 = vunpack.c.h.b16 %v780
        %v803 = vunpack.c.l.b16 %v781
        %v804 = vunpack.c.h.b16 %v781
        %v805 = vunpack.c.l.b16 %v782
        %v806 = vunpack.c.h.b16 %v782
        %v807 = vpack.c.b16 %v801, %v799
        %v808 = vpack.c.b16 %v802, %v800
        %v809 = vpack.c.b16 %v805, %v803
        %v810 = vpack.c.b16 %v806, %v804
        %vm815 = vcmask 261120
        %v817 = vsel %vm815, %v771, 0
        %v820 = vsel %vm815, %v772, 0
        %v823 = vsel %vm815, %v773, 0
        %v826 = vsel %vm815, %v774, 0
        %v829 = vsel %vm815, %v775, 0
        %v832 = vsel %vm815, %v776, 0
        %v835 = vsel %vm815, %v777, 0
        %v838 = vsel %vm815, %v778, 0
        %840 = vmatprep.subr.bf16.mxu0 0
        %841 = vmatpush1.bf16.msra.mxu0 0
        %842 = vmatprep.subr.bf16.mxu0 0
        %843 = vmatpush1.bf16.msra.mxu0 0
        %844 = vmatprep.subr.bf16.mxu0 0
        %845 = vmatpush1.bf16.msra.mxu0 0
        %846 = vmatprep.subr.bf16.mxu0 0
        %847 = vmatpush1.bf16.msra.mxu0 0
        %848 = vmatprep.subr.bf16.mxu0 0
        %849 = vmatpush1.bf16.msra.mxu0 0
        %850 = vmatprep.subr.bf16.mxu0 0
        %851 = vmatpush1.bf16.msra.mxu0 0
        %852 = vmatprep.subr.bf16.mxu0 %v810
        %853 = vmatpush1.bf16.msra.mxu0 %v809
        %854 = vmatprep.subr.bf16.mxu0 %v808
        %855 = vmatpush1.bf16.msra.mxu0 %v807
        %856 = vmatprep.subr.bf16.mxu0 0
        %857 = vmatpush2.bf16.msra.mxu0 0
        %858 = vmatprep.subr.bf16.mxu0 0
        %859 = vmatpush2.bf16.msra.mxu0 0
        %860 = vmatprep.subr.bf16.mxu0 0
        %861 = vmatpush2.bf16.msra.mxu0 0
        %862 = vmatprep.subr.bf16.mxu0 0
        %863 = vmatpush2.bf16.msra.mxu0 0
        %864 = vmatprep.subr.bf16.mxu0 0
        %865 = vmatpush2.bf16.msra.mxu0 0
        %866 = vmatprep.subr.bf16.mxu0 0
        %867 = vmatpush2.bf16.msra.mxu0 0
        %868 = vmatprep.subr.bf16.mxu0 0
        %869 = vmatpush2.bf16.msra.mxu0 0
        %870 = vmatprep.subr.bf16.mxu0 0
        %871 = vmatpush2.bf16.msra.mxu0 0
        %872 = vmatprep.mubr.bf16.mxu0 0
        %873 = vmatmul.mubr.bf16.gmra.mxu0 %v817
        %v874 = vpop.f32.mrf.mxu0
        %v875 = vadd.f32 %v788, %v874
        %v876 = vpop.f32.mrf.mxu0
        %v877 = vadd.f32 %v792, %v876
        %v878 = vpop.f32.mrf.mxu0
        %v879 = vadd.f32 %v788, %v878
        %v880 = vpop.f32.mrf.mxu0
        %v881 = vadd.f32 %v792, %v880
        %882 = vmatprep.mubr.bf16.mxu0 0
        %883 = vmatmul.mubr.bf16.gmra.mxu0 %v820
        %v884 = vpop.f32.mrf.mxu0
        %v885 = vadd.f32 %v788, %v884
        %v886 = vpop.f32.mrf.mxu0
        %v887 = vadd.f32 %v792, %v886
        %v888 = vpop.f32.mrf.mxu0
        %v889 = vadd.f32 %v788, %v888
        %v890 = vpop.f32.mrf.mxu0
        %v891 = vadd.f32 %v792, %v890
        %892 = vmatprep.mubr.bf16.mxu0 0
        %893 = vmatmul.mubr.bf16.gmra.mxu0 %v823
        %v894 = vpop.f32.mrf.mxu0
        %v895 = vadd.f32 %v788, %v894
        %v896 = vpop.f32.mrf.mxu0
        %v897 = vadd.f32 %v792, %v896
        %v898 = vpop.f32.mrf.mxu0
        %v899 = vadd.f32 %v788, %v898
        %v900 = vpop.f32.mrf.mxu0
        %v901 = vadd.f32 %v792, %v900
        %902 = vmatprep.mubr.bf16.mxu0 0
        %903 = vmatmul.mubr.bf16.gmra.mxu0 %v826
        %v904 = vpop.f32.mrf.mxu0
        %v905 = vadd.f32 %v788, %v904
        %v906 = vpop.f32.mrf.mxu0
        %v907 = vadd.f32 %v792, %v906
        %v908 = vpop.f32.mrf.mxu0
        %v909 = vadd.f32 %v788, %v908
        %v910 = vpop.f32.mrf.mxu0
        %v911 = vadd.f32 %v792, %v910
        %912 = vmatprep.mubr.bf16.mxu0 0
        %913 = vmatmul.mubr.bf16.gmra.mxu0 %v829
        %v914 = vpop.f32.mrf.mxu0
        %v915 = vadd.f32 %v788, %v914
        %v916 = vpop.f32.mrf.mxu0
        %v917 = vadd.f32 %v792, %v916
        %v918 = vpop.f32.mrf.mxu0
        %v919 = vadd.f32 %v788, %v918
        %v920 = vpop.f32.mrf.mxu0
        %v921 = vadd.f32 %v792, %v920
        %922 = vmatprep.mubr.bf16.mxu0 0
        %923 = vmatmul.mubr.bf16.gmra.mxu0 %v832
        %v924 = vpop.f32.mrf.mxu0
        %v925 = vadd.f32 %v788, %v924
        %v926 = vpop.f32.mrf.mxu0
        %v927 = vadd.f32 %v792, %v926
        %v928 = vpop.f32.mrf.mxu0
        %v929 = vadd.f32 %v788, %v928
        %v930 = vpop.f32.mrf.mxu0
        %v931 = vadd.f32 %v792, %v930
        %932 = vmatprep.mubr.bf16.mxu0 0
        %933 = vmatmul.mubr.bf16.gmra.mxu0 %v835
        %v934 = vpop.f32.mrf.mxu0
        %v935 = vadd.f32 %v788, %v934
        %v936 = vpop.f32.mrf.mxu0
        %v937 = vadd.f32 %v792, %v936
        %v938 = vpop.f32.mrf.mxu0
        %v939 = vadd.f32 %v788, %v938
        %v940 = vpop.f32.mrf.mxu0
        %v941 = vadd.f32 %v792, %v940
        %942 = vmatprep.mubr.bf16.mxu0 0
        %943 = vmatmul.mubr.bf16.gmra.mxu0 %v838
        %v944 = vpop.f32.mrf.mxu0
        %v945 = vadd.f32 %v788, %v944
        %v946 = vpop.f32.mrf.mxu0
        %v947 = vadd.f32 %v792, %v946
        %v948 = vpop.f32.mrf.mxu0
        %v949 = vadd.f32 %v788, %v948
        %v950 = vpop.f32.mrf.mxu0
        %v951 = vadd.f32 %v792, %v950
        %952 = vdwg.mxu0
        %v953 = vld [vmem:[#allocation2] sm:$0xff]
        %v955 = vcombine.high %v953, %v953
        %v957 = vunpack.c.l.s4 1966171168
        %v958 = vunpack.c.0.s8 %v957
        %v959 = vlaneseq
        %v960 = vshrl.u32 %v959, 7
        %v961 = vsub.s32 %v958, %v960
        %v962 = vrot.slane %v953, %v961
        %v964 = vunpack.c.l.s4 1966171168
        %v965 = vunpack.c.0.s8 %v964
        %v966 = vlaneseq
        %v967 = vshrl.u32 %v966, 7
        %v968 = vsub.s32 %v965, %v967
        %v969 = vrot.slane %v955, %v968
        %v970 = vcombine.high %v962, %v962
        %v971 = vcombine.high %v969, %v969
        %v973 = vunpack.c.l.s4 1966171168
        %v974 = vunpack.c.0.s8 %v973
        %v975 = vlaneseq
        %v976 = vshrl.u32 %v975, 7
        %v977 = vsub.s32 %v974, %v976
        %v978 = vrot.slane %v962, %v977
        %v980 = vunpack.c.l.s4 1966171168
        %v981 = vunpack.c.0.s8 %v980
        %v982 = vlaneseq
        %v983 = vshrl.u32 %v982, 7
        %v984 = vsub.s32 %v981, %v983
        %v985 = vrot.slane %v969, %v984
        %v987 = vunpack.c.l.s4 1966171168
        %v988 = vunpack.c.0.s8 %v987
        %v989 = vlaneseq
        %v990 = vshrl.u32 %v989, 7
        %v991 = vsub.s32 %v988, %v990
        %v992 = vrot.slane %v970, %v991
        %v994 = vunpack.c.l.s4 1966171168
        %v995 = vunpack.c.0.s8 %v994
        %v996 = vlaneseq
        %v997 = vshrl.u32 %v996, 7
        %v998 = vsub.s32 %v995, %v997
        %v999 = vrot.slane %v971, %v998
        %v1000 = vcombine.high %v978, %v978
        %v1001 = vcombine.high %v985, %v985
        %v1002 = vcombine.high %v992, %v992
        %v1003 = vcombine.high %v999, %v999
        %v1004 = vlaneseq
        %v1005 = vshrl.u32 %v1004, 7
        %v1006 = vsub.s32 0, %v1005
        %v1007 = vrot.slane %v978, %v1006
        %v1008 = vlaneseq
        %v1009 = vshrl.u32 %v1008, 7
        %v1010 = vsub.s32 0, %v1009
        %v1011 = vrot.slane %v992, %v1010
        %v1012 = vlaneseq
        %v1013 = vshrl.u32 %v1012, 7
        %v1014 = vsub.s32 0, %v1013
        %v1015 = vrot.slane %v1000, %v1014
        %v1016 = vlaneseq
        %v1017 = vshrl.u32 %v1016, 7
        %v1018 = vsub.s32 0, %v1017
        %v1019 = vrot.slane %v1002, %v1018
        %v1020 = vlaneseq
        %v1021 = vshrl.u32 %v1020, 7
        %v1022 = vsub.s32 0, %v1021
        %v1023 = vrot.slane %v985, %v1022
        %v1024 = vlaneseq
        %v1025 = vshrl.u32 %v1024, 7
        %v1026 = vsub.s32 0, %v1025
        %v1027 = vrot.slane %v999, %v1026
        %v1028 = vlaneseq
        %v1029 = vshrl.u32 %v1028, 7
        %v1030 = vsub.s32 0, %v1029
        %v1031 = vrot.slane %v1001, %v1030
        %v1032 = vlaneseq
        %v1033 = vshrl.u32 %v1032, 7
        %v1034 = vsub.s32 0, %v1033
        %v1035 = vrot.slane %v1003, %v1034
        %v1044 = vmul.f32 %v1007, %v875
        %v1045 = vmul.f32 %v1007, %v879
        %v1046 = vmul.f32 %v1011, %v885
        %v1047 = vmul.f32 %v1011, %v889
        %v1048 = vmul.f32 %v1015, %v895
        %v1049 = vmul.f32 %v1015, %v899
        %v1050 = vmul.f32 %v1019, %v905
        %v1051 = vmul.f32 %v1019, %v909
        %v1052 = vmul.f32 %v1023, %v915
        %v1053 = vmul.f32 %v1023, %v919
        %v1054 = vmul.f32 %v1027, %v925
        %v1055 = vmul.f32 %v1027, %v929
        %v1056 = vmul.f32 %v1031, %v935
        %v1057 = vmul.f32 %v1031, %v939
        %v1058 = vmul.f32 %v1035, %v945
        %v1059 = vmul.f32 %v1035, %v949
        %v1060 = vpack.c.bf16 %v1045, %v1044
        %v1061 = vpack.c.bf16 %v1047, %v1046
        %v1062 = vpack.c.bf16 %v1049, %v1048
        %v1063 = vpack.c.bf16 %v1051, %v1050
        %v1064 = vpack.c.bf16 %v1053, %v1052
        %v1065 = vpack.c.bf16 %v1055, %v1054
        %v1066 = vpack.c.bf16 %v1057, %v1056
        %v1067 = vpack.c.bf16 %v1059, %v1058
        %v1068 = vld [vmem:[%s7] sm:$0xf]
        %v1069 = vld [vmem:[%s7 + $0x4] sm:$0xf]
        %v1070 = vld [vmem:[%s7 + $0x8] sm:$0xf]
        %v1071 = vld [vmem:[%s7 + $0xc] sm:$0xf]
        %v1072 = vld [vmem:[%s7 + $0x10] sm:$0xf]
        %v1073 = vld [vmem:[%s7 + $0x14] sm:$0xf]
        %v1074 = vld [vmem:[%s7 + $0x18] sm:$0xf]
        %v1075 = vld [vmem:[%s7 + $0x1c] sm:$0xf]
        %v1076 = vld [vmem:[%s7 + $0x20] sm:$0xf]
        %v1077 = vld [vmem:[%s7 + $0x24] sm:$0xf]
        %v1078 = vld [vmem:[%s7 + $0x28] sm:$0xf]
        %v1079 = vld [vmem:[%s7 + $0x2c] sm:$0xf]
        %v1080 = vld [vmem:[%s7 + $0x30] sm:$0xf]
        %v1081 = vld [vmem:[%s7 + $0x34] sm:$0xf]
        %v1082 = vld [vmem:[%s7 + $0x38] sm:$0xf]
        %v1083 = vld [vmem:[%s7 + $0x3c] sm:$0xf]
        %v1100 = vunpack.c.l.b16 %v1068
        %v1101 = vunpack.c.l.b16 %v1069
        %v1102 = vunpack.c.l.b16 %v1070
        %v1103 = vunpack.c.l.b16 %v1071
        %v1104 = vunpack.c.l.b16 %v1072
        %v1105 = vunpack.c.l.b16 %v1073
        %v1106 = vunpack.c.l.b16 %v1074
        %v1107 = vunpack.c.l.b16 %v1075
        %v1108 = vunpack.c.l.b16 %v1076
        %v1109 = vunpack.c.l.b16 %v1077
        %v1110 = vunpack.c.l.b16 %v1078
        %v1111 = vunpack.c.l.b16 %v1079
        %v1112 = vunpack.c.l.b16 %v1080
        %v1113 = vunpack.c.l.b16 %v1081
        %v1114 = vunpack.c.l.b16 %v1082
        %v1115 = vunpack.c.l.b16 %v1083
        %v1116 = vpack.c.b16 %v1101, %v1100
        %v1117 = vpack.c.b16 %v1103, %v1102
        %v1118 = vpack.c.b16 %v1105, %v1104
        %v1119 = vpack.c.b16 %v1107, %v1106
        %v1120 = vpack.c.b16 %v1109, %v1108
        %v1121 = vpack.c.b16 %v1111, %v1110
        %v1122 = vpack.c.b16 %v1113, %v1112
        %v1123 = vpack.c.b16 %v1115, %v1114
        %1132 = vmatprep.subr.bf16.mxu0 0
        %1133 = vmatpush1.bf16.msra.mxu0 %v1123
        %1134 = vmatprep.subr.bf16.mxu0 0
        %1135 = vmatpush1.bf16.msra.mxu0 %v1122
        %1136 = vmatprep.subr.bf16.mxu0 0
        %1137 = vmatpush1.bf16.msra.mxu0 %v1121
        %1138 = vmatprep.subr.bf16.mxu0 0
        %1139 = vmatpush1.bf16.msra.mxu0 %v1120
        %1140 = vmatprep.subr.bf16.mxu0 0
        %1141 = vmatpush1.bf16.msra.mxu0 %v1119
        %1142 = vmatprep.subr.bf16.mxu0 0
        %1143 = vmatpush1.bf16.msra.mxu0 %v1118
        %1144 = vmatprep.subr.bf16.mxu0 0
        %1145 = vmatpush1.bf16.msra.mxu0 %v1117
        %1146 = vmatprep.subr.bf16.mxu0 0
        %1147 = vmatpush1.bf16.msra.mxu0 %v1116
        %1148 = vmatprep.subr.bf16.mxu0 0
        %1149 = vmatpush2.bf16.msra.mxu0 0
        %1150 = vmatprep.subr.bf16.mxu0 0
        %1151 = vmatpush2.bf16.msra.mxu0 0
        %1152 = vmatprep.subr.bf16.mxu0 0
        %1153 = vmatpush2.bf16.msra.mxu0 0
        %1154 = vmatprep.subr.bf16.mxu0 0
        %1155 = vmatpush2.bf16.msra.mxu0 0
        %1156 = vmatprep.subr.bf16.mxu0 0
        %1157 = vmatpush2.bf16.msra.mxu0 0
        %1158 = vmatprep.subr.bf16.mxu0 0
        %1159 = vmatpush2.bf16.msra.mxu0 0
        %1160 = vmatprep.subr.bf16.mxu0 0
        %1161 = vmatpush2.bf16.msra.mxu0 0
        %1162 = vmatprep.subr.bf16.mxu0 0
        %1163 = vmatpush2.bf16.msra.mxu0 0
        %1164 = vmatprep.mubr.bf16.mxu0 0
        %1165 = vmatmul.mubr.bf16.gmra.mxu0 %v1060
        %v1166 = vpop.f32.mrf.mxu0
        %v1167 = vadd.f32 0.0, %v1166
        %v1168 = vpop.f32.mrf.mxu0
        %v1169 = vpop.f32.mrf.mxu0
        %v1170 = vadd.f32 0.0, %v1169
        %v1171 = vpop.f32.mrf.mxu0
        %1172 = vmatprep.mubr.bf16.mxu0 0
        %1173 = vmatmul.mubr.bf16.gmra.mxu0 %v1061
        %v1174 = vpop.f32.mrf.mxu0
        %v1175 = vadd.f32 0.0, %v1174
        %v1176 = vpop.f32.mrf.mxu0
        %v1177 = vpop.f32.mrf.mxu0
        %v1178 = vadd.f32 0.0, %v1177
        %v1179 = vpop.f32.mrf.mxu0
        %1180 = vmatprep.mubr.bf16.mxu0 0
        %1181 = vmatmul.mubr.bf16.gmra.mxu0 %v1062
        %v1182 = vpop.f32.mrf.mxu0
        %v1183 = vadd.f32 0.0, %v1182
        %v1184 = vpop.f32.mrf.mxu0
        %v1185 = vpop.f32.mrf.mxu0
        %v1186 = vadd.f32 0.0, %v1185
        %v1187 = vpop.f32.mrf.mxu0
        %1188 = vmatprep.mubr.bf16.mxu0 0
        %1189 = vmatmul.mubr.bf16.gmra.mxu0 %v1063
        %v1190 = vpop.f32.mrf.mxu0
        %v1191 = vadd.f32 0.0, %v1190
        %v1192 = vpop.f32.mrf.mxu0
        %v1193 = vpop.f32.mrf.mxu0
        %v1194 = vadd.f32 0.0, %v1193
        %v1195 = vpop.f32.mrf.mxu0
        %1196 = vmatprep.mubr.bf16.mxu0 0
        %1197 = vmatmul.mubr.bf16.gmra.mxu0 %v1064
        %v1198 = vpop.f32.mrf.mxu0
        %v1199 = vadd.f32 0.0, %v1198
        %v1200 = vpop.f32.mrf.mxu0
        %v1201 = vpop.f32.mrf.mxu0
        %v1202 = vadd.f32 0.0, %v1201
        %v1203 = vpop.f32.mrf.mxu0
        %1204 = vmatprep.mubr.bf16.mxu0 0
        %1205 = vmatmul.mubr.bf16.gmra.mxu0 %v1065
        %v1206 = vpop.f32.mrf.mxu0
        %v1207 = vadd.f32 0.0, %v1206
        %v1208 = vpop.f32.mrf.mxu0
        %v1209 = vpop.f32.mrf.mxu0
        %v1210 = vadd.f32 0.0, %v1209
        %v1211 = vpop.f32.mrf.mxu0
        %1212 = vmatprep.mubr.bf16.mxu0 0
        %1213 = vmatmul.mubr.bf16.gmra.mxu0 %v1066
        %v1214 = vpop.f32.mrf.mxu0
        %v1215 = vadd.f32 0.0, %v1214
        %v1216 = vpop.f32.mrf.mxu0
        %v1217 = vpop.f32.mrf.mxu0
        %v1218 = vadd.f32 0.0, %v1217
        %v1219 = vpop.f32.mrf.mxu0
        %1220 = vmatprep.mubr.bf16.mxu0 0
        %1221 = vmatmul.mubr.bf16.gmra.mxu0 %v1067
        %v1222 = vpop.f32.mrf.mxu0
        %v1223 = vadd.f32 0.0, %v1222
        %v1224 = vpop.f32.mrf.mxu0
        %v1225 = vpop.f32.mrf.mxu0
        %v1226 = vadd.f32 0.0, %v1225
        %v1227 = vpop.f32.mrf.mxu0
        %1228 = vdwg.mxu0
        %v1229 = vld [vmem:[%s609] sm:$0xff]
        %v1230 = vld [vmem:[%s609 + $0x8] sm:$0xff]
        %v1231 = vld [vmem:[%s609 + $0x10] sm:$0xff]
        %v1232 = vld [vmem:[%s609 + $0x18] sm:$0xff]
        %v1233 = vld [vmem:[%s609 + $0x20] sm:$0xff]
        %v1234 = vld [vmem:[%s609 + $0x28] sm:$0xff]
        %v1235 = vld [vmem:[%s609 + $0x30] sm:$0xff]
        %v1236 = vld [vmem:[%s609 + $0x38] sm:$0xff]
        %v1237 = vld [vmem:[%s609 + $0x40] sm:$0xff]
        %v1238 = vld [vmem:[%s609 + $0x48] sm:$0xff]
        %v1239 = vld [vmem:[%s609 + $0x50] sm:$0xff]
        %v1240 = vld [vmem:[%s609 + $0x58] sm:$0xff]
        %v1241 = vld [vmem:[%s609 + $0x60] sm:$0xff]
        %v1242 = vld [vmem:[%s609 + $0x68] sm:$0xff]
        %v1243 = vld [vmem:[%s609 + $0x70] sm:$0xff]
        %v1244 = vld [vmem:[%s609 + $0x78] sm:$0xff]
        %1246 = vset.pattern.permute.xlu0 0
        %1247 = vperm.xlu0 %1246, %v1229
        %v1248 = vpop.permute.xlu0 %1247
        %1251 = vset.pattern.permute.xlu0 0
        %1252 = vperm.xlu0 %1251, %v1230
        %v1253 = vpop.permute.xlu0 %1252
        %1256 = vset.pattern.permute.xlu0 0
        %1257 = vperm.xlu0 %1256, %v1231
        %v1258 = vpop.permute.xlu0 %1257
        %1261 = vset.pattern.permute.xlu0 0
        %1262 = vperm.xlu0 %1261, %v1232
        %v1263 = vpop.permute.xlu0 %1262
        %1266 = vset.pattern.permute.xlu0 0
        %1267 = vperm.xlu0 %1266, %v1233
        %v1268 = vpop.permute.xlu0 %1267
        %1271 = vset.pattern.permute.xlu0 0
        %1272 = vperm.xlu0 %1271, %v1234
        %v1273 = vpop.permute.xlu0 %1272
        %1276 = vset.pattern.permute.xlu0 0
        %1277 = vperm.xlu0 %1276, %v1235
        %v1278 = vpop.permute.xlu0 %1277
        %1281 = vset.pattern.permute.xlu0 0
        %1282 = vperm.xlu0 %1281, %v1236
        %v1283 = vpop.permute.xlu0 %1282
        %1286 = vset.pattern.permute.xlu0 0
        %1287 = vperm.xlu0 %1286, %v1237
        %v1288 = vpop.permute.xlu0 %1287
        %1291 = vset.pattern.permute.xlu0 0
        %1292 = vperm.xlu0 %1291, %v1238
        %v1293 = vpop.permute.xlu0 %1292
        %1296 = vset.pattern.permute.xlu0 0
        %1297 = vperm.xlu0 %1296, %v1239
        %v1298 = vpop.permute.xlu0 %1297
        %1301 = vset.pattern.permute.xlu0 0
        %1302 = vperm.xlu0 %1301, %v1240
        %v1303 = vpop.permute.xlu0 %1302
        %1306 = vset.pattern.permute.xlu0 0
        %1307 = vperm.xlu0 %1306, %v1241
        %v1308 = vpop.permute.xlu0 %1307
        %1311 = vset.pattern.permute.xlu0 0
        %1312 = vperm.xlu0 %1311, %v1242
        %v1313 = vpop.permute.xlu0 %1312
        %1316 = vset.pattern.permute.xlu0 0
        %1317 = vperm.xlu0 %1316, %v1243
        %v1318 = vpop.permute.xlu0 %1317
        %1321 = vset.pattern.permute.xlu0 0
        %1322 = vperm.xlu0 %1321, %v1244
        %v1323 = vpop.permute.xlu0 %1322
        %v1325 = vadd.f32 %v1167, %v1248
        %v1326 = vadd.f32 %v1170, %v1253
        %v1327 = vadd.f32 %v1175, %v1258
        %v1328 = vadd.f32 %v1178, %v1263
        %v1329 = vadd.f32 %v1183, %v1268
        %v1330 = vadd.f32 %v1186, %v1273
        %v1331 = vadd.f32 %v1191, %v1278
        %v1332 = vadd.f32 %v1194, %v1283
        %v1333 = vadd.f32 %v1199, %v1288
        %v1334 = vadd.f32 %v1202, %v1293
        %v1335 = vadd.f32 %v1207, %v1298
        %v1336 = vadd.f32 %v1210, %v1303
        %v1337 = vadd.f32 %v1215, %v1308
        %v1338 = vadd.f32 %v1218, %v1313
        %v1339 = vadd.f32 %v1223, %v1318
        %v1340 = vadd.f32 %v1226, %v1323
        %v1341 = vld [vmem:[#allocation3] sm:$0x1]
        %v1342 = vld [vmem:[#allocation3 + $0x1] sm:$0x1]
        %v1343 = vld [vmem:[#allocation3 + $0x2] sm:$0x1]
        %v1344 = vld [vmem:[#allocation3 + $0x3] sm:$0x1]
        %v1345 = vld [vmem:[#allocation3 + $0x4] sm:$0x1]
        %v1346 = vld [vmem:[#allocation3 + $0x5] sm:$0x1]
        %v1347 = vld [vmem:[#allocation3 + $0x6] sm:$0x1]
        %v1348 = vld [vmem:[#allocation3 + $0x7] sm:$0x1]
        %vm1349 = vcmask 31744
        %v1350 = vsel %vm1349, %v1325, -inf
        %v1351 = vsel %vm1349, %v1326, -inf
        %v1352 = vmax.f32 %v1350, %v1351
        %v1353 = vrot.slane %v1352, 4
        %v1354 = vmax.f32 %v1352, %v1353
        %v1355 = vrot.slane %v1354, 2
        %v1356 = vmax.f32 %v1354, %v1355
        %v1357 = vrot.slane %v1356, 1
        %v1358 = vmax.f32 %v1356, %v1357
        %v1359 = vsel %vm1349, %v1327, -inf
        %v1360 = vsel %vm1349, %v1328, -inf
        %v1361 = vmax.f32 %v1359, %v1360
        %v1362 = vrot.slane %v1361, 4
        %v1363 = vmax.f32 %v1361, %v1362
        %v1364 = vrot.slane %v1363, 2
        %v1365 = vmax.f32 %v1363, %v1364
        %v1366 = vrot.slane %v1365, 1
        %v1367 = vmax.f32 %v1365, %v1366
        %v1368 = vsel %vm1349, %v1329, -inf
        %v1369 = vsel %vm1349, %v1330, -inf
        %v1370 = vmax.f32 %v1368, %v1369
        %v1371 = vrot.slane %v1370, 4
        %v1372 = vmax.f32 %v1370, %v1371
        %v1373 = vrot.slane %v1372, 2
        %v1374 = vmax.f32 %v1372, %v1373
        %v1375 = vrot.slane %v1374, 1
        %v1376 = vmax.f32 %v1374, %v1375
        %v1377 = vsel %vm1349, %v1331, -inf
        %v1378 = vsel %vm1349, %v1332, -inf
        %v1379 = vmax.f32 %v1377, %v1378
        %v1380 = vrot.slane %v1379, 4
        %v1381 = vmax.f32 %v1379, %v1380
        %v1382 = vrot.slane %v1381, 2
        %v1383 = vmax.f32 %v1381, %v1382
        %v1384 = vrot.slane %v1383, 1
        %v1385 = vmax.f32 %v1383, %v1384
        %v1386 = vsel %vm1349, %v1333, -inf
        %v1387 = vsel %vm1349, %v1334, -inf
        %v1388 = vmax.f32 %v1386, %v1387
        %v1389 = vrot.slane %v1388, 4
        %v1390 = vmax.f32 %v1388, %v1389
        %v1391 = vrot.slane %v1390, 2
        %v1392 = vmax.f32 %v1390, %v1391
        %v1393 = vrot.slane %v1392, 1
        %v1394 = vmax.f32 %v1392, %v1393
        %v1395 = vsel %vm1349, %v1335, -inf
        %v1396 = vsel %vm1349, %v1336, -inf
        %v1397 = vmax.f32 %v1395, %v1396
        %v1398 = vrot.slane %v1397, 4
        %v1399 = vmax.f32 %v1397, %v1398
        %v1400 = vrot.slane %v1399, 2
        %v1401 = vmax.f32 %v1399, %v1400
        %v1402 = vrot.slane %v1401, 1
        %v1403 = vmax.f32 %v1401, %v1402
        %v1404 = vsel %vm1349, %v1337, -inf
        %v1405 = vsel %vm1349, %v1338, -inf
        %v1406 = vmax.f32 %v1404, %v1405
        %v1407 = vrot.slane %v1406, 4
        %v1408 = vmax.f32 %v1406, %v1407
        %v1409 = vrot.slane %v1408, 2
        %v1410 = vmax.f32 %v1408, %v1409
        %v1411 = vrot.slane %v1410, 1
        %v1412 = vmax.f32 %v1410, %v1411
        %v1413 = vsel %vm1349, %v1339, -inf
        %v1414 = vsel %vm1349, %v1340, -inf
        %v1415 = vmax.f32 %v1413, %v1414
        %v1416 = vrot.slane %v1415, 4
        %v1417 = vmax.f32 %v1415, %v1416
        %v1418 = vrot.slane %v1417, 2
        %v1419 = vmax.f32 %v1417, %v1418
        %v1420 = vrot.slane %v1419, 1
        %v1421 = vmax.f32 %v1419, %v1420
        %v1422 = vmax.f32 %v1341, %v1358
        %v1423 = vmax.f32 %v1342, %v1367
        %v1424 = vmax.f32 %v1343, %v1376
        %v1425 = vmax.f32 %v1344, %v1385
        %v1426 = vmax.f32 %v1345, %v1394
        %v1427 = vmax.f32 %v1346, %v1403
        %v1428 = vmax.f32 %v1347, %v1412
        %v1429 = vmax.f32 %v1348, %v1421
        %vm1430 = vcmp.eq.f32.partialorder %v1422, -inf
        %vm1431 = vcmp.eq.f32.partialorder %v1423, -inf
        %vm1432 = vcmp.eq.f32.partialorder %v1424, -inf
        %vm1433 = vcmp.eq.f32.partialorder %v1425, -inf
        %vm1434 = vcmp.eq.f32.partialorder %v1426, -inf
        %vm1435 = vcmp.eq.f32.partialorder %v1427, -inf
        %vm1436 = vcmp.eq.f32.partialorder %v1428, -inf
        %vm1437 = vcmp.eq.f32.partialorder %v1429, -inf
        %v1438 = vsel %vm1430, 0.0, %v1422
        %v1439 = vsel %vm1431, 0.0, %v1423
        %v1440 = vsel %vm1432, 0.0, %v1424
        %v1441 = vsel %vm1433, 0.0, %v1425
        %v1442 = vsel %vm1434, 0.0, %v1426
        %v1443 = vsel %vm1435, 0.0, %v1427
        %v1444 = vsel %vm1436, 0.0, %v1428
        %v1445 = vsel %vm1437, 0.0, %v1429
        %v1446 = vsub.f32 %v1341, %v1438
        %v1447 = vsub.f32 %v1342, %v1439
        %v1448 = vsub.f32 %v1343, %v1440
        %v1449 = vsub.f32 %v1344, %v1441
        %v1450 = vsub.f32 %v1345, %v1442
        %v1451 = vsub.f32 %v1346, %v1443
        %v1452 = vsub.f32 %v1347, %v1444
        %v1453 = vsub.f32 %v1348, %v1445
        %v1454 = vmul.f32 %v1446, 1.442695
        %v1455 = vpow.pop %v1454
        %v1456 = vmul.f32 %v1447, 1.442695
        %v1457 = vpow.pop %v1456
        %v1458 = vmul.f32 %v1448, 1.442695
        %v1459 = vpow.pop %v1458
        %v1460 = vmul.f32 %v1449, 1.442695
        %v1461 = vpow.pop %v1460
        %v1462 = vmul.f32 %v1450, 1.442695
        %v1463 = vpow.pop %v1462
        %v1464 = vmul.f32 %v1451, 1.442695
        %v1465 = vpow.pop %v1464
        %v1466 = vmul.f32 %v1452, 1.442695
        %v1467 = vpow.pop %v1466
        %v1468 = vmul.f32 %v1453, 1.442695
        %v1469 = vpow.pop %v1468
        %v1478 = vlaneseq
        %v1479 = vshrl.u32 %v1478, 7
        %v1480 = vsub.s32 0, %v1479
        %v1481 = vrot.slane %v1438, %v1480
        %v1482 = vlaneseq
        %v1483 = vshrl.u32 %v1482, 7
        %v1484 = vsub.s32 0, %v1483
        %v1485 = vrot.slane %v1439, %v1484
        %v1486 = vlaneseq
        %v1487 = vshrl.u32 %v1486, 7
        %v1488 = vsub.s32 0, %v1487
        %v1489 = vrot.slane %v1440, %v1488
        %v1490 = vlaneseq
        %v1491 = vshrl.u32 %v1490, 7
        %v1492 = vsub.s32 0, %v1491
        %v1493 = vrot.slane %v1441, %v1492
        %v1494 = vlaneseq
        %v1495 = vshrl.u32 %v1494, 7
        %v1496 = vsub.s32 0, %v1495
        %v1497 = vrot.slane %v1442, %v1496
        %v1498 = vlaneseq
        %v1499 = vshrl.u32 %v1498, 7
        %v1500 = vsub.s32 0, %v1499
        %v1501 = vrot.slane %v1443, %v1500
        %v1502 = vlaneseq
        %v1503 = vshrl.u32 %v1502, 7
        %v1504 = vsub.s32 0, %v1503
        %v1505 = vrot.slane %v1444, %v1504
        %v1506 = vlaneseq
        %v1507 = vshrl.u32 %v1506, 7
        %v1508 = vsub.s32 0, %v1507
        %v1509 = vrot.slane %v1445, %v1508
        %v1518 = vsub.f32 %v1325, %v1481
        %v1519 = vsub.f32 %v1326, %v1481
        %v1520 = vsub.f32 %v1327, %v1485
        %v1521 = vsub.f32 %v1328, %v1485
        %v1522 = vsub.f32 %v1329, %v1489
        %v1523 = vsub.f32 %v1330, %v1489
        %v1524 = vsub.f32 %v1331, %v1493
        %v1525 = vsub.f32 %v1332, %v1493
        %v1526 = vsub.f32 %v1333, %v1497
        %v1527 = vsub.f32 %v1334, %v1497
        %v1528 = vsub.f32 %v1335, %v1501
        %v1529 = vsub.f32 %v1336, %v1501
        %v1530 = vsub.f32 %v1337, %v1505
        %v1531 = vsub.f32 %v1338, %v1505
        %v1532 = vsub.f32 %v1339, %v1509
        %v1533 = vsub.f32 %v1340, %v1509
        %v1534 = vmul.f32 %v1518, 1.442695
        %v1535 = vpow.pop %v1534
        %v1536 = vmul.f32 %v1519, 1.442695
        %v1537 = vpow.pop %v1536
        %v1538 = vmul.f32 %v1520, 1.442695
        %v1539 = vpow.pop %v1538
        %v1540 = vmul.f32 %v1521, 1.442695
        %v1541 = vpow.pop %v1540
        %v1542 = vmul.f32 %v1522, 1.442695
        %v1543 = vpow.pop %v1542
        %v1544 = vmul.f32 %v1523, 1.442695
        %v1545 = vpow.pop %v1544
        %v1546 = vmul.f32 %v1524, 1.442695
        %v1547 = vpow.pop %v1546
        %v1548 = vmul.f32 %v1525, 1.442695
        %v1549 = vpow.pop %v1548
        %v1550 = vmul.f32 %v1526, 1.442695
        %v1551 = vpow.pop %v1550
        %v1552 = vmul.f32 %v1527, 1.442695
        %v1553 = vpow.pop %v1552
        %v1554 = vmul.f32 %v1528, 1.442695
        %v1555 = vpow.pop %v1554
        %v1556 = vmul.f32 %v1529, 1.442695
        %v1557 = vpow.pop %v1556
        %v1558 = vmul.f32 %v1530, 1.442695
        %v1559 = vpow.pop %v1558
        %v1560 = vmul.f32 %v1531, 1.442695
        %v1561 = vpow.pop %v1560
        %v1562 = vmul.f32 %v1532, 1.442695
        %v1563 = vpow.pop %v1562
        %v1564 = vmul.f32 %v1533, 1.442695
        %v1565 = vpow.pop %v1564
        %v1566 = vld [vmem:[#allocation4] sm:$0x1]
        %v1567 = vld [vmem:[#allocation4 + $0x1] sm:$0x1]
        %v1568 = vld [vmem:[#allocation4 + $0x2] sm:$0x1]
        %v1569 = vld [vmem:[#allocation4 + $0x3] sm:$0x1]
        %v1570 = vld [vmem:[#allocation4 + $0x4] sm:$0x1]
        %v1571 = vld [vmem:[#allocation4 + $0x5] sm:$0x1]
        %v1572 = vld [vmem:[#allocation4 + $0x6] sm:$0x1]
        %v1573 = vld [vmem:[#allocation4 + $0x7] sm:$0x1]
        %v1574 = vmul.f32 %v1455, %v1566
        %v1575 = vmul.f32 %v1457, %v1567
        %v1576 = vmul.f32 %v1459, %v1568
        %v1577 = vmul.f32 %v1461, %v1569
        %v1578 = vmul.f32 %v1463, %v1570
        %v1579 = vmul.f32 %v1465, %v1571
        %v1580 = vmul.f32 %v1467, %v1572
        %v1581 = vmul.f32 %v1469, %v1573
        %v1582 = vsel %vm1349, %v1535, 0.0
        %v1583 = vsel %vm1349, %v1537, 0.0
        %v1584 = vadd.f32 %v1582, %v1583
        %v1585 = vrot.slane %v1584, 4
        %v1586 = vadd.f32 %v1584, %v1585
        %v1587 = vrot.slane %v1586, 2
        %v1588 = vadd.f32 %v1586, %v1587
        %v1589 = vrot.slane %v1588, 1
        %v1590 = vadd.f32 %v1588, %v1589
        %v1591 = vsel %vm1349, %v1539, 0.0
        %v1592 = vsel %vm1349, %v1541, 0.0
        %v1593 = vadd.f32 %v1591, %v1592
        %v1594 = vrot.slane %v1593, 4
        %v1595 = vadd.f32 %v1593, %v1594
        %v1596 = vrot.slane %v1595, 2
        %v1597 = vadd.f32 %v1595, %v1596
        %v1598 = vrot.slane %v1597, 1
        %v1599 = vadd.f32 %v1597, %v1598
        %v1600 = vsel %vm1349, %v1543, 0.0
        %v1601 = vsel %vm1349, %v1545, 0.0
        %v1602 = vadd.f32 %v1600, %v1601
        %v1603 = vrot.slane %v1602, 4
        %v1604 = vadd.f32 %v1602, %v1603
        %v1605 = vrot.slane %v1604, 2
        %v1606 = vadd.f32 %v1604, %v1605
        %v1607 = vrot.slane %v1606, 1
        %v1608 = vadd.f32 %v1606, %v1607
        %v1609 = vsel %vm1349, %v1547, 0.0
        %v1610 = vsel %vm1349, %v1549, 0.0
        %v1611 = vadd.f32 %v1609, %v1610
        %v1612 = vrot.slane %v1611, 4
        %v1613 = vadd.f32 %v1611, %v1612
        %v1614 = vrot.slane %v1613, 2
        %v1615 = vadd.f32 %v1613, %v1614
        %v1616 = vrot.slane %v1615, 1
        %v1617 = vadd.f32 %v1615, %v1616
        %v1618 = vsel %vm1349, %v1551, 0.0
        %v1619 = vsel %vm1349, %v1553, 0.0
        %v1620 = vadd.f32 %v1618, %v1619
        %v1621 = vrot.slane %v1620, 4
        %v1622 = vadd.f32 %v1620, %v1621
        %v1623 = vrot.slane %v1622, 2
        %v1624 = vadd.f32 %v1622, %v1623
        %v1625 = vrot.slane %v1624, 1
        %v1626 = vadd.f32 %v1624, %v1625
        %v1627 = vsel %vm1349, %v1555, 0.0
        %v1628 = vsel %vm1349, %v1557, 0.0
        %v1629 = vadd.f32 %v1627, %v1628
        %v1630 = vrot.slane %v1629, 4
        %v1631 = vadd.f32 %v1629, %v1630
        %v1632 = vrot.slane %v1631, 2
        %v1633 = vadd.f32 %v1631, %v1632
        %v1634 = vrot.slane %v1633, 1
        %v1635 = vadd.f32 %v1633, %v1634
        %v1636 = vsel %vm1349, %v1559, 0.0
        %v1637 = vsel %vm1349, %v1561, 0.0
        %v1638 = vadd.f32 %v1636, %v1637
        %v1639 = vrot.slane %v1638, 4
        %v1640 = vadd.f32 %v1638, %v1639
        %v1641 = vrot.slane %v1640, 2
        %v1642 = vadd.f32 %v1640, %v1641
        %v1643 = vrot.slane %v1642, 1
        %v1644 = vadd.f32 %v1642, %v1643
        %v1645 = vsel %vm1349, %v1563, 0.0
        %v1646 = vsel %vm1349, %v1565, 0.0
        %v1647 = vadd.f32 %v1645, %v1646
        %v1648 = vrot.slane %v1647, 4
        %v1649 = vadd.f32 %v1647, %v1648
        %v1650 = vrot.slane %v1649, 2
        %v1651 = vadd.f32 %v1649, %v1650
        %v1652 = vrot.slane %v1651, 1
        %v1653 = vadd.f32 %v1651, %v1652
        %v1654 = vadd.f32 %v1574, %v1590
        %v1655 = vadd.f32 %v1575, %v1599
        %v1656 = vadd.f32 %v1576, %v1608
        %v1657 = vadd.f32 %v1577, %v1617
        %v1658 = vadd.f32 %v1578, %v1626
        %v1659 = vadd.f32 %v1579, %v1635
        %v1660 = vadd.f32 %v1580, %v1644
        %v1661 = vadd.f32 %v1581, %v1653
        %vm1662 = vcmask 24576
        %1663 = vst.msk [vmem:[#allocation4] sm:$0x1] %vm1662, %v1654
        %1664 = vst.msk [vmem:[#allocation4 + $0x1] sm:$0x1] %vm1662, %v1655
        %1665 = vst.msk [vmem:[#allocation4 + $0x2] sm:$0x1] %vm1662, %v1656
        %1666 = vst.msk [vmem:[#allocation4 + $0x3] sm:$0x1] %vm1662, %v1657
        %1667 = vst.msk [vmem:[#allocation4 + $0x4] sm:$0x1] %vm1662, %v1658
        %1668 = vst.msk [vmem:[#allocation4 + $0x5] sm:$0x1] %vm1662, %v1659
        %1669 = vst.msk [vmem:[#allocation4 + $0x6] sm:$0x1] %vm1662, %v1660
        %1670 = vst.msk [vmem:[#allocation4 + $0x7] sm:$0x1] %vm1662, %v1661
        %1671 = vst.msk [vmem:[#allocation3] sm:$0x1] %vm1662, %v1422
        %1672 = vst.msk [vmem:[#allocation3 + $0x1] sm:$0x1] %vm1662, %v1423
        %1673 = vst.msk [vmem:[#allocation3 + $0x2] sm:$0x1] %vm1662, %v1424
        %1674 = vst.msk [vmem:[#allocation3 + $0x3] sm:$0x1] %vm1662, %v1425
        %1675 = vst.msk [vmem:[#allocation3 + $0x4] sm:$0x1] %vm1662, %v1426
        %1676 = vst.msk [vmem:[#allocation3 + $0x5] sm:$0x1] %vm1662, %v1427
        %1677 = vst.msk [vmem:[#allocation3 + $0x6] sm:$0x1] %vm1662, %v1428
        %1678 = vst.msk [vmem:[#allocation3 + $0x7] sm:$0x1] %vm1662, %v1429
        %v1679 = vld [vmem:[%s8] sm:$0x1]
        %1681 = vset.pattern.permute.xlu0 0
        %1682 = vperm.xlu0 %1681, %v1535
        %v1683 = vpop.permute.xlu0 %1682
        %1686 = vset.pattern.permute.xlu0 0
        %1687 = vperm.xlu0 %1686, %v1537
        %v1688 = vpop.permute.xlu0 %1687
        %1691 = vset.pattern.permute.xlu0 0
        %1692 = vperm.xlu0 %1691, %v1539
        %v1693 = vpop.permute.xlu0 %1692
        %1696 = vset.pattern.permute.xlu0 0
        %1697 = vperm.xlu0 %1696, %v1541
        %v1698 = vpop.permute.xlu0 %1697
        %1701 = vset.pattern.permute.xlu0 0
        %1702 = vperm.xlu0 %1701, %v1543
        %v1703 = vpop.permute.xlu0 %1702
        %1706 = vset.pattern.permute.xlu0 0
        %1707 = vperm.xlu0 %1706, %v1545
        %v1708 = vpop.permute.xlu0 %1707
        %1711 = vset.pattern.permute.xlu0 0
        %1712 = vperm.xlu0 %1711, %v1547
        %v1713 = vpop.permute.xlu0 %1712
        %1716 = vset.pattern.permute.xlu0 0
        %1717 = vperm.xlu0 %1716, %v1549
        %v1718 = vpop.permute.xlu0 %1717
        %1721 = vset.pattern.permute.xlu0 0
        %1722 = vperm.xlu0 %1721, %v1551
        %v1723 = vpop.permute.xlu0 %1722
        %1726 = vset.pattern.permute.xlu0 0
        %1727 = vperm.xlu0 %1726, %v1553
        %v1728 = vpop.permute.xlu0 %1727
        %1731 = vset.pattern.permute.xlu0 0
        %1732 = vperm.xlu0 %1731, %v1555
        %v1733 = vpop.permute.xlu0 %1732
        %1736 = vset.pattern.permute.xlu0 0
        %1737 = vperm.xlu0 %1736, %v1557
        %v1738 = vpop.permute.xlu0 %1737
        %1741 = vset.pattern.permute.xlu0 0
        %1742 = vperm.xlu0 %1741, %v1559
        %v1743 = vpop.permute.xlu0 %1742
        %1746 = vset.pattern.permute.xlu0 0
        %1747 = vperm.xlu0 %1746, %v1561
        %v1748 = vpop.permute.xlu0 %1747
        %1751 = vset.pattern.permute.xlu0 0
        %1752 = vperm.xlu0 %1751, %v1563
        %v1753 = vpop.permute.xlu0 %1752
        %1756 = vset.pattern.permute.xlu0 0
        %1757 = vperm.xlu0 %1756, %v1565
        %v1758 = vpop.permute.xlu0 %1757
        %v1760 = vlaneseq
        %v1761 = vshrl.u32 %v1760, 7
        %v1762 = vsub.s32 0, %v1761
        %v1763 = vrot.slane %v1679, %v1762
        %v1764 = vmul.f32 %v1683, %v1763
        %v1765 = vmul.f32 %v1688, %v1763
        %v1766 = vmul.f32 %v1693, %v1763
        %v1767 = vmul.f32 %v1698, %v1763
        %v1768 = vmul.f32 %v1703, %v1763
        %v1769 = vmul.f32 %v1708, %v1763
        %v1770 = vmul.f32 %v1713, %v1763
        %v1771 = vmul.f32 %v1718, %v1763
        %v1772 = vmul.f32 %v1723, %v1763
        %v1773 = vmul.f32 %v1728, %v1763
        %v1774 = vmul.f32 %v1733, %v1763
        %v1775 = vmul.f32 %v1738, %v1763
        %v1776 = vmul.f32 %v1743, %v1763
        %v1777 = vmul.f32 %v1748, %v1763
        %v1778 = vmul.f32 %v1753, %v1763
        %v1779 = vmul.f32 %v1758, %v1763
        %v1780 = vld [vmem:[%s8 + $0x1] sm:$0x1]
        %1781 = vset.pattern.permute.xlu0 1
        %1782 = vperm.xlu0 %1781, %v1535
        %v1783 = vpop.permute.xlu0 %1782
        %1785 = vset.pattern.permute.xlu0 1
        %1786 = vperm.xlu0 %1785, %v1537
        %v1787 = vpop.permute.xlu0 %1786
        %1789 = vset.pattern.permute.xlu0 1
        %1790 = vperm.xlu0 %1789, %v1539
        %v1791 = vpop.permute.xlu0 %1790
        %1793 = vset.pattern.permute.xlu0 1
        %1794 = vperm.xlu0 %1793, %v1541
        %v1795 = vpop.permute.xlu0 %1794
        %1797 = vset.pattern.permute.xlu0 1
        %1798 = vperm.xlu0 %1797, %v1543
        %v1799 = vpop.permute.xlu0 %1798
        %1801 = vset.pattern.permute.xlu0 1
        %1802 = vperm.xlu0 %1801, %v1545
        %v1803 = vpop.permute.xlu0 %1802
        %1805 = vset.pattern.permute.xlu0 1
        %1806 = vperm.xlu0 %1805, %v1547
        %v1807 = vpop.permute.xlu0 %1806
        %1809 = vset.pattern.permute.xlu0 1
        %1810 = vperm.xlu0 %1809, %v1549
        %v1811 = vpop.permute.xlu0 %1810
        %1813 = vset.pattern.permute.xlu0 1
        %1814 = vperm.xlu0 %1813, %v1551
        %v1815 = vpop.permute.xlu0 %1814
        %1817 = vset.pattern.permute.xlu0 1
        %1818 = vperm.xlu0 %1817, %v1553
        %v1819 = vpop.permute.xlu0 %1818
        %1821 = vset.pattern.permute.xlu0 1
        %1822 = vperm.xlu0 %1821, %v1555
        %v1823 = vpop.permute.xlu0 %1822
        %1825 = vset.pattern.permute.xlu0 1
        %1826 = vperm.xlu0 %1825, %v1557
        %v1827 = vpop.permute.xlu0 %1826
        %1829 = vset.pattern.permute.xlu0 1
        %1830 = vperm.xlu0 %1829, %v1559
        %v1831 = vpop.permute.xlu0 %1830
        %1833 = vset.pattern.permute.xlu0 1
        %1834 = vperm.xlu0 %1833, %v1561
        %v1835 = vpop.permute.xlu0 %1834
        %1837 = vset.pattern.permute.xlu0 1
        %1838 = vperm.xlu0 %1837, %v1563
        %v1839 = vpop.permute.xlu0 %1838
        %1841 = vset.pattern.permute.xlu0 1
        %1842 = vperm.xlu0 %1841, %v1565
        %v1843 = vpop.permute.xlu0 %1842
        %v1845 = vlaneseq
        %v1846 = vshrl.u32 %v1845, 7
        %v1847 = vsub.s32 0, %v1846
        %v1848 = vrot.slane %v1780, %v1847
        %v1849 = vmul.f32 %v1783, %v1848
        %v1850 = vmul.f32 %v1787, %v1848
        %v1851 = vmul.f32 %v1791, %v1848
        %v1852 = vmul.f32 %v1795, %v1848
        %v1853 = vmul.f32 %v1799, %v1848
        %v1854 = vmul.f32 %v1803, %v1848
        %v1855 = vmul.f32 %v1807, %v1848
        %v1856 = vmul.f32 %v1811, %v1848
        %v1857 = vmul.f32 %v1815, %v1848
        %v1858 = vmul.f32 %v1819, %v1848
        %v1859 = vmul.f32 %v1823, %v1848
        %v1860 = vmul.f32 %v1827, %v1848
        %v1861 = vmul.f32 %v1831, %v1848
        %v1862 = vmul.f32 %v1835, %v1848
        %v1863 = vmul.f32 %v1839, %v1848
        %v1864 = vmul.f32 %v1843, %v1848
        %v1865 = vadd.f32 %v1764, %v1849
        %v1866 = vadd.f32 %v1765, %v1850
        %v1867 = vadd.f32 %v1766, %v1851
        %v1868 = vadd.f32 %v1767, %v1852
        %v1869 = vadd.f32 %v1768, %v1853
        %v1870 = vadd.f32 %v1769, %v1854
        %v1871 = vadd.f32 %v1770, %v1855
        %v1872 = vadd.f32 %v1771, %v1856
        %v1873 = vadd.f32 %v1772, %v1857
        %v1874 = vadd.f32 %v1773, %v1858
        %v1875 = vadd.f32 %v1774, %v1859
        %v1876 = vadd.f32 %v1775, %v1860
        %v1877 = vadd.f32 %v1776, %v1861
        %v1878 = vadd.f32 %v1777, %v1862
        %v1879 = vadd.f32 %v1778, %v1863
        %v1880 = vadd.f32 %v1779, %v1864
        %v1881 = vld [vmem:[%s8 + $0x2] sm:$0x1]
        %1882 = vset.pattern.permute.xlu0 2
        %1883 = vperm.xlu0 %1882, %v1535
        %v1884 = vpop.permute.xlu0 %1883
        %1886 = vset.pattern.permute.xlu0 2
        %1887 = vperm.xlu0 %1886, %v1537
        %v1888 = vpop.permute.xlu0 %1887
        %1890 = vset.pattern.permute.xlu0 2
        %1891 = vperm.xlu0 %1890, %v1539
        %v1892 = vpop.permute.xlu0 %1891
        %1894 = vset.pattern.permute.xlu0 2
        %1895 = vperm.xlu0 %1894, %v1541
        %v1896 = vpop.permute.xlu0 %1895
        %1898 = vset.pattern.permute.xlu0 2
        %1899 = vperm.xlu0 %1898, %v1543
        %v1900 = vpop.permute.xlu0 %1899
        %1902 = vset.pattern.permute.xlu0 2
        %1903 = vperm.xlu0 %1902, %v1545
        %v1904 = vpop.permute.xlu0 %1903
        %1906 = vset.pattern.permute.xlu0 2
        %1907 = vperm.xlu0 %1906, %v1547
        %v1908 = vpop.permute.xlu0 %1907
        %1910 = vset.pattern.permute.xlu0 2
        %1911 = vperm.xlu0 %1910, %v1549
        %v1912 = vpop.permute.xlu0 %1911
        %1914 = vset.pattern.permute.xlu0 2
        %1915 = vperm.xlu0 %1914, %v1551
        %v1916 = vpop.permute.xlu0 %1915
        %1918 = vset.pattern.permute.xlu0 2
        %1919 = vperm.xlu0 %1918, %v1553
        %v1920 = vpop.permute.xlu0 %1919
        %1922 = vset.pattern.permute.xlu0 2
        %1923 = vperm.xlu0 %1922, %v1555
        %v1924 = vpop.permute.xlu0 %1923
        %1926 = vset.pattern.permute.xlu0 2
        %1927 = vperm.xlu0 %1926, %v1557
        %v1928 = vpop.permute.xlu0 %1927
        %1930 = vset.pattern.permute.xlu0 2
        %1931 = vperm.xlu0 %1930, %v1559
        %v1932 = vpop.permute.xlu0 %1931
        %1934 = vset.pattern.permute.xlu0 2
        %1935 = vperm.xlu0 %1934, %v1561
        %v1936 = vpop.permute.xlu0 %1935
        %1938 = vset.pattern.permute.xlu0 2
        %1939 = vperm.xlu0 %1938, %v1563
        %v1940 = vpop.permute.xlu0 %1939
        %1942 = vset.pattern.permute.xlu0 2
        %1943 = vperm.xlu0 %1942, %v1565
        %v1944 = vpop.permute.xlu0 %1943
        %v1946 = vlaneseq
        %v1947 = vshrl.u32 %v1946, 7
        %v1948 = vsub.s32 0, %v1947
        %v1949 = vrot.slane %v1881, %v1948
        %v1950 = vmul.f32 %v1884, %v1949
        %v1951 = vmul.f32 %v1888, %v1949
        %v1952 = vmul.f32 %v1892, %v1949
        %v1953 = vmul.f32 %v1896, %v1949
        %v1954 = vmul.f32 %v1900, %v1949
        %v1955 = vmul.f32 %v1904, %v1949
        %v1956 = vmul.f32 %v1908, %v1949
        %v1957 = vmul.f32 %v1912, %v1949
        %v1958 = vmul.f32 %v1916, %v1949
        %v1959 = vmul.f32 %v1920, %v1949
        %v1960 = vmul.f32 %v1924, %v1949
        %v1961 = vmul.f32 %v1928, %v1949
        %v1962 = vmul.f32 %v1932, %v1949
        %v1963 = vmul.f32 %v1936, %v1949
        %v1964 = vmul.f32 %v1940, %v1949
        %v1965 = vmul.f32 %v1944, %v1949
        %v1966 = vadd.f32 %v1865, %v1950
        %v1967 = vadd.f32 %v1866, %v1951
        %v1968 = vadd.f32 %v1867, %v1952
        %v1969 = vadd.f32 %v1868, %v1953
        %v1970 = vadd.f32 %v1869, %v1954
        %v1971 = vadd.f32 %v1870, %v1955
        %v1972 = vadd.f32 %v1871, %v1956
        %v1973 = vadd.f32 %v1872, %v1957
        %v1974 = vadd.f32 %v1873, %v1958
        %v1975 = vadd.f32 %v1874, %v1959
        %v1976 = vadd.f32 %v1875, %v1960
        %v1977 = vadd.f32 %v1876, %v1961
        %v1978 = vadd.f32 %v1877, %v1962
        %v1979 = vadd.f32 %v1878, %v1963
        %v1980 = vadd.f32 %v1879, %v1964
        %v1981 = vadd.f32 %v1880, %v1965
        %v1982 = vld [vmem:[%s8 + $0x3] sm:$0x1]
        %1983 = vset.pattern.permute.xlu0 3
        %1984 = vperm.xlu0 %1983, %v1535
        %v1985 = vpop.permute.xlu0 %1984
        %1987 = vset.pattern.permute.xlu0 3
        %1988 = vperm.xlu0 %1987, %v1537
        %v1989 = vpop.permute.xlu0 %1988
        %1991 = vset.pattern.permute.xlu0 3
        %1992 = vperm.xlu0 %1991, %v1539
        %v1993 = vpop.permute.xlu0 %1992
        %1995 = vset.pattern.permute.xlu0 3
        %1996 = vperm.xlu0 %1995, %v1541
        %v1997 = vpop.permute.xlu0 %1996
        %1999 = vset.pattern.permute.xlu0 3
        %2000 = vperm.xlu0 %1999, %v1543
        %v2001 = vpop.permute.xlu0 %2000
        %2003 = vset.pattern.permute.xlu0 3
        %2004 = vperm.xlu0 %2003, %v1545
        %v2005 = vpop.permute.xlu0 %2004
        %2007 = vset.pattern.permute.xlu0 3
        %2008 = vperm.xlu0 %2007, %v1547
        %v2009 = vpop.permute.xlu0 %2008
        %2011 = vset.pattern.permute.xlu0 3
        %2012 = vperm.xlu0 %2011, %v1549
        %v2013 = vpop.permute.xlu0 %2012
        %2015 = vset.pattern.permute.xlu0 3
        %2016 = vperm.xlu0 %2015, %v1551
        %v2017 = vpop.permute.xlu0 %2016
        %2019 = vset.pattern.permute.xlu0 3
        %2020 = vperm.xlu0 %2019, %v1553
        %v2021 = vpop.permute.xlu0 %2020
        %2023 = vset.pattern.permute.xlu0 3
        %2024 = vperm.xlu0 %2023, %v1555
        %v2025 = vpop.permute.xlu0 %2024
        %2027 = vset.pattern.permute.xlu0 3
        %2028 = vperm.xlu0 %2027, %v1557
        %v2029 = vpop.permute.xlu0 %2028
        %2031 = vset.pattern.permute.xlu0 3
        %2032 = vperm.xlu0 %2031, %v1559
        %v2033 = vpop.permute.xlu0 %2032
        %2035 = vset.pattern.permute.xlu0 3
        %2036 = vperm.xlu0 %2035, %v1561
        %v2037 = vpop.permute.xlu0 %2036
        %2039 = vset.pattern.permute.xlu0 3
        %2040 = vperm.xlu0 %2039, %v1563
        %v2041 = vpop.permute.xlu0 %2040
        %2043 = vset.pattern.permute.xlu0 3
        %2044 = vperm.xlu0 %2043, %v1565
        %v2045 = vpop.permute.xlu0 %2044
        %v2047 = vlaneseq
        %v2048 = vshrl.u32 %v2047, 7
        %v2049 = vsub.s32 0, %v2048
        %v2050 = vrot.slane %v1982, %v2049
        %v2051 = vmul.f32 %v1985, %v2050
        %v2052 = vmul.f32 %v1989, %v2050
        %v2053 = vmul.f32 %v1993, %v2050
        %v2054 = vmul.f32 %v1997, %v2050
        %v2055 = vmul.f32 %v2001, %v2050
        %v2056 = vmul.f32 %v2005, %v2050
        %v2057 = vmul.f32 %v2009, %v2050
        %v2058 = vmul.f32 %v2013, %v2050
        %v2059 = vmul.f32 %v2017, %v2050
        %v2060 = vmul.f32 %v2021, %v2050
        %v2061 = vmul.f32 %v2025, %v2050
        %v2062 = vmul.f32 %v2029, %v2050
        %v2063 = vmul.f32 %v2033, %v2050
        %v2064 = vmul.f32 %v2037, %v2050
        %v2065 = vmul.f32 %v2041, %v2050
        %v2066 = vmul.f32 %v2045, %v2050
        %v2067 = vadd.f32 %v1966, %v2051
        %v2068 = vadd.f32 %v1967, %v2052
        %v2069 = vadd.f32 %v1968, %v2053
        %v2070 = vadd.f32 %v1969, %v2054
        %v2071 = vadd.f32 %v1970, %v2055
        %v2072 = vadd.f32 %v1971, %v2056
        %v2073 = vadd.f32 %v1972, %v2057
        %v2074 = vadd.f32 %v1973, %v2058
        %v2075 = vadd.f32 %v1974, %v2059
        %v2076 = vadd.f32 %v1975, %v2060
        %v2077 = vadd.f32 %v1976, %v2061
        %v2078 = vadd.f32 %v1977, %v2062
        %v2079 = vadd.f32 %v1978, %v2063
        %v2080 = vadd.f32 %v1979, %v2064
        %v2081 = vadd.f32 %v1980, %v2065
        %v2082 = vadd.f32 %v1981, %v2066
        %2084 = vset.pattern.permute.xlu0 0
        %2085 = vperm.xlu0 %2084, %v1455
        %v2086 = vpop.permute.xlu0 %2085
        %v2088 = vlaneseq
        %v2089 = vshrl.u32 %v2088, 7
        %v2090 = vsub.s32 0, %v2089
        %v2091 = vrot.slane %v2086, %v2090
        %2093 = vset.pattern.permute.xlu0 0
        %2094 = vperm.xlu0 %2093, %v1457
        %v2095 = vpop.permute.xlu0 %2094
        %v2097 = vlaneseq
        %v2098 = vshrl.u32 %v2097, 7
        %v2099 = vsub.s32 0, %v2098
        %v2100 = vrot.slane %v2095, %v2099
        %2102 = vset.pattern.permute.xlu0 0
        %2103 = vperm.xlu0 %2102, %v1459
        %v2104 = vpop.permute.xlu0 %2103
        %v2106 = vlaneseq
        %v2107 = vshrl.u32 %v2106, 7
        %v2108 = vsub.s32 0, %v2107
        %v2109 = vrot.slane %v2104, %v2108
        %2111 = vset.pattern.permute.xlu0 0
        %2112 = vperm.xlu0 %2111, %v1461
        %v2113 = vpop.permute.xlu0 %2112
        %v2115 = vlaneseq
        %v2116 = vshrl.u32 %v2115, 7
        %v2117 = vsub.s32 0, %v2116
        %v2118 = vrot.slane %v2113, %v2117
        %2120 = vset.pattern.permute.xlu0 0
        %2121 = vperm.xlu0 %2120, %v1463
        %v2122 = vpop.permute.xlu0 %2121
        %v2124 = vlaneseq
        %v2125 = vshrl.u32 %v2124, 7
        %v2126 = vsub.s32 0, %v2125
        %v2127 = vrot.slane %v2122, %v2126
        %2129 = vset.pattern.permute.xlu0 0
        %2130 = vperm.xlu0 %2129, %v1465
        %v2131 = vpop.permute.xlu0 %2130
        %v2133 = vlaneseq
        %v2134 = vshrl.u32 %v2133, 7
        %v2135 = vsub.s32 0, %v2134
        %v2136 = vrot.slane %v2131, %v2135
        %2138 = vset.pattern.permute.xlu0 0
        %2139 = vperm.xlu0 %2138, %v1467
        %v2140 = vpop.permute.xlu0 %2139
        %v2142 = vlaneseq
        %v2143 = vshrl.u32 %v2142, 7
        %v2144 = vsub.s32 0, %v2143
        %v2145 = vrot.slane %v2140, %v2144
        %2147 = vset.pattern.permute.xlu0 0
        %2148 = vperm.xlu0 %2147, %v1469
        %v2149 = vpop.permute.xlu0 %2148
        %v2151 = vlaneseq
        %v2152 = vshrl.u32 %v2151, 7
        %v2153 = vsub.s32 0, %v2152
        %v2154 = vrot.slane %v2149, %v2153
        %v2156 = vcombine.high %v1763, %v1763
        %v2158 = vunpack.c.l.s4 1966171168
        %v2159 = vunpack.c.0.s8 %v2158
        %v2160 = vlaneseq
        %v2161 = vshrl.u32 %v2160, 7
        %v2162 = vsub.s32 %v2159, %v2161
        %v2163 = vrot.slane %v1763, %v2162
        %v2165 = vunpack.c.l.s4 1966171168
        %v2166 = vunpack.c.0.s8 %v2165
        %v2167 = vlaneseq
        %v2168 = vshrl.u32 %v2167, 7
        %v2169 = vsub.s32 %v2166, %v2168
        %v2170 = vrot.slane %v2156, %v2169
        %v2171 = vcombine.high %v2163, %v2163
        %v2172 = vcombine.high %v2170, %v2170
        %v2174 = vunpack.c.l.s4 1966171168
        %v2175 = vunpack.c.0.s8 %v2174
        %v2176 = vlaneseq
        %v2177 = vshrl.u32 %v2176, 7
        %v2178 = vsub.s32 %v2175, %v2177
        %v2179 = vrot.slane %v2163, %v2178
        %v2181 = vunpack.c.l.s4 1966171168
        %v2182 = vunpack.c.0.s8 %v2181
        %v2183 = vlaneseq
        %v2184 = vshrl.u32 %v2183, 7
        %v2185 = vsub.s32 %v2182, %v2184
        %v2186 = vrot.slane %v2170, %v2185
        %v2188 = vunpack.c.l.s4 1966171168
        %v2189 = vunpack.c.0.s8 %v2188
        %v2190 = vlaneseq
        %v2191 = vshrl.u32 %v2190, 7
        %v2192 = vsub.s32 %v2189, %v2191
        %v2193 = vrot.slane %v2171, %v2192
        %v2195 = vunpack.c.l.s4 1966171168
        %v2196 = vunpack.c.0.s8 %v2195
        %v2197 = vlaneseq
        %v2198 = vshrl.u32 %v2197, 7
        %v2199 = vsub.s32 %v2196, %v2198
        %v2200 = vrot.slane %v2172, %v2199
        %v2201 = vcombine.high %v2179, %v2179
        %v2202 = vcombine.high %v2186, %v2186
        %v2203 = vcombine.high %v2193, %v2193
        %v2204 = vcombine.high %v2200, %v2200
        %v2213 = vmul.f32 %v2091, %v2179
        %v2214 = vmul.f32 %v2100, %v2193
        %v2215 = vmul.f32 %v2109, %v2201
        %v2216 = vmul.f32 %v2118, %v2203
        %v2217 = vmul.f32 %v2127, %v2186
        %v2218 = vmul.f32 %v2136, %v2200
        %v2219 = vmul.f32 %v2145, %v2202
        %v2220 = vmul.f32 %v2154, %v2204
        %2221 = vset.pattern.permute.xlu0 1
        %2222 = vperm.xlu0 %2221, %v1455
        %v2223 = vpop.permute.xlu0 %2222
        %v2225 = vlaneseq
        %v2226 = vshrl.u32 %v2225, 7
        %v2227 = vsub.s32 0, %v2226
        %v2228 = vrot.slane %v2223, %v2227
        %2229 = vset.pattern.permute.xlu0 1
        %2230 = vperm.xlu0 %2229, %v1457
        %v2231 = vpop.permute.xlu0 %2230
        %v2233 = vlaneseq
        %v2234 = vshrl.u32 %v2233, 7
        %v2235 = vsub.s32 0, %v2234
        %v2236 = vrot.slane %v2231, %v2235
        %2237 = vset.pattern.permute.xlu0 1
        %2238 = vperm.xlu0 %2237, %v1459
        %v2239 = vpop.permute.xlu0 %2238
        %v2241 = vlaneseq
        %v2242 = vshrl.u32 %v2241, 7
        %v2243 = vsub.s32 0, %v2242
        %v2244 = vrot.slane %v2239, %v2243
        %2245 = vset.pattern.permute.xlu0 1
        %2246 = vperm.xlu0 %2245, %v1461
        %v2247 = vpop.permute.xlu0 %2246
        %v2249 = vlaneseq
        %v2250 = vshrl.u32 %v2249, 7
        %v2251 = vsub.s32 0, %v2250
        %v2252 = vrot.slane %v2247, %v2251
        %2253 = vset.pattern.permute.xlu0 1
        %2254 = vperm.xlu0 %2253, %v1463
        %v2255 = vpop.permute.xlu0 %2254
        %v2257 = vlaneseq
        %v2258 = vshrl.u32 %v2257, 7
        %v2259 = vsub.s32 0, %v2258
        %v2260 = vrot.slane %v2255, %v2259
        %2261 = vset.pattern.permute.xlu0 1
        %2262 = vperm.xlu0 %2261, %v1465
        %v2263 = vpop.permute.xlu0 %2262
        %v2265 = vlaneseq
        %v2266 = vshrl.u32 %v2265, 7
        %v2267 = vsub.s32 0, %v2266
        %v2268 = vrot.slane %v2263, %v2267
        %2269 = vset.pattern.permute.xlu0 1
        %2270 = vperm.xlu0 %2269, %v1467
        %v2271 = vpop.permute.xlu0 %2270
        %v2273 = vlaneseq
        %v2274 = vshrl.u32 %v2273, 7
        %v2275 = vsub.s32 0, %v2274
        %v2276 = vrot.slane %v2271, %v2275
        %2277 = vset.pattern.permute.xlu0 1
        %2278 = vperm.xlu0 %2277, %v1469
        %v2279 = vpop.permute.xlu0 %2278
        %v2281 = vlaneseq
        %v2282 = vshrl.u32 %v2281, 7
        %v2283 = vsub.s32 0, %v2282
        %v2284 = vrot.slane %v2279, %v2283
        %v2286 = vcombine.high %v1848, %v1848
        %v2288 = vunpack.c.l.s4 1966171168
        %v2289 = vunpack.c.0.s8 %v2288
        %v2290 = vlaneseq
        %v2291 = vshrl.u32 %v2290, 7
        %v2292 = vsub.s32 %v2289, %v2291
        %v2293 = vrot.slane %v1848, %v2292
        %v2295 = vunpack.c.l.s4 1966171168
        %v2296 = vunpack.c.0.s8 %v2295
        %v2297 = vlaneseq
        %v2298 = vshrl.u32 %v2297, 7
        %v2299 = vsub.s32 %v2296, %v2298
        %v2300 = vrot.slane %v2286, %v2299
        %v2301 = vcombine.high %v2293, %v2293
        %v2302 = vcombine.high %v2300, %v2300
        %v2304 = vunpack.c.l.s4 1966171168
        %v2305 = vunpack.c.0.s8 %v2304
        %v2306 = vlaneseq
        %v2307 = vshrl.u32 %v2306, 7
        %v2308 = vsub.s32 %v2305, %v2307
        %v2309 = vrot.slane %v2293, %v2308
        %v2311 = vunpack.c.l.s4 1966171168
        %v2312 = vunpack.c.0.s8 %v2311
        %v2313 = vlaneseq
        %v2314 = vshrl.u32 %v2313, 7
        %v2315 = vsub.s32 %v2312, %v2314
        %v2316 = vrot.slane %v2300, %v2315
        %v2318 = vunpack.c.l.s4 1966171168
        %v2319 = vunpack.c.0.s8 %v2318
        %v2320 = vlaneseq
        %v2321 = vshrl.u32 %v2320, 7
        %v2322 = vsub.s32 %v2319, %v2321
        %v2323 = vrot.slane %v2301, %v2322
        %v2325 = vunpack.c.l.s4 1966171168
        %v2326 = vunpack.c.0.s8 %v2325
        %v2327 = vlaneseq
        %v2328 = vshrl.u32 %v2327, 7
        %v2329 = vsub.s32 %v2326, %v2328
        %v2330 = vrot.slane %v2302, %v2329
        %v2331 = vcombine.high %v2309, %v2309
        %v2332 = vcombine.high %v2316, %v2316
        %v2333 = vcombine.high %v2323, %v2323
        %v2334 = vcombine.high %v2330, %v2330
        %v2343 = vmul.f32 %v2228, %v2309
        %v2344 = vmul.f32 %v2236, %v2323
        %v2345 = vmul.f32 %v2244, %v2331
        %v2346 = vmul.f32 %v2252, %v2333
        %v2347 = vmul.f32 %v2260, %v2316
        %v2348 = vmul.f32 %v2268, %v2330
        %v2349 = vmul.f32 %v2276, %v2332
        %v2350 = vmul.f32 %v2284, %v2334
        %v2351 = vadd.f32 %v2213, %v2343
        %v2352 = vadd.f32 %v2214, %v2344
        %v2353 = vadd.f32 %v2215, %v2345
        %v2354 = vadd.f32 %v2216, %v2346
        %v2355 = vadd.f32 %v2217, %v2347
        %v2356 = vadd.f32 %v2218, %v2348
        %v2357 = vadd.f32 %v2219, %v2349
        %v2358 = vadd.f32 %v2220, %v2350
        %2359 = vset.pattern.permute.xlu0 2
        %2360 = vperm.xlu0 %2359, %v1455
        %v2361 = vpop.permute.xlu0 %2360
        %v2363 = vlaneseq
        %v2364 = vshrl.u32 %v2363, 7
        %v2365 = vsub.s32 0, %v2364
        %v2366 = vrot.slane %v2361, %v2365
        %2367 = vset.pattern.permute.xlu0 2
        %2368 = vperm.xlu0 %2367, %v1457
        %v2369 = vpop.permute.xlu0 %2368
        %v2371 = vlaneseq
        %v2372 = vshrl.u32 %v2371, 7
        %v2373 = vsub.s32 0, %v2372
        %v2374 = vrot.slane %v2369, %v2373
        %2375 = vset.pattern.permute.xlu0 2
        %2376 = vperm.xlu0 %2375, %v1459
        %v2377 = vpop.permute.xlu0 %2376
        %v2379 = vlaneseq
        %v2380 = vshrl.u32 %v2379, 7
        %v2381 = vsub.s32 0, %v2380
        %v2382 = vrot.slane %v2377, %v2381
        %2383 = vset.pattern.permute.xlu0 2
        %2384 = vperm.xlu0 %2383, %v1461
        %v2385 = vpop.permute.xlu0 %2384
        %v2387 = vlaneseq
        %v2388 = vshrl.u32 %v2387, 7
        %v2389 = vsub.s32 0, %v2388
        %v2390 = vrot.slane %v2385, %v2389
        %2391 = vset.pattern.permute.xlu0 2
        %2392 = vperm.xlu0 %2391, %v1463
        %v2393 = vpop.permute.xlu0 %2392
        %v2395 = vlaneseq
        %v2396 = vshrl.u32 %v2395, 7
        %v2397 = vsub.s32 0, %v2396
        %v2398 = vrot.slane %v2393, %v2397
        %2399 = vset.pattern.permute.xlu0 2
        %2400 = vperm.xlu0 %2399, %v1465
        %v2401 = vpop.permute.xlu0 %2400
        %v2403 = vlaneseq
        %v2404 = vshrl.u32 %v2403, 7
        %v2405 = vsub.s32 0, %v2404
        %v2406 = vrot.slane %v2401, %v2405
        %2407 = vset.pattern.permute.xlu0 2
        %2408 = vperm.xlu0 %2407, %v1467
        %v2409 = vpop.permute.xlu0 %2408
        %v2411 = vlaneseq
        %v2412 = vshrl.u32 %v2411, 7
        %v2413 = vsub.s32 0, %v2412
        %v2414 = vrot.slane %v2409, %v2413
        %2415 = vset.pattern.permute.xlu0 2
        %2416 = vperm.xlu0 %2415, %v1469
        %v2417 = vpop.permute.xlu0 %2416
        %v2419 = vlaneseq
        %v2420 = vshrl.u32 %v2419, 7
        %v2421 = vsub.s32 0, %v2420
        %v2422 = vrot.slane %v2417, %v2421
        %v2424 = vcombine.high %v1949, %v1949
        %v2426 = vunpack.c.l.s4 1966171168
        %v2427 = vunpack.c.0.s8 %v2426
        %v2428 = vlaneseq
        %v2429 = vshrl.u32 %v2428, 7
        %v2430 = vsub.s32 %v2427, %v2429
        %v2431 = vrot.slane %v1949, %v2430
        %v2433 = vunpack.c.l.s4 1966171168
        %v2434 = vunpack.c.0.s8 %v2433
        %v2435 = vlaneseq
        %v2436 = vshrl.u32 %v2435, 7
        %v2437 = vsub.s32 %v2434, %v2436
        %v2438 = vrot.slane %v2424, %v2437
        %v2439 = vcombine.high %v2431, %v2431
        %v2440 = vcombine.high %v2438, %v2438
        %v2442 = vunpack.c.l.s4 1966171168
        %v2443 = vunpack.c.0.s8 %v2442
        %v2444 = vlaneseq
        %v2445 = vshrl.u32 %v2444, 7
        %v2446 = vsub.s32 %v2443, %v2445
        %v2447 = vrot.slane %v2431, %v2446
        %v2449 = vunpack.c.l.s4 1966171168
        %v2450 = vunpack.c.0.s8 %v2449
        %v2451 = vlaneseq
        %v2452 = vshrl.u32 %v2451, 7
        %v2453 = vsub.s32 %v2450, %v2452
        %v2454 = vrot.slane %v2438, %v2453
        %v2456 = vunpack.c.l.s4 1966171168
        %v2457 = vunpack.c.0.s8 %v2456
        %v2458 = vlaneseq
        %v2459 = vshrl.u32 %v2458, 7
        %v2460 = vsub.s32 %v2457, %v2459
        %v2461 = vrot.slane %v2439, %v2460
        %v2463 = vunpack.c.l.s4 1966171168
        %v2464 = vunpack.c.0.s8 %v2463
        %v2465 = vlaneseq
        %v2466 = vshrl.u32 %v2465, 7
        %v2467 = vsub.s32 %v2464, %v2466
        %v2468 = vrot.slane %v2440, %v2467
        %v2469 = vcombine.high %v2447, %v2447
        %v2470 = vcombine.high %v2454, %v2454
        %v2471 = vcombine.high %v2461, %v2461
        %v2472 = vcombine.high %v2468, %v2468
        %v2481 = vmul.f32 %v2366, %v2447
        %v2482 = vmul.f32 %v2374, %v2461
        %v2483 = vmul.f32 %v2382, %v2469
        %v2484 = vmul.f32 %v2390, %v2471
        %v2485 = vmul.f32 %v2398, %v2454
        %v2486 = vmul.f32 %v2406, %v2468
        %v2487 = vmul.f32 %v2414, %v2470
        %v2488 = vmul.f32 %v2422, %v2472
        %v2489 = vadd.f32 %v2351, %v2481
        %v2490 = vadd.f32 %v2352, %v2482
        %v2491 = vadd.f32 %v2353, %v2483
        %v2492 = vadd.f32 %v2354, %v2484
        %v2493 = vadd.f32 %v2355, %v2485
        %v2494 = vadd.f32 %v2356, %v2486
        %v2495 = vadd.f32 %v2357, %v2487
        %v2496 = vadd.f32 %v2358, %v2488
        %2497 = vset.pattern.permute.xlu0 3
        %2498 = vperm.xlu0 %2497, %v1455
        %v2499 = vpop.permute.xlu0 %2498
        %v2501 = vlaneseq
        %v2502 = vshrl.u32 %v2501, 7
        %v2503 = vsub.s32 0, %v2502
        %v2504 = vrot.slane %v2499, %v2503
        %2505 = vset.pattern.permute.xlu0 3
        %2506 = vperm.xlu0 %2505, %v1457
        %v2507 = vpop.permute.xlu0 %2506
        %v2509 = vlaneseq
        %v2510 = vshrl.u32 %v2509, 7
        %v2511 = vsub.s32 0, %v2510
        %v2512 = vrot.slane %v2507, %v2511
        %2513 = vset.pattern.permute.xlu0 3
        %2514 = vperm.xlu0 %2513, %v1459
        %v2515 = vpop.permute.xlu0 %2514
        %v2517 = vlaneseq
        %v2518 = vshrl.u32 %v2517, 7
        %v2519 = vsub.s32 0, %v2518
        %v2520 = vrot.slane %v2515, %v2519
        %2521 = vset.pattern.permute.xlu0 3
        %2522 = vperm.xlu0 %2521, %v1461
        %v2523 = vpop.permute.xlu0 %2522
        %v2525 = vlaneseq
        %v2526 = vshrl.u32 %v2525, 7
        %v2527 = vsub.s32 0, %v2526
        %v2528 = vrot.slane %v2523, %v2527
        %2529 = vset.pattern.permute.xlu0 3
        %2530 = vperm.xlu0 %2529, %v1463
        %v2531 = vpop.permute.xlu0 %2530
        %v2533 = vlaneseq
        %v2534 = vshrl.u32 %v2533, 7
        %v2535 = vsub.s32 0, %v2534
        %v2536 = vrot.slane %v2531, %v2535
        %2537 = vset.pattern.permute.xlu0 3
        %2538 = vperm.xlu0 %2537, %v1465
        %v2539 = vpop.permute.xlu0 %2538
        %v2541 = vlaneseq
        %v2542 = vshrl.u32 %v2541, 7
        %v2543 = vsub.s32 0, %v2542
        %v2544 = vrot.slane %v2539, %v2543
        %2545 = vset.pattern.permute.xlu0 3
        %2546 = vperm.xlu0 %2545, %v1467
        %v2547 = vpop.permute.xlu0 %2546
        %v2549 = vlaneseq
        %v2550 = vshrl.u32 %v2549, 7
        %v2551 = vsub.s32 0, %v2550
        %v2552 = vrot.slane %v2547, %v2551
        %2553 = vset.pattern.permute.xlu0 3
        %2554 = vperm.xlu0 %2553, %v1469
        %v2555 = vpop.permute.xlu0 %2554
        %v2557 = vlaneseq
        %v2558 = vshrl.u32 %v2557, 7
        %v2559 = vsub.s32 0, %v2558
        %v2560 = vrot.slane %v2555, %v2559
        %v2562 = vcombine.high %v2050, %v2050
        %v2564 = vunpack.c.l.s4 1966171168
        %v2565 = vunpack.c.0.s8 %v2564
        %v2566 = vlaneseq
        %v2567 = vshrl.u32 %v2566, 7
        %v2568 = vsub.s32 %v2565, %v2567
        %v2569 = vrot.slane %v2050, %v2568
        %v2571 = vunpack.c.l.s4 1966171168
        %v2572 = vunpack.c.0.s8 %v2571
        %v2573 = vlaneseq
        %v2574 = vshrl.u32 %v2573, 7
        %v2575 = vsub.s32 %v2572, %v2574
        %v2576 = vrot.slane %v2562, %v2575
        %v2577 = vcombine.high %v2569, %v2569
        %v2578 = vcombine.high %v2576, %v2576
        %v2580 = vunpack.c.l.s4 1966171168
        %v2581 = vunpack.c.0.s8 %v2580
        %v2582 = vlaneseq
        %v2583 = vshrl.u32 %v2582, 7
        %v2584 = vsub.s32 %v2581, %v2583
        %v2585 = vrot.slane %v2569, %v2584
        %v2587 = vunpack.c.l.s4 1966171168
        %v2588 = vunpack.c.0.s8 %v2587
        %v2589 = vlaneseq
        %v2590 = vshrl.u32 %v2589, 7
        %v2591 = vsub.s32 %v2588, %v2590
        %v2592 = vrot.slane %v2576, %v2591
        %v2594 = vunpack.c.l.s4 1966171168
        %v2595 = vunpack.c.0.s8 %v2594
        %v2596 = vlaneseq
        %v2597 = vshrl.u32 %v2596, 7
        %v2598 = vsub.s32 %v2595, %v2597
        %v2599 = vrot.slane %v2577, %v2598
        %v2601 = vunpack.c.l.s4 1966171168
        %v2602 = vunpack.c.0.s8 %v2601
        %v2603 = vlaneseq
        %v2604 = vshrl.u32 %v2603, 7
        %v2605 = vsub.s32 %v2602, %v2604
        %v2606 = vrot.slane %v2578, %v2605
        %v2607 = vcombine.high %v2585, %v2585
        %v2608 = vcombine.high %v2592, %v2592
        %v2609 = vcombine.high %v2599, %v2599
        %v2610 = vcombine.high %v2606, %v2606
        %v2619 = vmul.f32 %v2504, %v2585
        %v2620 = vmul.f32 %v2512, %v2599
        %v2621 = vmul.f32 %v2520, %v2607
        %v2622 = vmul.f32 %v2528, %v2609
        %v2623 = vmul.f32 %v2536, %v2592
        %v2624 = vmul.f32 %v2544, %v2606
        %v2625 = vmul.f32 %v2552, %v2608
        %v2626 = vmul.f32 %v2560, %v2610
        %v2627 = vadd.f32 %v2489, %v2619
        %v2628 = vadd.f32 %v2490, %v2620
        %v2629 = vadd.f32 %v2491, %v2621
        %v2630 = vadd.f32 %v2492, %v2622
        %v2631 = vadd.f32 %v2493, %v2623
        %v2632 = vadd.f32 %v2494, %v2624
        %v2633 = vadd.f32 %v2495, %v2625
        %v2634 = vadd.f32 %v2496, %v2626
        %v2635 = vld [vmem:[#allocation5] sm:$0xff]
        %v2637 = vcombine.high %v2635, %v2635
        %v2639 = vunpack.c.l.s4 1966171168
        %v2640 = vunpack.c.0.s8 %v2639
        %v2641 = vlaneseq
        %v2642 = vshrl.u32 %v2641, 7
        %v2643 = vsub.s32 %v2640, %v2642
        %v2644 = vrot.slane %v2635, %v2643
        %v2646 = vunpack.c.l.s4 1966171168
        %v2647 = vunpack.c.0.s8 %v2646
        %v2648 = vlaneseq
        %v2649 = vshrl.u32 %v2648, 7
        %v2650 = vsub.s32 %v2647, %v2649
        %v2651 = vrot.slane %v2637, %v2650
        %v2652 = vcombine.high %v2644, %v2644
        %v2653 = vcombine.high %v2651, %v2651
        %v2655 = vunpack.c.l.s4 1966171168
        %v2656 = vunpack.c.0.s8 %v2655
        %v2657 = vlaneseq
        %v2658 = vshrl.u32 %v2657, 7
        %v2659 = vsub.s32 %v2656, %v2658
        %v2660 = vrot.slane %v2644, %v2659
        %v2662 = vunpack.c.l.s4 1966171168
        %v2663 = vunpack.c.0.s8 %v2662
        %v2664 = vlaneseq
        %v2665 = vshrl.u32 %v2664, 7
        %v2666 = vsub.s32 %v2663, %v2665
        %v2667 = vrot.slane %v2651, %v2666
        %v2669 = vunpack.c.l.s4 1966171168
        %v2670 = vunpack.c.0.s8 %v2669
        %v2671 = vlaneseq
        %v2672 = vshrl.u32 %v2671, 7
        %v2673 = vsub.s32 %v2670, %v2672
        %v2674 = vrot.slane %v2652, %v2673
        %v2676 = vunpack.c.l.s4 1966171168
        %v2677 = vunpack.c.0.s8 %v2676
        %v2678 = vlaneseq
        %v2679 = vshrl.u32 %v2678, 7
        %v2680 = vsub.s32 %v2677, %v2679
        %v2681 = vrot.slane %v2653, %v2680
        %v2682 = vcombine.high %v2660, %v2660
        %v2683 = vcombine.high %v2667, %v2667
        %v2684 = vcombine.high %v2674, %v2674
        %v2685 = vcombine.high %v2681, %v2681
        %v2694 = vmul.f32 %v2627, %v2660
        %v2695 = vmul.f32 %v2628, %v2674
        %v2696 = vmul.f32 %v2629, %v2682
        %v2697 = vmul.f32 %v2630, %v2684
        %v2698 = vmul.f32 %v2631, %v2667
        %v2699 = vmul.f32 %v2632, %v2681
        %v2700 = vmul.f32 %v2633, %v2683
        %v2701 = vmul.f32 %v2634, %v2685
        %v2702 = vmul.f32 %v2067, %v877
        %v2703 = vmul.f32 %v2068, %v881
        %v2704 = vmul.f32 %v2069, %v887
        %v2705 = vmul.f32 %v2070, %v891
        %v2706 = vmul.f32 %v2071, %v897
        %v2707 = vmul.f32 %v2072, %v901
        %v2708 = vmul.f32 %v2073, %v907
        %v2709 = vmul.f32 %v2074, %v911
        %v2710 = vmul.f32 %v2075, %v917
        %v2711 = vmul.f32 %v2076, %v921
        %v2712 = vmul.f32 %v2077, %v927
        %v2713 = vmul.f32 %v2078, %v931
        %v2714 = vmul.f32 %v2079, %v937
        %v2715 = vmul.f32 %v2080, %v941
        %v2716 = vmul.f32 %v2081, %v947
        %v2717 = vmul.f32 %v2082, %v951
        %v2718 = vadd.f32 %v2702, %v2703
        %v2719 = vrot.slane %v2718, 4
        %v2720 = vadd.f32 %v2718, %v2719
        %v2721 = vrot.slane %v2720, 2
        %v2722 = vadd.f32 %v2720, %v2721
        %v2723 = vrot.slane %v2722, 1
        %v2724 = vadd.f32 %v2722, %v2723
        %v2725 = vadd.f32 %v2704, %v2705
        %v2726 = vrot.slane %v2725, 4
        %v2727 = vadd.f32 %v2725, %v2726
        %v2728 = vrot.slane %v2727, 2
        %v2729 = vadd.f32 %v2727, %v2728
        %v2730 = vrot.slane %v2729, 1
        %v2731 = vadd.f32 %v2729, %v2730
        %v2732 = vadd.f32 %v2706, %v2707
        %v2733 = vrot.slane %v2732, 4
        %v2734 = vadd.f32 %v2732, %v2733
        %v2735 = vrot.slane %v2734, 2
        %v2736 = vadd.f32 %v2734, %v2735
        %v2737 = vrot.slane %v2736, 1
        %v2738 = vadd.f32 %v2736, %v2737
        %v2739 = vadd.f32 %v2708, %v2709
        %v2740 = vrot.slane %v2739, 4
        %v2741 = vadd.f32 %v2739, %v2740
        %v2742 = vrot.slane %v2741, 2
        %v2743 = vadd.f32 %v2741, %v2742
        %v2744 = vrot.slane %v2743, 1
        %v2745 = vadd.f32 %v2743, %v2744
        %v2746 = vadd.f32 %v2710, %v2711
        %v2747 = vrot.slane %v2746, 4
        %v2748 = vadd.f32 %v2746, %v2747
        %v2749 = vrot.slane %v2748, 2
        %v2750 = vadd.f32 %v2748, %v2749
        %v2751 = vrot.slane %v2750, 1
        %v2752 = vadd.f32 %v2750, %v2751
        %v2753 = vadd.f32 %v2712, %v2713
        %v2754 = vrot.slane %v2753, 4
        %v2755 = vadd.f32 %v2753, %v2754
        %v2756 = vrot.slane %v2755, 2
        %v2757 = vadd.f32 %v2755, %v2756
        %v2758 = vrot.slane %v2757, 1
        %v2759 = vadd.f32 %v2757, %v2758
        %v2760 = vadd.f32 %v2714, %v2715
        %v2761 = vrot.slane %v2760, 4
        %v2762 = vadd.f32 %v2760, %v2761
        %v2763 = vrot.slane %v2762, 2
        %v2764 = vadd.f32 %v2762, %v2763
        %v2765 = vrot.slane %v2764, 1
        %v2766 = vadd.f32 %v2764, %v2765
        %v2767 = vadd.f32 %v2716, %v2717
        %v2768 = vrot.slane %v2767, 4
        %v2769 = vadd.f32 %v2767, %v2768
        %v2770 = vrot.slane %v2769, 2
        %v2771 = vadd.f32 %v2769, %v2770
        %v2772 = vrot.slane %v2771, 1
        %v2773 = vadd.f32 %v2771, %v2772
        %v2783 = vunpack.c.l.s4 1966171168
        %v2784 = vunpack.c.0.s8 %v2783
        %v2785 = vlaneseq
        %v2786 = vshrl.u32 %v2785, 7
        %v2787 = vsub.s32 %v2784, %v2786
        %v2788 = vrot.slane %v2724, %v2787
        %v2790 = vunpack.c.l.s4 1966171168
        %v2791 = vunpack.c.0.s8 %v2790
        %v2792 = vlaneseq
        %v2793 = vshrl.u32 %v2792, 7
        %v2794 = vsub.s32 %v2791, %v2793
        %v2795 = vrot.slane %v2788, %v2794
        %v2797 = vunpack.c.l.s4 1966171168
        %v2798 = vunpack.c.0.s8 %v2797
        %v2799 = vlaneseq
        %v2800 = vshrl.u32 %v2799, 7
        %v2801 = vsub.s32 %v2798, %v2800
        %v2802 = vrot.slane %v2731, %v2801
        %v2804 = vunpack.c.l.s4 1966171168
        %v2805 = vunpack.c.0.s8 %v2804
        %v2806 = vlaneseq
        %v2807 = vshrl.u32 %v2806, 7
        %v2808 = vsub.s32 %v2805, %v2807
        %v2809 = vrot.slane %v2802, %v2808
        %v2811 = vunpack.c.l.s4 1966171168
        %v2812 = vunpack.c.0.s8 %v2811
        %v2813 = vlaneseq
        %v2814 = vshrl.u32 %v2813, 7
        %v2815 = vsub.s32 %v2812, %v2814
        %v2816 = vrot.slane %v2738, %v2815
        %v2818 = vunpack.c.l.s4 1966171168
        %v2819 = vunpack.c.0.s8 %v2818
        %v2820 = vlaneseq
        %v2821 = vshrl.u32 %v2820, 7
        %v2822 = vsub.s32 %v2819, %v2821
        %v2823 = vrot.slane %v2816, %v2822
        %v2825 = vunpack.c.l.s4 1966171168
        %v2826 = vunpack.c.0.s8 %v2825
        %v2827 = vlaneseq
        %v2828 = vshrl.u32 %v2827, 7
        %v2829 = vsub.s32 %v2826, %v2828
        %v2830 = vrot.slane %v2745, %v2829
        %v2832 = vunpack.c.l.s4 1966171168
        %v2833 = vunpack.c.0.s8 %v2832
        %v2834 = vlaneseq
        %v2835 = vshrl.u32 %v2834, 7
        %v2836 = vsub.s32 %v2833, %v2835
        %v2837 = vrot.slane %v2830, %v2836
        %v2839 = vunpack.c.l.s4 1966171168
        %v2840 = vunpack.c.0.s8 %v2839
        %v2841 = vlaneseq
        %v2842 = vshrl.u32 %v2841, 7
        %v2843 = vsub.s32 %v2840, %v2842
        %v2844 = vrot.slane %v2752, %v2843
        %v2846 = vunpack.c.l.s4 1966171168
        %v2847 = vunpack.c.0.s8 %v2846
        %v2848 = vlaneseq
        %v2849 = vshrl.u32 %v2848, 7
        %v2850 = vsub.s32 %v2847, %v2849
        %v2851 = vrot.slane %v2844, %v2850
        %v2853 = vunpack.c.l.s4 1966171168
        %v2854 = vunpack.c.0.s8 %v2853
        %v2855 = vlaneseq
        %v2856 = vshrl.u32 %v2855, 7
        %v2857 = vsub.s32 %v2854, %v2856
        %v2858 = vrot.slane %v2759, %v2857
        %v2860 = vunpack.c.l.s4 1966171168
        %v2861 = vunpack.c.0.s8 %v2860
        %v2862 = vlaneseq
        %v2863 = vshrl.u32 %v2862, 7
        %v2864 = vsub.s32 %v2861, %v2863
        %v2865 = vrot.slane %v2858, %v2864
        %v2867 = vunpack.c.l.s4 1966171168
        %v2868 = vunpack.c.0.s8 %v2867
        %v2869 = vlaneseq
        %v2870 = vshrl.u32 %v2869, 7
        %v2871 = vsub.s32 %v2868, %v2870
        %v2872 = vrot.slane %v2766, %v2871
        %v2874 = vunpack.c.l.s4 1966171168
        %v2875 = vunpack.c.0.s8 %v2874
        %v2876 = vlaneseq
        %v2877 = vshrl.u32 %v2876, 7
        %v2878 = vsub.s32 %v2875, %v2877
        %v2879 = vrot.slane %v2872, %v2878
        %v2881 = vunpack.c.l.s4 1966171168
        %v2882 = vunpack.c.0.s8 %v2881
        %v2883 = vlaneseq
        %v2884 = vshrl.u32 %v2883, 7
        %v2885 = vsub.s32 %v2882, %v2884
        %v2886 = vrot.slane %v2773, %v2885
        %v2888 = vunpack.c.l.s4 1966171168
        %v2889 = vunpack.c.0.s8 %v2888
        %v2890 = vlaneseq
        %v2891 = vshrl.u32 %v2890, 7
        %v2892 = vsub.s32 %v2889, %v2891
        %v2893 = vrot.slane %v2886, %v2892
        %v2902 = vadd.f32 %v2694, %v2795
        %v2903 = vadd.f32 %v2695, %v2809
        %v2904 = vadd.f32 %v2696, %v2823
        %v2905 = vadd.f32 %v2697, %v2837
        %v2906 = vadd.f32 %v2698, %v2851
        %v2907 = vadd.f32 %v2699, %v2865
        %v2908 = vadd.f32 %v2700, %v2879
        %v2909 = vadd.f32 %v2701, %v2893
        %v2918 = vcombine.low %v2902, %v2903
        %v2919 = vcombine.low %v2904, %v2905
        %v2920 = vcombine.low %v2906, %v2907
        %v2921 = vcombine.low %v2908, %v2909
        %v2923 = vunpack.c.l.s4 1966171168
        %v2924 = vunpack.c.0.s8 %v2923
        %v2925 = vlaneseq
        %v2926 = vshrl.u32 %v2925, 7
        %v2927 = vsub.s32 %v2924, %v2926
        %v2928 = vrot.slane %v2918, %v2927
        %v2930 = vunpack.c.l.s4 1966171168
        %v2931 = vunpack.c.0.s8 %v2930
        %v2932 = vlaneseq
        %v2933 = vshrl.u32 %v2932, 7
        %v2934 = vsub.s32 %v2931, %v2933
        %v2935 = vrot.slane %v2919, %v2934
        %v2937 = vunpack.c.l.s4 1966171168
        %v2938 = vunpack.c.0.s8 %v2937
        %v2939 = vlaneseq
        %v2940 = vshrl.u32 %v2939, 7
        %v2941 = vsub.s32 %v2938, %v2940
        %v2942 = vrot.slane %v2920, %v2941
        %v2944 = vunpack.c.l.s4 1966171168
        %v2945 = vunpack.c.0.s8 %v2944
        %v2946 = vlaneseq
        %v2947 = vshrl.u32 %v2946, 7
        %v2948 = vsub.s32 %v2945, %v2947
        %v2949 = vrot.slane %v2921, %v2948
        %v2950 = vcombine.low %v2928, %v2935
        %v2951 = vcombine.low %v2942, %v2949
        %v2953 = vunpack.c.l.s4 1966171168
        %v2954 = vunpack.c.0.s8 %v2953
        %v2955 = vlaneseq
        %v2956 = vshrl.u32 %v2955, 7
        %v2957 = vsub.s32 %v2954, %v2956
        %v2958 = vrot.slane %v2950, %v2957
        %v2960 = vunpack.c.l.s4 1966171168
        %v2961 = vunpack.c.0.s8 %v2960
        %v2962 = vlaneseq
        %v2963 = vshrl.u32 %v2962, 7
        %v2964 = vsub.s32 %v2961, %v2963
        %v2965 = vrot.slane %v2951, %v2964
        %v2966 = vcombine.low %v2958, %v2965
        %2968 = vst [vmem:[#allocation5] sm:$0xff] %v2966
        %p2969 = scmp.eq.s32.totalorder %s32, 1
        // Predicated region
        $region153: #{tpu_custom_call.1} parent=131 // pred_check
          %p2970 = pneg %p2969
        $region154: #{tpu_custom_call.1} parent=131 // pred_check_branch
          %2972 = sbr.rel (%p2970) target = $region156
        $region155: #{tpu_custom_call.1} parent=131 // pred_region
          %v2973 = vld [vmem:[#allocation4] sm:$0x1]
          %v2974 = vld [vmem:[#allocation4 + $0x1] sm:$0x1]
          %v2975 = vld [vmem:[#allocation4 + $0x2] sm:$0x1]
          %v2976 = vld [vmem:[#allocation4 + $0x3] sm:$0x1]
          %v2977 = vld [vmem:[#allocation4 + $0x4] sm:$0x1]
          %v2978 = vld [vmem:[#allocation4 + $0x5] sm:$0x1]
          %v2979 = vld [vmem:[#allocation4 + $0x6] sm:$0x1]
          %v2980 = vld [vmem:[#allocation4 + $0x7] sm:$0x1]
          %v2981 = vld [vmem:[%s8] sm:$0x1]
          %2983 = vset.pattern.permute.xlu0 0
          %2984 = vperm.xlu0 %2983, %v2973
          %v2985 = vpop.permute.xlu0 %2984
          %v2987 = vlaneseq
          %v2988 = vshrl.u32 %v2987, 7
          %v2989 = vsub.s32 0, %v2988
          %v2990 = vrot.slane %v2985, %v2989
          %2992 = vset.pattern.permute.xlu0 0
          %2993 = vperm.xlu0 %2992, %v2974
          %v2994 = vpop.permute.xlu0 %2993
          %v2996 = vlaneseq
          %v2997 = vshrl.u32 %v2996, 7
          %v2998 = vsub.s32 0, %v2997
          %v2999 = vrot.slane %v2994, %v2998
          %3001 = vset.pattern.permute.xlu0 0
          %3002 = vperm.xlu0 %3001, %v2975
          %v3003 = vpop.permute.xlu0 %3002
          %v3005 = vlaneseq
          %v3006 = vshrl.u32 %v3005, 7
          %v3007 = vsub.s32 0, %v3006
          %v3008 = vrot.slane %v3003, %v3007
          %3010 = vset.pattern.permute.xlu0 0
          %3011 = vperm.xlu0 %3010, %v2976
          %v3012 = vpop.permute.xlu0 %3011
          %v3014 = vlaneseq
          %v3015 = vshrl.u32 %v3014, 7
          %v3016 = vsub.s32 0, %v3015
          %v3017 = vrot.slane %v3012, %v3016
          %3019 = vset.pattern.permute.xlu0 0
          %3020 = vperm.xlu0 %3019, %v2977
          %v3021 = vpop.permute.xlu0 %3020
          %v3023 = vlaneseq
          %v3024 = vshrl.u32 %v3023, 7
          %v3025 = vsub.s32 0, %v3024
          %v3026 = vrot.slane %v3021, %v3025
          %3028 = vset.pattern.permute.xlu0 0
          %3029 = vperm.xlu0 %3028, %v2978
          %v3030 = vpop.permute.xlu0 %3029
          %v3032 = vlaneseq
          %v3033 = vshrl.u32 %v3032, 7
          %v3034 = vsub.s32 0, %v3033
          %v3035 = vrot.slane %v3030, %v3034
          %3037 = vset.pattern.permute.xlu0 0
          %3038 = vperm.xlu0 %3037, %v2979
          %v3039 = vpop.permute.xlu0 %3038
          %v3041 = vlaneseq
          %v3042 = vshrl.u32 %v3041, 7
          %v3043 = vsub.s32 0, %v3042
          %v3044 = vrot.slane %v3039, %v3043
          %3046 = vset.pattern.permute.xlu0 0
          %3047 = vperm.xlu0 %3046, %v2980
          %v3048 = vpop.permute.xlu0 %3047
          %v3050 = vlaneseq
          %v3051 = vshrl.u32 %v3050, 7
          %v3052 = vsub.s32 0, %v3051
          %v3053 = vrot.slane %v3048, %v3052
          %v3054 = vlaneseq
          %v3055 = vshrl.u32 %v3054, 7
          %v3056 = vsub.s32 0, %v3055
          %v3057 = vrot.slane %v2981, %v3056
          %v3059 = vcombine.high %v3057, %v3057
          %v3061 = vunpack.c.l.s4 1966171168
          %v3062 = vunpack.c.0.s8 %v3061
          %v3063 = vlaneseq
          %v3064 = vshrl.u32 %v3063, 7
          %v3065 = vsub.s32 %v3062, %v3064
          %v3066 = vrot.slane %v3057, %v3065
          %v3068 = vunpack.c.l.s4 1966171168
          %v3069 = vunpack.c.0.s8 %v3068
          %v3070 = vlaneseq
          %v3071 = vshrl.u32 %v3070, 7
          %v3072 = vsub.s32 %v3069, %v3071
          %v3073 = vrot.slane %v3059, %v3072
          %v3074 = vcombine.high %v3066, %v3066
          %v3075 = vcombine.high %v3073, %v3073
          %v3077 = vunpack.c.l.s4 1966171168
          %v3078 = vunpack.c.0.s8 %v3077
          %v3079 = vlaneseq
          %v3080 = vshrl.u32 %v3079, 7
          %v3081 = vsub.s32 %v3078, %v3080
          %v3082 = vrot.slane %v3066, %v3081
          %v3084 = vunpack.c.l.s4 1966171168
          %v3085 = vunpack.c.0.s8 %v3084
          %v3086 = vlaneseq
          %v3087 = vshrl.u32 %v3086, 7
          %v3088 = vsub.s32 %v3085, %v3087
          %v3089 = vrot.slane %v3073, %v3088
          %v3091 = vunpack.c.l.s4 1966171168
          %v3092 = vunpack.c.0.s8 %v3091
          %v3093 = vlaneseq
          %v3094 = vshrl.u32 %v3093, 7
          %v3095 = vsub.s32 %v3092, %v3094
          %v3096 = vrot.slane %v3074, %v3095
          %v3098 = vunpack.c.l.s4 1966171168
          %v3099 = vunpack.c.0.s8 %v3098
          %v3100 = vlaneseq
          %v3101 = vshrl.u32 %v3100, 7
          %v3102 = vsub.s32 %v3099, %v3101
          %v3103 = vrot.slane %v3075, %v3102
          %v3104 = vcombine.high %v3082, %v3082
          %v3105 = vcombine.high %v3089, %v3089
          %v3106 = vcombine.high %v3096, %v3096
          %v3107 = vcombine.high %v3103, %v3103
          %v3116 = vmul.f32 %v2990, %v3082
          %v3117 = vmul.f32 %v2999, %v3096
          %v3118 = vmul.f32 %v3008, %v3104
          %v3119 = vmul.f32 %v3017, %v3106
          %v3120 = vmul.f32 %v3026, %v3089
          %v3121 = vmul.f32 %v3035, %v3103
          %v3122 = vmul.f32 %v3044, %v3105
          %v3123 = vmul.f32 %v3053, %v3107
          %v3124 = vld [vmem:[%s8 + $0x1] sm:$0x1]
          %3125 = vset.pattern.permute.xlu0 1
          %3126 = vperm.xlu0 %3125, %v2973
          %v3127 = vpop.permute.xlu0 %3126
          %v3129 = vlaneseq
          %v3130 = vshrl.u32 %v3129, 7
          %v3131 = vsub.s32 0, %v3130
          %v3132 = vrot.slane %v3127, %v3131
          %3133 = vset.pattern.permute.xlu0 1
          %3134 = vperm.xlu0 %3133, %v2974
          %v3135 = vpop.permute.xlu0 %3134
          %v3137 = vlaneseq
          %v3138 = vshrl.u32 %v3137, 7
          %v3139 = vsub.s32 0, %v3138
          %v3140 = vrot.slane %v3135, %v3139
          %3141 = vset.pattern.permute.xlu0 1
          %3142 = vperm.xlu0 %3141, %v2975
          %v3143 = vpop.permute.xlu0 %3142
          %v3145 = vlaneseq
          %v3146 = vshrl.u32 %v3145, 7
          %v3147 = vsub.s32 0, %v3146
          %v3148 = vrot.slane %v3143, %v3147
          %3149 = vset.pattern.permute.xlu0 1
          %3150 = vperm.xlu0 %3149, %v2976
          %v3151 = vpop.permute.xlu0 %3150
          %v3153 = vlaneseq
          %v3154 = vshrl.u32 %v3153, 7
          %v3155 = vsub.s32 0, %v3154
          %v3156 = vrot.slane %v3151, %v3155
          %3157 = vset.pattern.permute.xlu0 1
          %3158 = vperm.xlu0 %3157, %v2977
          %v3159 = vpop.permute.xlu0 %3158
          %v3161 = vlaneseq
          %v3162 = vshrl.u32 %v3161, 7
          %v3163 = vsub.s32 0, %v3162
          %v3164 = vrot.slane %v3159, %v3163
          %3165 = vset.pattern.permute.xlu0 1
          %3166 = vperm.xlu0 %3165, %v2978
          %v3167 = vpop.permute.xlu0 %3166
          %v3169 = vlaneseq
          %v3170 = vshrl.u32 %v3169, 7
          %v3171 = vsub.s32 0, %v3170
          %v3172 = vrot.slane %v3167, %v3171
          %3173 = vset.pattern.permute.xlu0 1
          %3174 = vperm.xlu0 %3173, %v2979
          %v3175 = vpop.permute.xlu0 %3174
          %v3177 = vlaneseq
          %v3178 = vshrl.u32 %v3177, 7
          %v3179 = vsub.s32 0, %v3178
          %v3180 = vrot.slane %v3175, %v3179
          %3181 = vset.pattern.permute.xlu0 1
          %3182 = vperm.xlu0 %3181, %v2980
          %v3183 = vpop.permute.xlu0 %3182
          %v3185 = vlaneseq
          %v3186 = vshrl.u32 %v3185, 7
          %v3187 = vsub.s32 0, %v3186
          %v3188 = vrot.slane %v3183, %v3187
          %v3189 = vlaneseq
          %v3190 = vshrl.u32 %v3189, 7
          %v3191 = vsub.s32 0, %v3190
          %v3192 = vrot.slane %v3124, %v3191
          %v3194 = vcombine.high %v3192, %v3192
          %v3196 = vunpack.c.l.s4 1966171168
          %v3197 = vunpack.c.0.s8 %v3196
          %v3198 = vlaneseq
          %v3199 = vshrl.u32 %v3198, 7
          %v3200 = vsub.s32 %v3197, %v3199
          %v3201 = vrot.slane %v3192, %v3200
          %v3203 = vunpack.c.l.s4 1966171168
          %v3204 = vunpack.c.0.s8 %v3203
          %v3205 = vlaneseq
          %v3206 = vshrl.u32 %v3205, 7
          %v3207 = vsub.s32 %v3204, %v3206
          %v3208 = vrot.slane %v3194, %v3207
          %v3209 = vcombine.high %v3201, %v3201
          %v3210 = vcombine.high %v3208, %v3208
          %v3212 = vunpack.c.l.s4 1966171168
          %v3213 = vunpack.c.0.s8 %v3212
          %v3214 = vlaneseq
          %v3215 = vshrl.u32 %v3214, 7
          %v3216 = vsub.s32 %v3213, %v3215
          %v3217 = vrot.slane %v3201, %v3216
          %v3219 = vunpack.c.l.s4 1966171168
          %v3220 = vunpack.c.0.s8 %v3219
          %v3221 = vlaneseq
          %v3222 = vshrl.u32 %v3221, 7
          %v3223 = vsub.s32 %v3220, %v3222
          %v3224 = vrot.slane %v3208, %v3223
          %v3226 = vunpack.c.l.s4 1966171168
          %v3227 = vunpack.c.0.s8 %v3226
          %v3228 = vlaneseq
          %v3229 = vshrl.u32 %v3228, 7
          %v3230 = vsub.s32 %v3227, %v3229
          %v3231 = vrot.slane %v3209, %v3230
          %v3233 = vunpack.c.l.s4 1966171168
          %v3234 = vunpack.c.0.s8 %v3233
          %v3235 = vlaneseq
          %v3236 = vshrl.u32 %v3235, 7
          %v3237 = vsub.s32 %v3234, %v3236
          %v3238 = vrot.slane %v3210, %v3237
          %v3239 = vcombine.high %v3217, %v3217
          %v3240 = vcombine.high %v3224, %v3224
          %v3241 = vcombine.high %v3231, %v3231
          %v3242 = vcombine.high %v3238, %v3238
          %v3251 = vmul.f32 %v3132, %v3217
          %v3252 = vmul.f32 %v3140, %v3231
          %v3253 = vmul.f32 %v3148, %v3239
          %v3254 = vmul.f32 %v3156, %v3241
          %v3255 = vmul.f32 %v3164, %v3224
          %v3256 = vmul.f32 %v3172, %v3238
          %v3257 = vmul.f32 %v3180, %v3240
          %v3258 = vmul.f32 %v3188, %v3242
          %v3259 = vadd.f32 %v3116, %v3251
          %v3260 = vadd.f32 %v3117, %v3252
          %v3261 = vadd.f32 %v3118, %v3253
          %v3262 = vadd.f32 %v3119, %v3254
          %v3263 = vadd.f32 %v3120, %v3255
          %v3264 = vadd.f32 %v3121, %v3256
          %v3265 = vadd.f32 %v3122, %v3257
          %v3266 = vadd.f32 %v3123, %v3258
          %v3267 = vld [vmem:[%s8 + $0x2] sm:$0x1]
          %3268 = vset.pattern.permute.xlu0 2
          %3269 = vperm.xlu0 %3268, %v2973
          %v3270 = vpop.permute.xlu0 %3269
          %v3272 = vlaneseq
          %v3273 = vshrl.u32 %v3272, 7
          %v3274 = vsub.s32 0, %v3273
          %v3275 = vrot.slane %v3270, %v3274
          %3276 = vset.pattern.permute.xlu0 2
          %3277 = vperm.xlu0 %3276, %v2974
          %v3278 = vpop.permute.xlu0 %3277
          %v3280 = vlaneseq
          %v3281 = vshrl.u32 %v3280, 7
          %v3282 = vsub.s32 0, %v3281
          %v3283 = vrot.slane %v3278, %v3282
          %3284 = vset.pattern.permute.xlu0 2
          %3285 = vperm.xlu0 %3284, %v2975
          %v3286 = vpop.permute.xlu0 %3285
          %v3288 = vlaneseq
          %v3289 = vshrl.u32 %v3288, 7
          %v3290 = vsub.s32 0, %v3289
          %v3291 = vrot.slane %v3286, %v3290
          %3292 = vset.pattern.permute.xlu0 2
          %3293 = vperm.xlu0 %3292, %v2976
          %v3294 = vpop.permute.xlu0 %3293
          %v3296 = vlaneseq
          %v3297 = vshrl.u32 %v3296, 7
          %v3298 = vsub.s32 0, %v3297
          %v3299 = vrot.slane %v3294, %v3298
          %3300 = vset.pattern.permute.xlu0 2
          %3301 = vperm.xlu0 %3300, %v2977
          %v3302 = vpop.permute.xlu0 %3301
          %v3304 = vlaneseq
          %v3305 = vshrl.u32 %v3304, 7
          %v3306 = vsub.s32 0, %v3305
          %v3307 = vrot.slane %v3302, %v3306
          %3308 = vset.pattern.permute.xlu0 2
          %3309 = vperm.xlu0 %3308, %v2978
          %v3310 = vpop.permute.xlu0 %3309
          %v3312 = vlaneseq
          %v3313 = vshrl.u32 %v3312, 7
          %v3314 = vsub.s32 0, %v3313
          %v3315 = vrot.slane %v3310, %v3314
          %3316 = vset.pattern.permute.xlu0 2
          %3317 = vperm.xlu0 %3316, %v2979
          %v3318 = vpop.permute.xlu0 %3317
          %v3320 = vlaneseq
          %v3321 = vshrl.u32 %v3320, 7
          %v3322 = vsub.s32 0, %v3321
          %v3323 = vrot.slane %v3318, %v3322
          %3324 = vset.pattern.permute.xlu0 2
          %3325 = vperm.xlu0 %3324, %v2980
          %v3326 = vpop.permute.xlu0 %3325
          %v3328 = vlaneseq
          %v3329 = vshrl.u32 %v3328, 7
          %v3330 = vsub.s32 0, %v3329
          %v3331 = vrot.slane %v3326, %v3330
          %v3332 = vlaneseq
          %v3333 = vshrl.u32 %v3332, 7
          %v3334 = vsub.s32 0, %v3333
          %v3335 = vrot.slane %v3267, %v3334
          %v3337 = vcombine.high %v3335, %v3335
          %v3339 = vunpack.c.l.s4 1966171168
          %v3340 = vunpack.c.0.s8 %v3339
          %v3341 = vlaneseq
          %v3342 = vshrl.u32 %v3341, 7
          %v3343 = vsub.s32 %v3340, %v3342
          %v3344 = vrot.slane %v3335, %v3343
          %v3346 = vunpack.c.l.s4 1966171168
          %v3347 = vunpack.c.0.s8 %v3346
          %v3348 = vlaneseq
          %v3349 = vshrl.u32 %v3348, 7
          %v3350 = vsub.s32 %v3347, %v3349
          %v3351 = vrot.slane %v3337, %v3350
          %v3352 = vcombine.high %v3344, %v3344
          %v3353 = vcombine.high %v3351, %v3351
          %v3355 = vunpack.c.l.s4 1966171168
          %v3356 = vunpack.c.0.s8 %v3355
          %v3357 = vlaneseq
          %v3358 = vshrl.u32 %v3357, 7
          %v3359 = vsub.s32 %v3356, %v3358
          %v3360 = vrot.slane %v3344, %v3359
          %v3362 = vunpack.c.l.s4 1966171168
          %v3363 = vunpack.c.0.s8 %v3362
          %v3364 = vlaneseq
          %v3365 = vshrl.u32 %v3364, 7
          %v3366 = vsub.s32 %v3363, %v3365
          %v3367 = vrot.slane %v3351, %v3366
          %v3369 = vunpack.c.l.s4 1966171168
          %v3370 = vunpack.c.0.s8 %v3369
          %v3371 = vlaneseq
          %v3372 = vshrl.u32 %v3371, 7
          %v3373 = vsub.s32 %v3370, %v3372
          %v3374 = vrot.slane %v3352, %v3373
          %v3376 = vunpack.c.l.s4 1966171168
          %v3377 = vunpack.c.0.s8 %v3376
          %v3378 = vlaneseq
          %v3379 = vshrl.u32 %v3378, 7
          %v3380 = vsub.s32 %v3377, %v3379
          %v3381 = vrot.slane %v3353, %v3380
          %v3382 = vcombine.high %v3360, %v3360
          %v3383 = vcombine.high %v3367, %v3367
          %v3384 = vcombine.high %v3374, %v3374
          %v3385 = vcombine.high %v3381, %v3381
          %v3394 = vmul.f32 %v3275, %v3360
          %v3395 = vmul.f32 %v3283, %v3374
          %v3396 = vmul.f32 %v3291, %v3382
          %v3397 = vmul.f32 %v3299, %v3384
          %v3398 = vmul.f32 %v3307, %v3367
          %v3399 = vmul.f32 %v3315, %v3381
          %v3400 = vmul.f32 %v3323, %v3383
          %v3401 = vmul.f32 %v3331, %v3385
          %v3402 = vadd.f32 %v3259, %v3394
          %v3403 = vadd.f32 %v3260, %v3395
          %v3404 = vadd.f32 %v3261, %v3396
          %v3405 = vadd.f32 %v3262, %v3397
          %v3406 = vadd.f32 %v3263, %v3398
          %v3407 = vadd.f32 %v3264, %v3399
          %v3408 = vadd.f32 %v3265, %v3400
          %v3409 = vadd.f32 %v3266, %v3401
          %v3410 = vld [vmem:[%s8 + $0x3] sm:$0x1]
          %3411 = vset.pattern.permute.xlu0 3
          %3412 = vperm.xlu0 %3411, %v2973
          %v3413 = vpop.permute.xlu0 %3412
          %v3415 = vlaneseq
          %v3416 = vshrl.u32 %v3415, 7
          %v3417 = vsub.s32 0, %v3416
          %v3418 = vrot.slane %v3413, %v3417
          %3419 = vset.pattern.permute.xlu0 3
          %3420 = vperm.xlu0 %3419, %v2974
          %v3421 = vpop.permute.xlu0 %3420
          %v3423 = vlaneseq
          %v3424 = vshrl.u32 %v3423, 7
          %v3425 = vsub.s32 0, %v3424
          %v3426 = vrot.slane %v3421, %v3425
          %3427 = vset.pattern.permute.xlu0 3
          %3428 = vperm.xlu0 %3427, %v2975
          %v3429 = vpop.permute.xlu0 %3428
          %v3431 = vlaneseq
          %v3432 = vshrl.u32 %v3431, 7
          %v3433 = vsub.s32 0, %v3432
          %v3434 = vrot.slane %v3429, %v3433
          %3435 = vset.pattern.permute.xlu0 3
          %3436 = vperm.xlu0 %3435, %v2976
          %v3437 = vpop.permute.xlu0 %3436
          %v3439 = vlaneseq
          %v3440 = vshrl.u32 %v3439, 7
          %v3441 = vsub.s32 0, %v3440
          %v3442 = vrot.slane %v3437, %v3441
          %3443 = vset.pattern.permute.xlu0 3
          %3444 = vperm.xlu0 %3443, %v2977
          %v3445 = vpop.permute.xlu0 %3444
          %v3447 = vlaneseq
          %v3448 = vshrl.u32 %v3447, 7
          %v3449 = vsub.s32 0, %v3448
          %v3450 = vrot.slane %v3445, %v3449
          %3451 = vset.pattern.permute.xlu0 3
          %3452 = vperm.xlu0 %3451, %v2978
          %v3453 = vpop.permute.xlu0 %3452
          %v3455 = vlaneseq
          %v3456 = vshrl.u32 %v3455, 7
          %v3457 = vsub.s32 0, %v3456
          %v3458 = vrot.slane %v3453, %v3457
          %3459 = vset.pattern.permute.xlu0 3
          %3460 = vperm.xlu0 %3459, %v2979
          %v3461 = vpop.permute.xlu0 %3460
          %v3463 = vlaneseq
          %v3464 = vshrl.u32 %v3463, 7
          %v3465 = vsub.s32 0, %v3464
          %v3466 = vrot.slane %v3461, %v3465
          %3467 = vset.pattern.permute.xlu0 3
          %3468 = vperm.xlu0 %3467, %v2980
          %v3469 = vpop.permute.xlu0 %3468
          %v3471 = vlaneseq
          %v3472 = vshrl.u32 %v3471, 7
          %v3473 = vsub.s32 0, %v3472
          %v3474 = vrot.slane %v3469, %v3473
          %v3475 = vlaneseq
          %v3476 = vshrl.u32 %v3475, 7
          %v3477 = vsub.s32 0, %v3476
          %v3478 = vrot.slane %v3410, %v3477
          %v3480 = vcombine.high %v3478, %v3478
          %v3482 = vunpack.c.l.s4 1966171168
          %v3483 = vunpack.c.0.s8 %v3482
          %v3484 = vlaneseq
          %v3485 = vshrl.u32 %v3484, 7
          %v3486 = vsub.s32 %v3483, %v3485
          %v3487 = vrot.slane %v3478, %v3486
          %v3489 = vunpack.c.l.s4 1966171168
          %v3490 = vunpack.c.0.s8 %v3489
          %v3491 = vlaneseq
          %v3492 = vshrl.u32 %v3491, 7
          %v3493 = vsub.s32 %v3490, %v3492
          %v3494 = vrot.slane %v3480, %v3493
          %v3495 = vcombine.high %v3487, %v3487
          %v3496 = vcombine.high %v3494, %v3494
          %v3498 = vunpack.c.l.s4 1966171168
          %v3499 = vunpack.c.0.s8 %v3498
          %v3500 = vlaneseq
          %v3501 = vshrl.u32 %v3500, 7
          %v3502 = vsub.s32 %v3499, %v3501
          %v3503 = vrot.slane %v3487, %v3502
          %v3505 = vunpack.c.l.s4 1966171168
          %v3506 = vunpack.c.0.s8 %v3505
          %v3507 = vlaneseq
          %v3508 = vshrl.u32 %v3507, 7
          %v3509 = vsub.s32 %v3506, %v3508
          %v3510 = vrot.slane %v3494, %v3509
          %v3512 = vunpack.c.l.s4 1966171168
          %v3513 = vunpack.c.0.s8 %v3512
          %v3514 = vlaneseq
          %v3515 = vshrl.u32 %v3514, 7
          %v3516 = vsub.s32 %v3513, %v3515
          %v3517 = vrot.slane %v3495, %v3516
          %v3519 = vunpack.c.l.s4 1966171168
          %v3520 = vunpack.c.0.s8 %v3519
          %v3521 = vlaneseq
          %v3522 = vshrl.u32 %v3521, 7
          %v3523 = vsub.s32 %v3520, %v3522
          %v3524 = vrot.slane %v3496, %v3523
          %v3525 = vcombine.high %v3503, %v3503
          %v3526 = vcombine.high %v3510, %v3510
          %v3527 = vcombine.high %v3517, %v3517
          %v3528 = vcombine.high %v3524, %v3524
          %v3537 = vmul.f32 %v3418, %v3503
          %v3538 = vmul.f32 %v3426, %v3517
          %v3539 = vmul.f32 %v3434, %v3525
          %v3540 = vmul.f32 %v3442, %v3527
          %v3541 = vmul.f32 %v3450, %v3510
          %v3542 = vmul.f32 %v3458, %v3524
          %v3543 = vmul.f32 %v3466, %v3526
          %v3544 = vmul.f32 %v3474, %v3528
          %v3545 = vadd.f32 %v3402, %v3537
          %v3546 = vadd.f32 %v3403, %v3538
          %v3547 = vadd.f32 %v3404, %v3539
          %v3548 = vadd.f32 %v3405, %v3540
          %v3549 = vadd.f32 %v3406, %v3541
          %v3550 = vadd.f32 %v3407, %v3542
          %v3551 = vadd.f32 %v3408, %v3543
          %v3552 = vadd.f32 %v3409, %v3544
          %v3553 = vld [vmem:[#allocation5] sm:$0xff]
          %v3554 = vrcp.pop %v3545
          %v3555 = vrcp.pop %v3546
          %v3556 = vrcp.pop %v3547
          %v3557 = vrcp.pop %v3548
          %v3558 = vrcp.pop %v3549
          %v3559 = vrcp.pop %v3550
          %v3560 = vrcp.pop %v3551
          %v3561 = vrcp.pop %v3552
          %v3570 = vcombine.low %v3554, %v3555
          %v3571 = vcombine.low %v3556, %v3557
          %v3572 = vcombine.low %v3558, %v3559
          %v3573 = vcombine.low %v3560, %v3561
          %v3575 = vunpack.c.l.s4 1966171168
          %v3576 = vunpack.c.0.s8 %v3575
          %v3577 = vlaneseq
          %v3578 = vshrl.u32 %v3577, 7
          %v3579 = vsub.s32 %v3576, %v3578
          %v3580 = vrot.slane %v3570, %v3579
          %v3582 = vunpack.c.l.s4 1966171168
          %v3583 = vunpack.c.0.s8 %v3582
          %v3584 = vlaneseq
          %v3585 = vshrl.u32 %v3584, 7
          %v3586 = vsub.s32 %v3583, %v3585
          %v3587 = vrot.slane %v3571, %v3586
          %v3589 = vunpack.c.l.s4 1966171168
          %v3590 = vunpack.c.0.s8 %v3589
          %v3591 = vlaneseq
          %v3592 = vshrl.u32 %v3591, 7
          %v3593 = vsub.s32 %v3590, %v3592
          %v3594 = vrot.slane %v3572, %v3593
          %v3596 = vunpack.c.l.s4 1966171168
          %v3597 = vunpack.c.0.s8 %v3596
          %v3598 = vlaneseq
          %v3599 = vshrl.u32 %v3598, 7
          %v3600 = vsub.s32 %v3597, %v3599
          %v3601 = vrot.slane %v3573, %v3600
          %v3602 = vcombine.low %v3580, %v3587
          %v3603 = vcombine.low %v3594, %v3601
          %v3605 = vunpack.c.l.s4 1966171168
          %v3606 = vunpack.c.0.s8 %v3605
          %v3607 = vlaneseq
          %v3608 = vshrl.u32 %v3607, 7
          %v3609 = vsub.s32 %v3606, %v3608
          %v3610 = vrot.slane %v3602, %v3609
          %v3612 = vunpack.c.l.s4 1966171168
          %v3613 = vunpack.c.0.s8 %v3612
          %v3614 = vlaneseq
          %v3615 = vshrl.u32 %v3614, 7
          %v3616 = vsub.s32 %v3613, %v3615
          %v3617 = vrot.slane %v3603, %v3616
          %v3618 = vcombine.low %v3610, %v3617
          %v3620 = vmul.f32 %v3553, %v3618
          %v3621 = vpack.c.bf16 %v3620, %v3620
          %v3622 = vld [vmem:[%s9] sm:$0xf]
          %v3623 = vld [vmem:[%s9 + $0x4] sm:$0xf]
          %v3624 = vld [vmem:[%s9 + $0x8] sm:$0xf]
          %v3625 = vld [vmem:[%s9 + $0xc] sm:$0xf]
          %v3626 = vld [vmem:[%s9 + $0x10] sm:$0xf]
          %v3627 = vld [vmem:[%s9 + $0x14] sm:$0xf]
          %v3628 = vld [vmem:[%s9 + $0x18] sm:$0xf]
          %v3629 = vld [vmem:[%s9 + $0x1c] sm:$0xf]
          %v3630 = vld [vmem:[%s9 + $0x20] sm:$0xf]
          %v3631 = vld [vmem:[%s9 + $0x24] sm:$0xf]
          %v3632 = vld [vmem:[%s9 + $0x28] sm:$0xf]
          %v3633 = vld [vmem:[%s9 + $0x2c] sm:$0xf]
          %v3634 = vld [vmem:[%s9 + $0x30] sm:$0xf]
          %v3635 = vld [vmem:[%s9 + $0x34] sm:$0xf]
          %v3636 = vld [vmem:[%s9 + $0x38] sm:$0xf]
          %v3637 = vld [vmem:[%s9 + $0x3c] sm:$0xf]
          %v3638 = vld [vmem:[%s10] sm:$0x1]
          %v3640 = vlaneseq
          %v3641 = vshrl.u32 %v3640, 7
          %v3642 = vsub.s32 0, %v3641
          %v3643 = vrot.slane %v3638, %v3642
          %v3661 = vunpack.c.l.b16 %v3622
          %v3662 = vunpack.c.l.b16 %v3623
          %v3663 = vunpack.c.l.b16 %v3624
          %v3664 = vunpack.c.l.b16 %v3625
          %v3665 = vunpack.c.l.b16 %v3626
          %v3666 = vunpack.c.l.b16 %v3627
          %v3667 = vunpack.c.l.b16 %v3628
          %v3668 = vunpack.c.l.b16 %v3629
          %v3669 = vunpack.c.l.b16 %v3630
          %v3670 = vunpack.c.l.b16 %v3631
          %v3671 = vunpack.c.l.b16 %v3632
          %v3672 = vunpack.c.l.b16 %v3633
          %v3673 = vunpack.c.l.b16 %v3634
          %v3674 = vunpack.c.l.b16 %v3635
          %v3675 = vunpack.c.l.b16 %v3636
          %v3676 = vunpack.c.l.b16 %v3637
          %v3677 = vpack.c.b16 %v3662, %v3661
          %v3678 = vpack.c.b16 %v3664, %v3663
          %v3679 = vpack.c.b16 %v3666, %v3665
          %v3680 = vpack.c.b16 %v3668, %v3667
          %v3681 = vpack.c.b16 %v3670, %v3669
          %v3682 = vpack.c.b16 %v3672, %v3671
          %v3683 = vpack.c.b16 %v3674, %v3673
          %v3684 = vpack.c.b16 %v3676, %v3675
          %3693 = vmatprep.subr.bf16.mxu0 0
          %3694 = vmatpush1.bf16.msra.mxu0 %v3684
          %3695 = vmatprep.subr.bf16.mxu0 0
          %3696 = vmatpush1.bf16.msra.mxu0 %v3683
          %3697 = vmatprep.subr.bf16.mxu0 0
          %3698 = vmatpush1.bf16.msra.mxu0 %v3682
          %3699 = vmatprep.subr.bf16.mxu0 0
          %3700 = vmatpush1.bf16.msra.mxu0 %v3681
          %3701 = vmatprep.subr.bf16.mxu0 0
          %3702 = vmatpush1.bf16.msra.mxu0 %v3680
          %3703 = vmatprep.subr.bf16.mxu0 0
          %3704 = vmatpush1.bf16.msra.mxu0 %v3679
          %3705 = vmatprep.subr.bf16.mxu0 0
          %3706 = vmatpush1.bf16.msra.mxu0 %v3678
          %3707 = vmatprep.subr.bf16.mxu0 0
          %3708 = vmatpush1.bf16.msra.mxu0 %v3677
          %3709 = vmatprep.subr.bf16.mxu0 0
          %3710 = vmatpush2.bf16.msra.mxu0 0
          %3711 = vmatprep.subr.bf16.mxu0 0
          %3712 = vmatpush2.bf16.msra.mxu0 0
          %3713 = vmatprep.subr.bf16.mxu0 0
          %3714 = vmatpush2.bf16.msra.mxu0 0
          %3715 = vmatprep.subr.bf16.mxu0 0
          %3716 = vmatpush2.bf16.msra.mxu0 0
          %3717 = vmatprep.subr.bf16.mxu0 0
          %3718 = vmatpush2.bf16.msra.mxu0 0
          %3719 = vmatprep.subr.bf16.mxu0 0
          %3720 = vmatpush2.bf16.msra.mxu0 0
          %3721 = vmatprep.subr.bf16.mxu0 0
          %3722 = vmatpush2.bf16.msra.mxu0 0
          %3723 = vmatprep.subr.bf16.mxu0 0
          %3724 = vmatpush2.bf16.msra.mxu0 0
          %3725 = vmatprep.mubr.bf16.mxu0 0
          %3726 = vmatmul.mubr.bf16.gmra.mxu0 %v3621
          %v3727 = vpop.f32.mrf.mxu0
          %v3728 = vadd.f32 %v3643, %v3727
          %v3729 = vpop.f32.mrf.mxu0
          %v3730 = vpop.f32.mrf.mxu0
          %v3731 = vpop.f32.mrf.mxu0
          %3732 = vdwg.mxu0
          %3733 = vst [vmem:[%s661] sm:$0xff] %v3728
        $region156: #{tpu_custom_call.1} parent=131 // pred_fallthru
          _
        %s3734 = sand.u32 %s297, 1
        %s3735 = scalar_lea.sflag [#allocation10], %s3734
        %s3736 = sand.u32 %s297, 1
        %s3737 = smul.addr %s3736, 8
        %s3738 = scalar_lea.vmem [#allocation13], %s3737
        // Predicated region
        $region157: #{tpu_custom_call.1} parent=131 // pred_check
          %p3739 = pneg %p307
        $region158: #{tpu_custom_call.1} parent=131 // pred_check_branch
          %3741 = sbr.rel (%p3739) target = $region160
        $region159: #{tpu_custom_call.1} parent=131 // pred_region
          %s3743 = ssub.s32 128, 128
          %3744 = vsyncadd %s3735, %s3743
          %s3745 = smul.addr %s31, 128
          %s3746 = scalar_lea.hbm %s11, %s3745
          %s3748 = sshll.u32 %s3738, 4
          %s3749 = int_to_ptr.vmem [resolvable:$true] %s3748
          %3751 = dma.vmem_to_hbm [thread:$0]  %s3749, 128, %s3746, %s3735
        $region160: #{tpu_custom_call.1} parent=131 // pred_fallthru
          _
      $region132: #{tpu_custom_call.1} parent=5 // pred_fallthru
        _
      %p3752 = scmp.le.s32.totalorder 2, %s22
      // Predicated region
      $region161: #{tpu_custom_call.1} parent=5 // pred_check
        %p3753 = pneg %p3752
      $region162: #{tpu_custom_call.1} parent=5 // pred_check_branch
        %3755 = sbr.rel (%p3753) target = $region164
      $region163: #{tpu_custom_call.1} parent=5 // pred_region
        %s3756 = ssub.s32 %s22, 2
        // Predicated region
        $region165: #{tpu_custom_call.1} parent=163 // pred_check
          %p3757 = pneg %p313
        $region166: #{tpu_custom_call.1} parent=163 // pred_check_branch
          %3759 = sbr.rel (%p3757) target = $region168
        $region167: #{tpu_custom_call.1} parent=163 // pred_region
          %s3760 = sand.u32 %s298, 1
          %s3761 = scalar_lea.sflag [#allocation10], %s3760
          %s3762 = sand.u32 %s298, 1
          %s3763 = smul.addr %s3762, 8
          %s3764 = scalar_lea.vmem [#allocation13], %s3763
          %3765 = dma.done %s3761, 128
        $region168: #{tpu_custom_call.1} parent=163 // pred_fallthru
          _
      $region164: #{tpu_custom_call.1} parent=5 // pred_fallthru
        _
    $region6: #{tpu_custom_call.1} parent=1 // loop_footer
      %s26 = sadd.s32 1, %s22
    $region7: #{tpu_custom_call.1} parent=1 // loop_footer_branch
      %21 = sbr.rel target = $region3
    $region8: #{tpu_custom_call.1} parent=1 // loop_exit
      _
    %3766 = vsyncpa [#allocation9], 1
    %s3767 = scalar_lea.sflag [#allocation9], 1
    %3768 = vsyncpa %s3767, 1
    %3769 = vsyncpa [#allocation12], 1
    %3770 = vsyncpa [#allocation10], 1
    %s3771 = scalar_lea.sflag [#allocation10], 1
    %3772 = vsyncpa %s3771, 1

</llo_original>
